<compile_context>
chip_gen: v7x
topology: tpu7x:2x2x1
jax: 0.10.0
libtpu: 0.0.40
codegen_flags: <defaults>
</compile_context>

<pallas_src>
import functools
import numpy as np
import jax
import jax.numpy as jnp
from jax.experimental import pallas as pl
from jax.experimental.pallas import tpu as pltpu  # noqa: F401  (kept for TPU-specific tuning hooks)

# -------------------- small config consistent with MODEL.forward -------------
N_EXERCISE = 8
N_KC = 8
EMBED_DIM = 16          # exercise_embed_dim == GAT in/out features
HIDDEN_DIM = 32
LAYER_NUM = 1           # single LSTM layer (dropout between layers is a no-op)
N_HEADS = 2
ALPHA = 0.2             # LeakyReLU slope inside the GAT layer
MODE = 2                # GAT combine mode: elu(new_kc_embed * (exercise_h @ E))
LAMDA = 0.1
BATCH = 2
SEQLEN = 8


# ------------------------------ fused forward kernel -------------------------
def _fused_forward_kernel(
        ex_idx_ref, resp_idx_ref, target_ref,
        exemb_ref, kcemb_ref, adj_ref,
        w1_ref, a_ref, egat_ref, mix_ref, perm_ref,
        wih_ref, whh_ref, blstm_ref,
        fc1w_ref, fc1b_ref, fc2w_ref, fc2b_ref,
        loss_ref, probs_ref,
        *, n_heads, feat, hidden, batch, seqlen, alpha):
    f32 = jnp.float32
    ex_h = exemb_ref[...]                       # (Ne, F)
    kc_h = kcemb_ref[...]                       # (Nk, F)
    adj = adj_ref[...]                          # (Ne, Nk)
    n_ex = ex_h.shape[0]

    # ---------------- multi-head GAT (mode 2), fused over heads --------------
    # The per-head "mix" matmul reproduces torch's cat(dim=1).view(Ne,F,H).mean(2)
    # exactly (adjacent-column averaging of the concatenated head outputs).
    ex_embedding = jnp.zeros((n_ex, feat), f32)
    for h in range(n_heads):
        w1 = w1_ref[h]                          # (F, F)
        a = a_ref[h]                            # (2F, 1)
        kc_wh = jnp.dot(kc_h, w1, preferred_element_type=f32)      # (Nk, F)
        ex_wh = jnp.dot(ex_h, w1, preferred_element_type=f32)      # (Ne, F)
        # e[i, j] = leakyrelu( ex_wh[i]·a[:F] + kc_wh[j]·a[F:] )
        e_left = jnp.dot(ex_wh, a[:feat, :], preferred_element_type=f32)   # (Ne,1)
        e_right = jnp.dot(kc_wh, a[feat:, :], preferred_element_type=f32)  # (Nk,1)
        e = e_left + e_right.T                                             # (Ne,Nk)
        e = jnp.where(e > 0, e, alpha * e)                                 # LeakyReLU
        masked = jnp.where(adj > 0, e, jnp.full_like(e, -9e15))
        m = jnp.max(masked, axis=1, keepdims=True)
        p = jnp.exp(masked - m)
        att = p * pl.reciprocal(jnp.sum(p, axis=1, keepdims=True), approx=True)
        new_kc = jnp.dot(att, kc_wh, preferred_element_type=f32)           # (Ne,F)
        ex_eh = jnp.dot(ex_h, egat_ref[h], preferred_element_type=f32)     # mode 2
        emb = new_kc * ex_eh
        head_out = jnp.where(emb > 0, emb,
                             jnp.exp(jnp.minimum(emb, 0.0)) - 1.0)         # ELU(1)
        ex_embedding = ex_embedding + jnp.dot(head_out, mix_ref[h],
                                              preferred_element_type=f32)

    # -------- gathers as one-hot matmuls (zero-padded tables folded) ---------
    # response table row r: 0 -> zeros; 1..Ne -> [0 | E[r-1]]; Ne+1..2Ne -> [E[r-Ne-1] | 0]
    tb = seqlen * batch
    resp_idx = resp_idx_ref[...]                                   # (T*B, 1) time-major
    cols = jax.lax.broadcasted_iota(jnp.int32, (tb, n_ex), 1)
    left_oh = (cols == (resp_idx - (n_ex + 1))).astype(f32)        # feeds cols 0..F-1
    right_oh = (cols == (resp_idx - 1)).astype(f32)                # feeds cols F..2F-1
    left_x = jnp.dot(left_oh, ex_embedding, preferred_element_type=f32)
    right_x = jnp.dot(right_oh, ex_embedding, preferred_element_type=f32)

    # Input projection hoisted out of the recurrence: one (T*B, 2F)@(2F, 4H)
    # matmul (split to fold the lstm_input concat) instead of T tiny ones.
    wih = wih_ref[...]                                             # (2F, 4H)
    gates_x = (jnp.dot(left_x, wih[:feat, :], preferred_element_type=f32)
               + jnp.dot(right_x, wih[feat:, :], preferred_element_type=f32)
               + blstm_ref[...])                                   # (T*B, 4H)

    # --------------------------- LSTM recurrence -----------------------------
    whh = whh_ref[...]                                             # (H, 4H)
    perm_all = perm_ref[...]                                       # (B*(T-1), T*B)
    bm = batch * (seqlen - 1)
    h_state = jnp.zeros((batch, hidden), f32)
    c_state = jnp.zeros((batch, hidden), f32)
    learn_bm = jnp.zeros((bm, hidden), f32)                        # batch-major learn state
    for t in range(seqlen):                                        # static unroll (T=8)
        g = gates_x[t * batch:(t + 1) * batch, :] + jnp.dot(
            h_state, whh, preferred_element_type=f32)              # (B, 4H)
        sig = jax.nn.sigmoid(g)                                    # one EUP pass
        th = jnp.tanh(g)                                           # one EUP pass
        i_g = sig[:, 0:hidden]
        f_g = sig[:, hidden:2 * hidden]
        g_g = th[:, 2 * hidden:3 * hidden]
        o_g = sig[:, 3 * hidden:4 * hidden]
        c_state = f_g * c_state + i_g * g_g
        h_state = o_g * jnp.tanh(c_state)
        if t < seqlen - 1:
            # scatter h_t into the batch-major learn-state slab via a constant
            # permutation matmul (keeps output ordering identical to torch).
            learn_bm = learn_bm + jnp.dot(
                perm_all[:, t * batch:(t + 1) * batch], h_state,
                preferred_element_type=f32)

    # ------- assessment exercise embeddings, batch-major, t = 1..T-1 ---------
    ex_idx = ex_idx_ref[...]                                       # (bm, 1)
    cols2 = jax.lax.broadcasted_iota(jnp.int32, (bm, n_ex), 1)
    assess_oh = (cols2 == (ex_idx - 1)).astype(f32)                # idx 0 -> zero row
    assess_bm = jnp.dot(assess_oh, ex_embedding, preferred_element_type=f32)

    # ------------------- fc1 -> relu -> fc2 (concat folded) ------------------
    fc1w = fc1w_ref[...]                                           # (H+F, H)
    y = (jnp.dot(learn_bm, fc1w[:hidden, :], preferred_element_type=f32)
         + jnp.dot(assess_bm, fc1w[hidden:, :], preferred_element_type=f32)
         + fc1b_ref[...])
    y = jnp.maximum(y, 0.0)
    pred = jnp.dot(y, fc2w_ref[...], preferred_element_type=f32) + fc2b_ref[...]

    # ---------------- masked BCE-with-logits, fully on device ----------------
    z = target_ref[...]                                            # (bm, 1)
    mask = (z >= 0.0).astype(f32)
    bce = (jnp.maximum(pred, 0.0) - pred * z
           + jnp.log(1.0 + jnp.exp(-jnp.abs(pred))))
    num = jnp.sum(mask * bce, keepdims=True)                       # (1, 1)
    den = jnp.sum(mask, keepdims=True)                             # (1, 1)
    loss_ref[...] = num / den
    probs_ref[...] = jax.nn.sigmoid(pred)


# ------------------------------ host-side constants --------------------------
def _head_mix(n_heads, feat):
    """mix[h] s.t. sum_h head_h @ mix[h] == cat(heads,1).view(Ne,F,H).mean(2)."""
    mix = np.zeros((n_heads, feat, feat), np.float32)
    for h in range(n_heads):
        for f in range(feat):
            mix[h, f, (h * feat + f) // n_heads] = 1.0 / n_heads
    return jnp.asarray(mix)


def _time_to_batch_perm(batch, seqlen):
    """perm s.t. (perm @ h_time_major)[b*(T-1)+t] == h_t[b] for t < T-1."""
    bm = batch * (seqlen - 1)
    perm = np.zeros((bm, seqlen * batch), np.float32)
    for r in range(bm):
        b, t = divmod(r, seqlen - 1)
        perm[r, t * batch + b] = 1.0
    return jnp.asarray(perm)


def fused_forward(params, adj, ex_idx, resp_idx, target, mix, perm, batch, seqlen):
    bm = batch * (seqlen - 1)
    kernel = functools.partial(
        _fused_forward_kernel, n_heads=N_HEADS, feat=EMBED_DIM,
        hidden=HIDDEN_DIM, batch=batch, seqlen=seqlen, alpha=ALPHA)
    return pl.pallas_call(
        kernel,
        out_shape=(jax.ShapeDtypeStruct((1, 1), jnp.float32),
                   jax.ShapeDtypeStruct((bm, 1), jnp.float32)),
    )(ex_idx, resp_idx, target,
      params["exercise_embed"], params["kc_embed"], adj,
      params["W1"], params["a"], params["E"], mix, perm,
      params["w_ih_t"], params["w_hh_t"], params["b_lstm"],
      params["fc1_w_t"], params["fc1_b"], params["fc2_w_t"], params["fc2_b"])


# ------------------------------ parameter init --------------------------------
def init_params(key):
    ks = jax.random.split(key, 12)
    kaiming = lambda k, shape, fan_in: (jax.random.normal(k, shape, jnp.float32)
                                        * np.sqrt(2.0 / fan_in))
    p = {}
    p["exercise_embed"] = kaiming(ks[0], (N_EXERCISE, EMBED_DIM), EMBED_DIM)
    p["kc_embed"] = kaiming(ks[1], (N_KC, EMBED_DIM), EMBED_DIM)
    # stacked per-head GAT parameters (mode 2: W1, a, E)
    p["W1"] = kaiming(ks[2], (N_HEADS, EMBED_DIM, EMBED_DIM), EMBED_DIM)
    p["a"] = kaiming(ks[3], (N_HEADS, 2 * EMBED_DIM, 1), 1)
    p["E"] = kaiming(ks[4], (N_HEADS, EMBED_DIM, EMBED_DIM), EMBED_DIM)
    # LSTM (pre-transposed: (2F, 4H) / (H, 4H)); PyTorch-style uniform init, gate order i,f,g,o
    bound = 1.0 / np.sqrt(HIDDEN_DIM)
    uni = lambda k, shape: jax.random.uniform(k, shape, jnp.float32, -bound, bound)
    p["w_ih_t"] = uni(ks[5], (2 * EMBED_DIM, 4 * HIDDEN_DIM))
    p["w_hh_t"] = uni(ks[6], (HIDDEN_DIM, 4 * HIDDEN_DIM))
    p["b_lstm"] = uni(ks[7], (1, 4 * HIDDEN_DIM)) + uni(ks[8], (1, 4 * HIDDEN_DIM))
    # fc1 / fc2 (pre-transposed)
    p["fc1_w_t"] = kaiming(ks[9], (EMBED_DIM + HIDDEN_DIM, HIDDEN_DIM),
                           EMBED_DIM + HIDDEN_DIM)
    p["fc1_b"] = jnp.zeros((1, HIDDEN_DIM), jnp.float32)
    p["fc2_w_t"] = kaiming(ks[10], (HIDDEN_DIM, 1), HIDDEN_DIM)
    p["fc2_b"] = jnp.zeros((1, 1), jnp.float32)
    return p


# ------------------------------ model forward (jitted) ------------------------
@jax.jit
def model_forward(params, adj_exercise_kc, kc_data, exercise_data,
                  exercise_respond_data, target):
    del kc_data  # unused in the reference forward
    batch, seqlen = exercise_data.shape

    # tiny index re-layouts (int32, done once under jit; everything else fused)
    ex_idx = exercise_data[:, 1:].reshape(batch * (seqlen - 1), 1).astype(jnp.int32)
    resp_idx = jnp.transpose(exercise_respond_data).reshape(
        seqlen * batch, 1).astype(jnp.int32)
    mix = _head_mix(N_HEADS, EMBED_DIM)
    perm = _time_to_batch_perm(batch, seqlen)

    loss2d, probs = fused_forward(params, adj_exercise_kc, ex_idx, resp_idx,
                                  target, mix, perm, batch, seqlen)
    predict_loss = loss2d[0, 0]
    # TODO(synk): embedd_loss.kc_exercises_embedd_loss is an external, undefined
    # module in the reference code; stubbed to 0 so the LAMDA term is a no-op.
    kc_exercises_embedd_loss = jnp.float32(0.0)
    loss = predict_loss + LAMDA * kc_exercises_embedd_loss
    mask = target >= 0.0
    return loss, probs, mask


# ------------------------------------ main ------------------------------------
if __name__ == "__main__":
    root = jax.random.PRNGKey(0)
    k_param, k_adj, k_ex, k_resp, k_t1, k_t2 = jax.random.split(root, 6)

    params = init_params(k_param)

    adj = (jax.random.uniform(k_adj, (N_EXERCISE, N_KC)) > 0.5).astype(jnp.float32)
    kc_data = jnp.zeros((BATCH, SEQLEN), jnp.int32)  # unused, kept for signature
    exercise_data = jax.random.randint(k_ex, (BATCH, SEQLEN), 1, N_EXERCISE + 1,
                                       dtype=jnp.int32)
    exercise_respond_data = jax.random.randint(k_resp, (BATCH, SEQLEN), 1,
                                               2 * N_EXERCISE + 1, dtype=jnp.int32)
    tvals = jax.random.bernoulli(k_t1, 0.5, (BATCH * (SEQLEN - 1), 1)).astype(jnp.float32)
    keep = jax.random.bernoulli(k_t2, 0.8, (BATCH * (SEQLEN - 1), 1))
    keep = keep.at[0, 0].set(True)  # ensure at least one valid target
    target = jnp.where(keep, tvals, -1.0)

    loss, probs, mask = model_forward(params, adj, kc_data, exercise_data,
                                      exercise_respond_data, target)
    jax.block_until_ready((loss, probs, mask))

    assert np.isfinite(np.asarray(loss)), "loss is not finite"
    assert np.all(np.isfinite(np.asarray(probs))), "predictions are not finite"

    # Host-side filtering only for reporting parity with the reference's
    # masked_select outputs; the loss itself is computed fully on device.
    mask_np = np.asarray(mask).reshape(-1)
    filtered_probs = np.asarray(probs).reshape(-1)[mask_np]
    filtered_target = np.asarray(target).reshape(-1)[mask_np]
    assert filtered_probs.shape == filtered_target.shape and filtered_probs.size > 0

    print("KERNEL_OK")
</pallas_src>

<mosaic_0001>
module attributes {stable_mosaic.version = 11 : i64} {
  func.func @_fused_forward_kernel(%arg0: memref<14x1xi32, #tpu.memory_space<vmem>>, %arg1: memref<16x1xi32, #tpu.memory_space<vmem>>, %arg2: memref<14x1xf32, #tpu.memory_space<vmem>>, %arg3: memref<8x16xf32, #tpu.memory_space<vmem>>, %arg4: memref<8x16xf32, #tpu.memory_space<vmem>>, %arg5: memref<8x8xf32, #tpu.memory_space<vmem>>, %arg6: memref<2x16x16xf32, #tpu.memory_space<vmem>>, %arg7: memref<2x32x1xf32, #tpu.memory_space<vmem>>, %arg8: memref<2x16x16xf32, #tpu.memory_space<vmem>>, %arg9: memref<2x16x16xf32, #tpu.memory_space<vmem>>, %arg10: memref<14x16xf32, #tpu.memory_space<vmem>>, %arg11: memref<32x128xf32, #tpu.memory_space<vmem>>, %arg12: memref<32x128xf32, #tpu.memory_space<vmem>>, %arg13: memref<1x128xf32, #tpu.memory_space<vmem>>, %arg14: memref<48x32xf32, #tpu.memory_space<vmem>>, %arg15: memref<1x32xf32, #tpu.memory_space<vmem>>, %arg16: memref<32x1xf32, #tpu.memory_space<vmem>>, %arg17: memref<1x1xf32, #tpu.memory_space<vmem>>, %arg18: memref<1x1xf32, #tpu.memory_space<vmem>>, %arg19: memref<14x1xf32, #tpu.memory_space<vmem>>) attributes {dimension_semantics = [], scalar_prefetch = 0 : i64, scratch_operands = 0 : i64, tpu.core_type = #tpu.core_type<tc>} {
    %c0 = arith.constant 0 : index
    %c0_0 = arith.constant 0 : index
    %0 = vector.load %arg3[%c0, %c0_0] : memref<8x16xf32, #tpu.memory_space<vmem>>, vector<8x16xf32>
    %c0_1 = arith.constant 0 : index
    %c0_2 = arith.constant 0 : index
    %1 = vector.load %arg4[%c0_1, %c0_2] : memref<8x16xf32, #tpu.memory_space<vmem>>, vector<8x16xf32>
    %c0_3 = arith.constant 0 : index
    %c0_4 = arith.constant 0 : index
    %2 = vector.load %arg5[%c0_3, %c0_4] : memref<8x8xf32, #tpu.memory_space<vmem>>, vector<8x8xf32>
    %cst = arith.constant 0.000000e+00 : f32
    %3 = vector.broadcast %cst : f32 to vector<8x16xf32>
    %c0_5 = arith.constant 0 : index
    %c0_6 = arith.constant 0 : index
    %c0_7 = arith.constant 0 : index
    %4 = vector.load %arg6[%c0_5, %c0_6, %c0_7] : memref<2x16x16xf32, #tpu.memory_space<vmem>>, vector<1x16x16xf32>
    %5 = vector.shape_cast %4 : vector<1x16x16xf32> to vector<16x16xf32>
    %c0_8 = arith.constant 0 : index
    %c0_9 = arith.constant 0 : index
    %c0_10 = arith.constant 0 : index
    %6 = vector.load %arg7[%c0_8, %c0_9, %c0_10] : memref<2x32x1xf32, #tpu.memory_space<vmem>>, vector<1x32x1xf32>
    %7 = vector.shape_cast %6 : vector<1x32x1xf32> to vector<32x1xf32>
    %cst_11 = arith.constant dense<0.000000e+00> : vector<8x16xf32>
    %8 = tpu.matmul %1, %5, %cst_11 {dimension_numbers = #tpu.dot_dimension_numbers<[1], [0], [0], [1], [0, 0, 1, 1], [], []>} : vector<8x16xf32>, vector<16x16xf32>, vector<8x16xf32> -> vector<8x16xf32>
    %cst_12 = arith.constant dense<0.000000e+00> : vector<8x16xf32>
    %9 = tpu.matmul %0, %5, %cst_12 {dimension_numbers = #tpu.dot_dimension_numbers<[1], [0], [0], [1], [0, 0, 1, 1], [], []>} : vector<8x16xf32>, vector<16x16xf32>, vector<8x16xf32> -> vector<8x16xf32>
    %10 = vector.extract_strided_slice %7 {offsets = [0, 0], sizes = [16, 1], strides = [1, 1]} : vector<32x1xf32> to vector<16x1xf32>
    %cst_13 = arith.constant dense<0.000000e+00> : vector<8x1xf32>
    %11 = tpu.matmul %9, %10, %cst_13 {dimension_numbers = #tpu.dot_dimension_numbers<[1], [0], [0], [1], [0, 0, 1, 1], [], []>} : vector<8x16xf32>, vector<16x1xf32>, vector<8x1xf32> -> vector<8x1xf32>
    %12 = vector.extract_strided_slice %7 {offsets = [16, 0], sizes = [16, 1], strides = [1, 1]} : vector<32x1xf32> to vector<16x1xf32>
    %cst_14 = arith.constant dense<0.000000e+00> : vector<8x1xf32>
    %13 = tpu.matmul %8, %12, %cst_14 {dimension_numbers = #tpu.dot_dimension_numbers<[1], [0], [0], [1], [0, 0, 1, 1], [], []>} : vector<8x16xf32>, vector<16x1xf32>, vector<8x1xf32> -> vector<8x1xf32>
    %14 = tpu.transpose %13, [1, 0] : vector<8x1xf32> -> vector<1x8xf32>
    %15 = vector.broadcast %11 : vector<8x1xf32> to vector<8x8xf32>
    %16 = vector.broadcast %14 : vector<1x8xf32> to vector<8x8xf32>
    %17 = arith.addf %15, %16 : vector<8x8xf32>
    %cst_15 = arith.constant 0.000000e+00 : f32
    %18 = vector.broadcast %cst_15 : f32 to vector<8x8xf32>
    %19 = arith.cmpf ogt, %17, %18 : vector<8x8xf32>
    %cst_16 = arith.constant 2.000000e-01 : f32
    %20 = vector.broadcast %cst_16 : f32 to vector<8x8xf32>
    %21 = arith.mulf %20, %17 : vector<8x8xf32>
    %22 = arith.select %19, %17, %21 : vector<8x8xi1>, vector<8x8xf32>
    %cst_17 = arith.constant 0.000000e+00 : f32
    %23 = vector.broadcast %cst_17 : f32 to vector<8x8xf32>
    %24 = arith.cmpf ogt, %2, %23 : vector<8x8xf32>
    %cst_18 = arith.constant -9.000000e+15 : f32
    %25 = vector.broadcast %cst_18 : f32 to vector<8x8xf32>
    %26 = arith.select %24, %22, %25 : vector<8x8xi1>, vector<8x8xf32>
    %cst_19 = arith.constant dense<0xFF800000> : vector<8xf32>
    %27 = vector.multi_reduction <maximumf>, %26, %cst_19 [1] : vector<8x8xf32> to vector<8xf32>
    %28 = vector.shape_cast %27 : vector<8xf32> to vector<8x1xf32>
    %29 = vector.broadcast %28 : vector<8x1xf32> to vector<8x8xf32>
    %30 = arith.subf %26, %29 : vector<8x8xf32>
    %31 = math.exp %30 : vector<8x8xf32>
    %cst_20 = arith.constant dense<0.000000e+00> : vector<8xf32>
    %32 = vector.multi_reduction <add>, %31, %cst_20 [1] : vector<8x8xf32> to vector<8xf32>
    %33 = vector.shape_cast %32 : vector<8xf32> to vector<8x1xf32>
    %34 = tpu.reciprocal %33 {approx = true} : vector<8x1xf32> -> vector<8x1xf32>
    %35 = vector.broadcast %34 : vector<8x1xf32> to vector<8x8xf32>
    %36 = arith.mulf %31, %35 : vector<8x8xf32>
    %cst_21 = arith.constant dense<0.000000e+00> : vector<8x16xf32>
    %37 = tpu.matmul %36, %8, %cst_21 {dimension_numbers = #tpu.dot_dimension_numbers<[1], [0], [0], [1], [0, 0, 1, 1], [], []>} : vector<8x8xf32>, vector<8x16xf32>, vector<8x16xf32> -> vector<8x16xf32>
    %c0_22 = arith.constant 0 : index
    %c0_23 = arith.constant 0 : index
    %c0_24 = arith.constant 0 : index
    %38 = vector.load %arg8[%c0_22, %c0_23, %c0_24] : memref<2x16x16xf32, #tpu.memory_space<vmem>>, vector<1x16x16xf32>
    %39 = vector.shape_cast %38 : vector<1x16x16xf32> to vector<16x16xf32>
    %cst_25 = arith.constant dense<0.000000e+00> : vector<8x16xf32>
    %40 = tpu.matmul %0, %39, %cst_25 {dimension_numbers = #tpu.dot_dimension_numbers<[1], [0], [0], [1], [0, 0, 1, 1], [], []>} : vector<8x16xf32>, vector<16x16xf32>, vector<8x16xf32> -> vector<8x16xf32>
    %41 = arith.mulf %37, %40 : vector<8x16xf32>
    %cst_26 = arith.constant 0.000000e+00 : f32
    %42 = vector.broadcast %cst_26 : f32 to vector<8x16xf32>
    %43 = arith.cmpf ogt, %41, %42 : vector<8x16xf32>
    %cst_27 = arith.constant 0.000000e+00 : f32
    %44 = vector.broadcast %cst_27 : f32 to vector<8x16xf32>
    %45 = arith.minimumf %41, %44 : vector<8x16xf32>
    %46 = math.exp %45 : vector<8x16xf32>
    %cst_28 = arith.constant 1.000000e+00 : f32
    %47 = vector.broadcast %cst_28 : f32 to vector<8x16xf32>
    %48 = arith.subf %46, %47 : vector<8x16xf32>
    %49 = arith.select %43, %41, %48 : vector<8x16xi1>, vector<8x16xf32>
    %c0_29 = arith.constant 0 : index
    %c0_30 = arith.constant 0 : index
    %c0_31 = arith.constant 0 : index
    %50 = vector.load %arg9[%c0_29, %c0_30, %c0_31] : memref<2x16x16xf32, #tpu.memory_space<vmem>>, vector<1x16x16xf32>
    %51 = vector.shape_cast %50 : vector<1x16x16xf32> to vector<16x16xf32>
    %cst_32 = arith.constant dense<0.000000e+00> : vector<8x16xf32>
    %52 = tpu.matmul %49, %51, %cst_32 {dimension_numbers = #tpu.dot_dimension_numbers<[1], [0], [0], [1], [0, 0, 1, 1], [], []>} : vector<8x16xf32>, vector<16x16xf32>, vector<8x16xf32> -> vector<8x16xf32>
    %53 = arith.addf %3, %52 : vector<8x16xf32>
    %c1 = arith.constant 1 : index
    %c0_33 = arith.constant 0 : index
    %c0_34 = arith.constant 0 : index
    %54 = vector.load %arg6[%c1, %c0_33, %c0_34] : memref<2x16x16xf32, #tpu.memory_space<vmem>>, vector<1x16x16xf32>
    %55 = vector.shape_cast %54 : vector<1x16x16xf32> to vector<16x16xf32>
    %c1_35 = arith.constant 1 : index
    %c0_36 = arith.constant 0 : index
    %c0_37 = arith.constant 0 : index
    %56 = vector.load %arg7[%c1_35, %c0_36, %c0_37] : memref<2x32x1xf32, #tpu.memory_space<vmem>>, vector<1x32x1xf32>
    %57 = vector.shape_cast %56 : vector<1x32x1xf32> to vector<32x1xf32>
    %cst_38 = arith.constant dense<0.000000e+00> : vector<8x16xf32>
    %58 = tpu.matmul %1, %55, %cst_38 {dimension_numbers = #tpu.dot_dimension_numbers<[1], [0], [0], [1], [0, 0, 1, 1], [], []>} : vector<8x16xf32>, vector<16x16xf32>, vector<8x16xf32> -> vector<8x16xf32>
    %cst_39 = arith.constant dense<0.000000e+00> : vector<8x16xf32>
    %59 = tpu.matmul %0, %55, %cst_39 {dimension_numbers = #tpu.dot_dimension_numbers<[1], [0], [0], [1], [0, 0, 1, 1], [], []>} : vector<8x16xf32>, vector<16x16xf32>, vector<8x16xf32> -> vector<8x16xf32>
    %60 = vector.extract_strided_slice %57 {offsets = [0, 0], sizes = [16, 1], strides = [1, 1]} : vector<32x1xf32> to vector<16x1xf32>
    %cst_40 = arith.constant dense<0.000000e+00> : vector<8x1xf32>
    %61 = tpu.matmul %59, %60, %cst_40 {dimension_numbers = #tpu.dot_dimension_numbers<[1], [0], [0], [1], [0, 0, 1, 1], [], []>} : vector<8x16xf32>, vector<16x1xf32>, vector<8x1xf32> -> vector<8x1xf32>
    %62 = vector.extract_strided_slice %57 {offsets = [16, 0], sizes = [16, 1], strides = [1, 1]} : vector<32x1xf32> to vector<16x1xf32>
    %cst_41 = arith.constant dense<0.000000e+00> : vector<8x1xf32>
    %63 = tpu.matmul %58, %62, %cst_41 {dimension_numbers = #tpu.dot_dimension_numbers<[1], [0], [0], [1], [0, 0, 1, 1], [], []>} : vector<8x16xf32>, vector<16x1xf32>, vector<8x1xf32> -> vector<8x1xf32>
    %64 = tpu.transpose %63, [1, 0] : vector<8x1xf32> -> vector<1x8xf32>
    %65 = vector.broadcast %61 : vector<8x1xf32> to vector<8x8xf32>
    %66 = vector.broadcast %64 : vector<1x8xf32> to vector<8x8xf32>
    %67 = arith.addf %65, %66 : vector<8x8xf32>
    %cst_42 = arith.constant 0.000000e+00 : f32
    %68 = vector.broadcast %cst_42 : f32 to vector<8x8xf32>
    %69 = arith.cmpf ogt, %67, %68 : vector<8x8xf32>
    %cst_43 = arith.constant 2.000000e-01 : f32
    %70 = vector.broadcast %cst_43 : f32 to vector<8x8xf32>
    %71 = arith.mulf %70, %67 : vector<8x8xf32>
    %72 = arith.select %69, %67, %71 : vector<8x8xi1>, vector<8x8xf32>
    %cst_44 = arith.constant 0.000000e+00 : f32
    %73 = vector.broadcast %cst_44 : f32 to vector<8x8xf32>
    %74 = arith.cmpf ogt, %2, %73 : vector<8x8xf32>
    %cst_45 = arith.constant -9.000000e+15 : f32
    %75 = vector.broadcast %cst_45 : f32 to vector<8x8xf32>
    %76 = arith.select %74, %72, %75 : vector<8x8xi1>, vector<8x8xf32>
    %cst_46 = arith.constant dense<0xFF800000> : vector<8xf32>
    %77 = vector.multi_reduction <maximumf>, %76, %cst_46 [1] : vector<8x8xf32> to vector<8xf32>
    %78 = vector.shape_cast %77 : vector<8xf32> to vector<8x1xf32>
    %79 = vector.broadcast %78 : vector<8x1xf32> to vector<8x8xf32>
    %80 = arith.subf %76, %79 : vector<8x8xf32>
    %81 = math.exp %80 : vector<8x8xf32>
    %cst_47 = arith.constant dense<0.000000e+00> : vector<8xf32>
    %82 = vector.multi_reduction <add>, %81, %cst_47 [1] : vector<8x8xf32> to vector<8xf32>
    %83 = vector.shape_cast %82 : vector<8xf32> to vector<8x1xf32>
    %84 = tpu.reciprocal %83 {approx = true} : vector<8x1xf32> -> vector<8x1xf32>
    %85 = vector.broadcast %84 : vector<8x1xf32> to vector<8x8xf32>
    %86 = arith.mulf %81, %85 : vector<8x8xf32>
    %cst_48 = arith.constant dense<0.000000e+00> : vector<8x16xf32>
    %87 = tpu.matmul %86, %58, %cst_48 {dimension_numbers = #tpu.dot_dimension_numbers<[1], [0], [0], [1], [0, 0, 1, 1], [], []>} : vector<8x8xf32>, vector<8x16xf32>, vector<8x16xf32> -> vector<8x16xf32>
    %c1_49 = arith.constant 1 : index
    %c0_50 = arith.constant 0 : index
    %c0_51 = arith.constant 0 : index
    %88 = vector.load %arg8[%c1_49, %c0_50, %c0_51] : memref<2x16x16xf32, #tpu.memory_space<vmem>>, vector<1x16x16xf32>
    %89 = vector.shape_cast %88 : vector<1x16x16xf32> to vector<16x16xf32>
    %cst_52 = arith.constant dense<0.000000e+00> : vector<8x16xf32>
    %90 = tpu.matmul %0, %89, %cst_52 {dimension_numbers = #tpu.dot_dimension_numbers<[1], [0], [0], [1], [0, 0, 1, 1], [], []>} : vector<8x16xf32>, vector<16x16xf32>, vector<8x16xf32> -> vector<8x16xf32>
    %91 = arith.mulf %87, %90 : vector<8x16xf32>
    %cst_53 = arith.constant 0.000000e+00 : f32
    %92 = vector.broadcast %cst_53 : f32 to vector<8x16xf32>
    %93 = arith.cmpf ogt, %91, %92 : vector<8x16xf32>
    %cst_54 = arith.constant 0.000000e+00 : f32
    %94 = vector.broadcast %cst_54 : f32 to vector<8x16xf32>
    %95 = arith.minimumf %91, %94 : vector<8x16xf32>
    %96 = math.exp %95 : vector<8x16xf32>
    %cst_55 = arith.constant 1.000000e+00 : f32
    %97 = vector.broadcast %cst_55 : f32 to vector<8x16xf32>
    %98 = arith.subf %96, %97 : vector<8x16xf32>
    %99 = arith.select %93, %91, %98 : vector<8x16xi1>, vector<8x16xf32>
    %c1_56 = arith.constant 1 : index
    %c0_57 = arith.constant 0 : index
    %c0_58 = arith.constant 0 : index
    %100 = vector.load %arg9[%c1_56, %c0_57, %c0_58] : memref<2x16x16xf32, #tpu.memory_space<vmem>>, vector<1x16x16xf32>
    %101 = vector.shape_cast %100 : vector<1x16x16xf32> to vector<16x16xf32>
    %cst_59 = arith.constant dense<0.000000e+00> : vector<8x16xf32>
    %102 = tpu.matmul %99, %101, %cst_59 {dimension_numbers = #tpu.dot_dimension_numbers<[1], [0], [0], [1], [0, 0, 1, 1], [], []>} : vector<8x16xf32>, vector<16x16xf32>, vector<8x16xf32> -> vector<8x16xf32>
    %103 = arith.addf %53, %102 : vector<8x16xf32>
    %c0_60 = arith.constant 0 : index
    %c0_61 = arith.constant 0 : index
    %104 = vector.load %arg1[%c0_60, %c0_61] : memref<16x1xi32, #tpu.memory_space<vmem>>, vector<16x1xi32>
    %105 = tpu.iota {dimensions = array<i32: 1>} : vector<16x8xi32>
    %c9_i32 = arith.constant 9 : i32
    %106 = vector.broadcast %c9_i32 : i32 to vector<16x1xi32>
    %107 = arith.subi %104, %106 : vector<16x1xi32>
    %108 = vector.broadcast %107 : vector<16x1xi32> to vector<16x8xi32>
    %109 = arith.cmpi eq, %105, %108 : vector<16x8xi32>
    %110 = arith.extui %109 : vector<16x8xi1> to vector<16x8xi32>
    %111 = arith.sitofp %110 : vector<16x8xi32> to vector<16x8xf32>
    %c1_i32 = arith.constant 1 : i32
    %112 = vector.broadcast %c1_i32 : i32 to vector<16x1xi32>
    %113 = arith.subi %104, %112 : vector<16x1xi32>
    %114 = vector.broadcast %113 : vector<16x1xi32> to vector<16x8xi32>
    %115 = arith.cmpi eq, %105, %114 : vector<16x8xi32>
    %116 = arith.extui %115 : vector<16x8xi1> to vector<16x8xi32>
    %117 = arith.sitofp %116 : vector<16x8xi32> to vector<16x8xf32>
    %cst_62 = arith.constant dense<0.000000e+00> : vector<16x16xf32>
    %118 = tpu.matmul %111, %103, %cst_62 {dimension_numbers = #tpu.dot_dimension_numbers<[1], [0], [0], [1], [0, 0, 1, 1], [], []>} : vector<16x8xf32>, vector<8x16xf32>, vector<16x16xf32> -> vector<16x16xf32>
    %cst_63 = arith.constant dense<0.000000e+00> : vector<16x16xf32>
    %119 = tpu.matmul %117, %103, %cst_63 {dimension_numbers = #tpu.dot_dimension_numbers<[1], [0], [0], [1], [0, 0, 1, 1], [], []>} : vector<16x8xf32>, vector<8x16xf32>, vector<16x16xf32> -> vector<16x16xf32>
    %c0_64 = arith.constant 0 : index
    %c0_65 = arith.constant 0 : index
    %120 = vector.load %arg11[%c0_64, %c0_65] : memref<32x128xf32, #tpu.memory_space<vmem>>, vector<32x128xf32>
    %121 = vector.extract_strided_slice %120 {offsets = [0, 0], sizes = [16, 128], strides = [1, 1]} : vector<32x128xf32> to vector<16x128xf32>
    %cst_66 = arith.constant dense<0.000000e+00> : vector<16x128xf32>
    %122 = tpu.matmul %118, %121, %cst_66 {dimension_numbers = #tpu.dot_dimension_numbers<[1], [0], [0], [1], [0, 0, 1, 1], [], []>} : vector<16x16xf32>, vector<16x128xf32>, vector<16x128xf32> -> vector<16x128xf32>
    %123 = vector.extract_strided_slice %120 {offsets = [16, 0], sizes = [16, 128], strides = [1, 1]} : vector<32x128xf32> to vector<16x128xf32>
    %cst_67 = arith.constant dense<0.000000e+00> : vector<16x128xf32>
    %124 = tpu.matmul %119, %123, %cst_67 {dimension_numbers = #tpu.dot_dimension_numbers<[1], [0], [0], [1], [0, 0, 1, 1], [], []>} : vector<16x16xf32>, vector<16x128xf32>, vector<16x128xf32> -> vector<16x128xf32>
    %125 = arith.addf %122, %124 : vector<16x128xf32>
    %c0_68 = arith.constant 0 : index
    %c0_69 = arith.constant 0 : index
    %126 = vector.load %arg13[%c0_68, %c0_69] : memref<1x128xf32, #tpu.memory_space<vmem>>, vector<1x128xf32>
    %127 = vector.broadcast %126 : vector<1x128xf32> to vector<16x128xf32>
    %128 = arith.addf %125, %127 : vector<16x128xf32>
    %c0_70 = arith.constant 0 : index
    %c0_71 = arith.constant 0 : index
    %129 = vector.load %arg12[%c0_70, %c0_71] : memref<32x128xf32, #tpu.memory_space<vmem>>, vector<32x128xf32>
    %c0_72 = arith.constant 0 : index
    %c0_73 = arith.constant 0 : index
    %130 = vector.load %arg10[%c0_72, %c0_73] : memref<14x16xf32, #tpu.memory_space<vmem>>, vector<14x16xf32>
    %cst_74 = arith.constant 0.000000e+00 : f32
    %131 = vector.broadcast %cst_74 : f32 to vector<2x32xf32>
    %cst_75 = arith.constant 0.000000e+00 : f32
    %132 = vector.broadcast %cst_75 : f32 to vector<2x32xf32>
    %cst_76 = arith.constant 0.000000e+00 : f32
    %133 = vector.broadcast %cst_76 : f32 to vector<14x32xf32>
    %134 = vector.extract_strided_slice %128 {offsets = [0, 0], sizes = [2, 128], strides = [1, 1]} : vector<16x128xf32> to vector<2x128xf32>
    %cst_77 = arith.constant dense<0.000000e+00> : vector<2x128xf32>
    %135 = tpu.matmul %131, %129, %cst_77 {dimension_numbers = #tpu.dot_dimension_numbers<[1], [0], [0], [1], [0, 0, 1, 1], [], []>} : vector<2x32xf32>, vector<32x128xf32>, vector<2x128xf32> -> vector<2x128xf32>
    %136 = arith.addf %134, %135 : vector<2x128xf32>
    %137 = arith.negf %136 : vector<2x128xf32>
    %138 = math.exp %137 : vector<2x128xf32>
    %cst_78 = arith.constant 1.000000e+00 : f32
    %139 = vector.broadcast %cst_78 : f32 to vector<2x128xf32>
    %140 = arith.addf %139, %138 : vector<2x128xf32>
    %141 = arith.divf %139, %140 : vector<2x128xf32>
    %142 = math.tanh %136 : vector<2x128xf32>
    %143 = vector.extract_strided_slice %141 {offsets = [0, 0], sizes = [2, 32], strides = [1, 1]} : vector<2x128xf32> to vector<2x32xf32>
    %144 = vector.extract_strided_slice %141 {offsets = [0, 32], sizes = [2, 32], strides = [1, 1]} : vector<2x128xf32> to vector<2x32xf32>
    %145 = vector.extract_strided_slice %142 {offsets = [0, 64], sizes = [2, 32], strides = [1, 1]} : vector<2x128xf32> to vector<2x32xf32>
    %146 = vector.extract_strided_slice %141 {offsets = [0, 96], sizes = [2, 32], strides = [1, 1]} : vector<2x128xf32> to vector<2x32xf32>
    %147 = arith.mulf %144, %132 : vector<2x32xf32>
    %148 = arith.mulf %143, %145 : vector<2x32xf32>
    %149 = arith.addf %147, %148 : vector<2x32xf32>
    %150 = math.tanh %149 : vector<2x32xf32>
    %151 = arith.mulf %146, %150 : vector<2x32xf32>
    %152 = vector.extract_strided_slice %130 {offsets = [0, 0], sizes = [14, 2], strides = [1, 1]} : vector<14x16xf32> to vector<14x2xf32>
    %cst_79 = arith.constant dense<0.000000e+00> : vector<14x32xf32>
    %153 = tpu.matmul %152, %151, %cst_79 {dimension_numbers = #tpu.dot_dimension_numbers<[1], [0], [0], [1], [0, 0, 1, 1], [], []>} : vector<14x2xf32>, vector<2x32xf32>, vector<14x32xf32> -> vector<14x32xf32>
    %154 = arith.addf %133, %153 : vector<14x32xf32>
    %155 = vector.extract_strided_slice %128 {offsets = [2, 0], sizes = [2, 128], strides = [1, 1]} : vector<16x128xf32> to vector<2x128xf32>
    %cst_80 = arith.constant dense<0.000000e+00> : vector<2x128xf32>
    %156 = tpu.matmul %151, %129, %cst_80 {dimension_numbers = #tpu.dot_dimension_numbers<[1], [0], [0], [1], [0, 0, 1, 1], [], []>} : vector<2x32xf32>, vector<32x128xf32>, vector<2x128xf32> -> vector<2x128xf32>
    %157 = arith.addf %155, %156 : vector<2x128xf32>
    %158 = arith.negf %157 : vector<2x128xf32>
    %159 = math.exp %158 : vector<2x128xf32>
    %cst_81 = arith.constant 1.000000e+00 : f32
    %160 = vector.broadcast %cst_81 : f32 to vector<2x128xf32>
    %161 = arith.addf %160, %159 : vector<2x128xf32>
    %162 = arith.divf %160, %161 : vector<2x128xf32>
    %163 = math.tanh %157 : vector<2x128xf32>
    %164 = vector.extract_strided_slice %162 {offsets = [0, 0], sizes = [2, 32], strides = [1, 1]} : vector<2x128xf32> to vector<2x32xf32>
    %165 = vector.extract_strided_slice %162 {offsets = [0, 32], sizes = [2, 32], strides = [1, 1]} : vector<2x128xf32> to vector<2x32xf32>
    %166 = vector.extract_strided_slice %163 {offsets = [0, 64], sizes = [2, 32], strides = [1, 1]} : vector<2x128xf32> to vector<2x32xf32>
    %167 = vector.extract_strided_slice %162 {offsets = [0, 96], sizes = [2, 32], strides = [1, 1]} : vector<2x128xf32> to vector<2x32xf32>
    %168 = arith.mulf %165, %149 : vector<2x32xf32>
    %169 = arith.mulf %164, %166 : vector<2x32xf32>
    %170 = arith.addf %168, %169 : vector<2x32xf32>
    %171 = math.tanh %170 : vector<2x32xf32>
    %172 = arith.mulf %167, %171 : vector<2x32xf32>
    %173 = vector.extract_strided_slice %130 {offsets = [0, 2], sizes = [14, 2], strides = [1, 1]} : vector<14x16xf32> to vector<14x2xf32>
    %cst_82 = arith.constant dense<0.000000e+00> : vector<14x32xf32>
    %174 = tpu.matmul %173, %172, %cst_82 {dimension_numbers = #tpu.dot_dimension_numbers<[1], [0], [0], [1], [0, 0, 1, 1], [], []>} : vector<14x2xf32>, vector<2x32xf32>, vector<14x32xf32> -> vector<14x32xf32>
    %175 = arith.addf %154, %174 : vector<14x32xf32>
    %176 = vector.extract_strided_slice %128 {offsets = [4, 0], sizes = [2, 128], strides = [1, 1]} : vector<16x128xf32> to vector<2x128xf32>
    %cst_83 = arith.constant dense<0.000000e+00> : vector<2x128xf32>
    %177 = tpu.matmul %172, %129, %cst_83 {dimension_numbers = #tpu.dot_dimension_numbers<[1], [0], [0], [1], [0, 0, 1, 1], [], []>} : vector<2x32xf32>, vector<32x128xf32>, vector<2x128xf32> -> vector<2x128xf32>
    %178 = arith.addf %176, %177 : vector<2x128xf32>
    %179 = arith.negf %178 : vector<2x128xf32>
    %180 = math.exp %179 : vector<2x128xf32>
    %cst_84 = arith.constant 1.000000e+00 : f32
    %181 = vector.broadcast %cst_84 : f32 to vector<2x128xf32>
    %182 = arith.addf %181, %180 : vector<2x128xf32>
    %183 = arith.divf %181, %182 : vector<2x128xf32>
    %184 = math.tanh %178 : vector<2x128xf32>
    %185 = vector.extract_strided_slice %183 {offsets = [0, 0], sizes = [2, 32], strides = [1, 1]} : vector<2x128xf32> to vector<2x32xf32>
    %186 = vector.extract_strided_slice %183 {offsets = [0, 32], sizes = [2, 32], strides = [1, 1]} : vector<2x128xf32> to vector<2x32xf32>
    %187 = vector.extract_strided_slice %184 {offsets = [0, 64], sizes = [2, 32], strides = [1, 1]} : vector<2x128xf32> to vector<2x32xf32>
    %188 = vector.extract_strided_slice %183 {offsets = [0, 96], sizes = [2, 32], strides = [1, 1]} : vector<2x128xf32> to vector<2x32xf32>
    %189 = arith.mulf %186, %170 : vector<2x32xf32>
    %190 = arith.mulf %185, %187 : vector<2x32xf32>
    %191 = arith.addf %189, %190 : vector<2x32xf32>
    %192 = math.tanh %191 : vector<2x32xf32>
    %193 = arith.mulf %188, %192 : vector<2x32xf32>
    %194 = vector.extract_strided_slice %130 {offsets = [0, 4], sizes = [14, 2], strides = [1, 1]} : vector<14x16xf32> to vector<14x2xf32>
    %cst_85 = arith.constant dense<0.000000e+00> : vector<14x32xf32>
    %195 = tpu.matmul %194, %193, %cst_85 {dimension_numbers = #tpu.dot_dimension_numbers<[1], [0], [0], [1], [0, 0, 1, 1], [], []>} : vector<14x2xf32>, vector<2x32xf32>, vector<14x32xf32> -> vector<14x32xf32>
    %196 = arith.addf %175, %195 : vector<14x32xf32>
    %197 = vector.extract_strided_slice %128 {offsets = [6, 0], sizes = [2, 128], strides = [1, 1]} : vector<16x128xf32> to vector<2x128xf32>
    %cst_86 = arith.constant dense<0.000000e+00> : vector<2x128xf32>
    %198 = tpu.matmul %193, %129, %cst_86 {dimension_numbers = #tpu.dot_dimension_numbers<[1], [0], [0], [1], [0, 0, 1, 1], [], []>} : vector<2x32xf32>, vector<32x128xf32>, vector<2x128xf32> -> vector<2x128xf32>
    %199 = arith.addf %197, %198 : vector<2x128xf32>
    %200 = arith.negf %199 : vector<2x128xf32>
    %201 = math.exp %200 : vector<2x128xf32>
    %cst_87 = arith.constant 1.000000e+00 : f32
    %202 = vector.broadcast %cst_87 : f32 to vector<2x128xf32>
    %203 = arith.addf %202, %201 : vector<2x128xf32>
    %204 = arith.divf %202, %203 : vector<2x128xf32>
    %205 = math.tanh %199 : vector<2x128xf32>
    %206 = vector.extract_strided_slice %204 {offsets = [0, 0], sizes = [2, 32], strides = [1, 1]} : vector<2x128xf32> to vector<2x32xf32>
    %207 = vector.extract_strided_slice %204 {offsets = [0, 32], sizes = [2, 32], strides = [1, 1]} : vector<2x128xf32> to vector<2x32xf32>
    %208 = vector.extract_strided_slice %205 {offsets = [0, 64], sizes = [2, 32], strides = [1, 1]} : vector<2x128xf32> to vector<2x32xf32>
    %209 = vector.extract_strided_slice %204 {offsets = [0, 96], sizes = [2, 32], strides = [1, 1]} : vector<2x128xf32> to vector<2x32xf32>
    %210 = arith.mulf %207, %191 : vector<2x32xf32>
    %211 = arith.mulf %206, %208 : vector<2x32xf32>
    %212 = arith.addf %210, %211 : vector<2x32xf32>
    %213 = math.tanh %212 : vector<2x32xf32>
    %214 = arith.mulf %209, %213 : vector<2x32xf32>
    %215 = vector.extract_strided_slice %130 {offsets = [0, 6], sizes = [14, 2], strides = [1, 1]} : vector<14x16xf32> to vector<14x2xf32>
    %cst_88 = arith.constant dense<0.000000e+00> : vector<14x32xf32>
    %216 = tpu.matmul %215, %214, %cst_88 {dimension_numbers = #tpu.dot_dimension_numbers<[1], [0], [0], [1], [0, 0, 1, 1], [], []>} : vector<14x2xf32>, vector<2x32xf32>, vector<14x32xf32> -> vector<14x32xf32>
    %217 = arith.addf %196, %216 : vector<14x32xf32>
    %218 = vector.extract_strided_slice %128 {offsets = [8, 0], sizes = [2, 128], strides = [1, 1]} : vector<16x128xf32> to vector<2x128xf32>
    %cst_89 = arith.constant dense<0.000000e+00> : vector<2x128xf32>
    %219 = tpu.matmul %214, %129, %cst_89 {dimension_numbers = #tpu.dot_dimension_numbers<[1], [0], [0], [1], [0, 0, 1, 1], [], []>} : vector<2x32xf32>, vector<32x128xf32>, vector<2x128xf32> -> vector<2x128xf32>
    %220 = arith.addf %218, %219 : vector<2x128xf32>
    %221 = arith.negf %220 : vector<2x128xf32>
    %222 = math.exp %221 : vector<2x128xf32>
    %cst_90 = arith.constant 1.000000e+00 : f32
    %223 = vector.broadcast %cst_90 : f32 to vector<2x128xf32>
    %224 = arith.addf %223, %222 : vector<2x128xf32>
    %225 = arith.divf %223, %224 : vector<2x128xf32>
    %226 = math.tanh %220 : vector<2x128xf32>
    %227 = vector.extract_strided_slice %225 {offsets = [0, 0], sizes = [2, 32], strides = [1, 1]} : vector<2x128xf32> to vector<2x32xf32>
    %228 = vector.extract_strided_slice %225 {offsets = [0, 32], sizes = [2, 32], strides = [1, 1]} : vector<2x128xf32> to vector<2x32xf32>
    %229 = vector.extract_strided_slice %226 {offsets = [0, 64], sizes = [2, 32], strides = [1, 1]} : vector<2x128xf32> to vector<2x32xf32>
    %230 = vector.extract_strided_slice %225 {offsets = [0, 96], sizes = [2, 32], strides = [1, 1]} : vector<2x128xf32> to vector<2x32xf32>
    %231 = arith.mulf %228, %212 : vector<2x32xf32>
    %232 = arith.mulf %227, %229 : vector<2x32xf32>
    %233 = arith.addf %231, %232 : vector<2x32xf32>
    %234 = math.tanh %233 : vector<2x32xf32>
    %235 = arith.mulf %230, %234 : vector<2x32xf32>
    %236 = vector.extract_strided_slice %130 {offsets = [0, 8], sizes = [14, 2], strides = [1, 1]} : vector<14x16xf32> to vector<14x2xf32>
    %cst_91 = arith.constant dense<0.000000e+00> : vector<14x32xf32>
    %237 = tpu.matmul %236, %235, %cst_91 {dimension_numbers = #tpu.dot_dimension_numbers<[1], [0], [0], [1], [0, 0, 1, 1], [], []>} : vector<14x2xf32>, vector<2x32xf32>, vector<14x32xf32> -> vector<14x32xf32>
    %238 = arith.addf %217, %237 : vector<14x32xf32>
    %239 = vector.extract_strided_slice %128 {offsets = [10, 0], sizes = [2, 128], strides = [1, 1]} : vector<16x128xf32> to vector<2x128xf32>
    %cst_92 = arith.constant dense<0.000000e+00> : vector<2x128xf32>
    %240 = tpu.matmul %235, %129, %cst_92 {dimension_numbers = #tpu.dot_dimension_numbers<[1], [0], [0], [1], [0, 0, 1, 1], [], []>} : vector<2x32xf32>, vector<32x128xf32>, vector<2x128xf32> -> vector<2x128xf32>
    %241 = arith.addf %239, %240 : vector<2x128xf32>
    %242 = arith.negf %241 : vector<2x128xf32>
    %243 = math.exp %242 : vector<2x128xf32>
    %cst_93 = arith.constant 1.000000e+00 : f32
    %244 = vector.broadcast %cst_93 : f32 to vector<2x128xf32>
    %245 = arith.addf %244, %243 : vector<2x128xf32>
    %246 = arith.divf %244, %245 : vector<2x128xf32>
    %247 = math.tanh %241 : vector<2x128xf32>
    %248 = vector.extract_strided_slice %246 {offsets = [0, 0], sizes = [2, 32], strides = [1, 1]} : vector<2x128xf32> to vector<2x32xf32>
    %249 = vector.extract_strided_slice %246 {offsets = [0, 32], sizes = [2, 32], strides = [1, 1]} : vector<2x128xf32> to vector<2x32xf32>
    %250 = vector.extract_strided_slice %247 {offsets = [0, 64], sizes = [2, 32], strides = [1, 1]} : vector<2x128xf32> to vector<2x32xf32>
    %251 = vector.extract_strided_slice %246 {offsets = [0, 96], sizes = [2, 32], strides = [1, 1]} : vector<2x128xf32> to vector<2x32xf32>
    %252 = arith.mulf %249, %233 : vector<2x32xf32>
    %253 = arith.mulf %248, %250 : vector<2x32xf32>
    %254 = arith.addf %252, %253 : vector<2x32xf32>
    %255 = math.tanh %254 : vector<2x32xf32>
    %256 = arith.mulf %251, %255 : vector<2x32xf32>
    %257 = vector.extract_strided_slice %130 {offsets = [0, 10], sizes = [14, 2], strides = [1, 1]} : vector<14x16xf32> to vector<14x2xf32>
    %cst_94 = arith.constant dense<0.000000e+00> : vector<14x32xf32>
    %258 = tpu.matmul %257, %256, %cst_94 {dimension_numbers = #tpu.dot_dimension_numbers<[1], [0], [0], [1], [0, 0, 1, 1], [], []>} : vector<14x2xf32>, vector<2x32xf32>, vector<14x32xf32> -> vector<14x32xf32>
    %259 = arith.addf %238, %258 : vector<14x32xf32>
    %260 = vector.extract_strided_slice %128 {offsets = [12, 0], sizes = [2, 128], strides = [1, 1]} : vector<16x128xf32> to vector<2x128xf32>
    %cst_95 = arith.constant dense<0.000000e+00> : vector<2x128xf32>
    %261 = tpu.matmul %256, %129, %cst_95 {dimension_numbers = #tpu.dot_dimension_numbers<[1], [0], [0], [1], [0, 0, 1, 1], [], []>} : vector<2x32xf32>, vector<32x128xf32>, vector<2x128xf32> -> vector<2x128xf32>
    %262 = arith.addf %260, %261 : vector<2x128xf32>
    %263 = arith.negf %262 : vector<2x128xf32>
    %264 = math.exp %263 : vector<2x128xf32>
    %cst_96 = arith.constant 1.000000e+00 : f32
    %265 = vector.broadcast %cst_96 : f32 to vector<2x128xf32>
    %266 = arith.addf %265, %264 : vector<2x128xf32>
    %267 = arith.divf %265, %266 : vector<2x128xf32>
    %268 = math.tanh %262 : vector<2x128xf32>
    %269 = vector.extract_strided_slice %267 {offsets = [0, 0], sizes = [2, 32], strides = [1, 1]} : vector<2x128xf32> to vector<2x32xf32>
    %270 = vector.extract_strided_slice %267 {offsets = [0, 32], sizes = [2, 32], strides = [1, 1]} : vector<2x128xf32> to vector<2x32xf32>
    %271 = vector.extract_strided_slice %268 {offsets = [0, 64], sizes = [2, 32], strides = [1, 1]} : vector<2x128xf32> to vector<2x32xf32>
    %272 = vector.extract_strided_slice %267 {offsets = [0, 96], sizes = [2, 32], strides = [1, 1]} : vector<2x128xf32> to vector<2x32xf32>
    %273 = arith.mulf %270, %254 : vector<2x32xf32>
    %274 = arith.mulf %269, %271 : vector<2x32xf32>
    %275 = arith.addf %273, %274 : vector<2x32xf32>
    %276 = math.tanh %275 : vector<2x32xf32>
    %277 = arith.mulf %272, %276 : vector<2x32xf32>
    %278 = vector.extract_strided_slice %130 {offsets = [0, 12], sizes = [14, 2], strides = [1, 1]} : vector<14x16xf32> to vector<14x2xf32>
    %cst_97 = arith.constant dense<0.000000e+00> : vector<14x32xf32>
    %279 = tpu.matmul %278, %277, %cst_97 {dimension_numbers = #tpu.dot_dimension_numbers<[1], [0], [0], [1], [0, 0, 1, 1], [], []>} : vector<14x2xf32>, vector<2x32xf32>, vector<14x32xf32> -> vector<14x32xf32>
    %280 = arith.addf %259, %279 : vector<14x32xf32>
    %c0_98 = arith.constant 0 : index
    %c0_99 = arith.constant 0 : index
    %281 = vector.load %arg0[%c0_98, %c0_99] : memref<14x1xi32, #tpu.memory_space<vmem>>, vector<14x1xi32>
    %282 = tpu.iota {dimensions = array<i32: 1>} : vector<14x8xi32>
    %c1_i32_100 = arith.constant 1 : i32
    %283 = vector.broadcast %c1_i32_100 : i32 to vector<14x1xi32>
    %284 = arith.subi %281, %283 : vector<14x1xi32>
    %285 = vector.broadcast %284 : vector<14x1xi32> to vector<14x8xi32>
    %286 = arith.cmpi eq, %282, %285 : vector<14x8xi32>
    %287 = arith.extui %286 : vector<14x8xi1> to vector<14x8xi32>
    %288 = arith.sitofp %287 : vector<14x8xi32> to vector<14x8xf32>
    %cst_101 = arith.constant dense<0.000000e+00> : vector<14x16xf32>
    %289 = tpu.matmul %288, %103, %cst_101 {dimension_numbers = #tpu.dot_dimension_numbers<[1], [0], [0], [1], [0, 0, 1, 1], [], []>} : vector<14x8xf32>, vector<8x16xf32>, vector<14x16xf32> -> vector<14x16xf32>
    %c0_102 = arith.constant 0 : index
    %c0_103 = arith.constant 0 : index
    %290 = vector.load %arg14[%c0_102, %c0_103] : memref<48x32xf32, #tpu.memory_space<vmem>>, vector<48x32xf32>
    %291 = vector.extract_strided_slice %290 {offsets = [0, 0], sizes = [32, 32], strides = [1, 1]} : vector<48x32xf32> to vector<32x32xf32>
    %cst_104 = arith.constant dense<0.000000e+00> : vector<14x32xf32>
    %292 = tpu.matmul %280, %291, %cst_104 {dimension_numbers = #tpu.dot_dimension_numbers<[1], [0], [0], [1], [0, 0, 1, 1], [], []>} : vector<14x32xf32>, vector<32x32xf32>, vector<14x32xf32> -> vector<14x32xf32>
    %293 = vector.extract_strided_slice %290 {offsets = [32, 0], sizes = [16, 32], strides = [1, 1]} : vector<48x32xf32> to vector<16x32xf32>
    %cst_105 = arith.constant dense<0.000000e+00> : vector<14x32xf32>
    %294 = tpu.matmul %289, %293, %cst_105 {dimension_numbers = #tpu.dot_dimension_numbers<[1], [0], [0], [1], [0, 0, 1, 1], [], []>} : vector<14x16xf32>, vector<16x32xf32>, vector<14x32xf32> -> vector<14x32xf32>
    %295 = arith.addf %292, %294 : vector<14x32xf32>
    %c0_106 = arith.constant 0 : index
    %c0_107 = arith.constant 0 : index
    %296 = vector.load %arg15[%c0_106, %c0_107] : memref<1x32xf32, #tpu.memory_space<vmem>>, vector<1x32xf32>
    %297 = vector.broadcast %296 : vector<1x32xf32> to vector<14x32xf32>
    %298 = arith.addf %295, %297 : vector<14x32xf32>
    %cst_108 = arith.constant 0.000000e+00 : f32
    %299 = vector.broadcast %cst_108 : f32 to vector<14x32xf32>
    %300 = arith.maximumf %298, %299 : vector<14x32xf32>
    %c0_109 = arith.constant 0 : index
    %c0_110 = arith.constant 0 : index
    %301 = vector.load %arg16[%c0_109, %c0_110] : memref<32x1xf32, #tpu.memory_space<vmem>>, vector<32x1xf32>
    %cst_111 = arith.constant dense<0.000000e+00> : vector<14x1xf32>
    %302 = tpu.matmul %300, %301, %cst_111 {dimension_numbers = #tpu.dot_dimension_numbers<[1], [0], [0], [1], [0, 0, 1, 1], [], []>} : vector<14x32xf32>, vector<32x1xf32>, vector<14x1xf32> -> vector<14x1xf32>
    %c0_112 = arith.constant 0 : index
    %c0_113 = arith.constant 0 : index
    %303 = vector.load %arg17[%c0_112, %c0_113] : memref<1x1xf32, #tpu.memory_space<vmem>>, vector<1x1xf32>
    %304 = vector.broadcast %303 : vector<1x1xf32> to vector<14x1xf32>
    %305 = arith.addf %302, %304 : vector<14x1xf32>
    %c0_114 = arith.constant 0 : index
    %c0_115 = arith.constant 0 : index
    %306 = vector.load %arg2[%c0_114, %c0_115] : memref<14x1xf32, #tpu.memory_space<vmem>>, vector<14x1xf32>
    %cst_116 = arith.constant 0.000000e+00 : f32
    %307 = vector.broadcast %cst_116 : f32 to vector<14x1xf32>
    %308 = arith.cmpf oge, %306, %307 : vector<14x1xf32>
    %309 = arith.extui %308 : vector<14x1xi1> to vector<14x1xi32>
    %310 = arith.sitofp %309 : vector<14x1xi32> to vector<14x1xf32>
    %cst_117 = arith.constant 0.000000e+00 : f32
    %311 = vector.broadcast %cst_117 : f32 to vector<14x1xf32>
    %312 = arith.maximumf %305, %311 : vector<14x1xf32>
    %313 = arith.mulf %305, %306 : vector<14x1xf32>
    %314 = arith.subf %312, %313 : vector<14x1xf32>
    %315 = math.absf %305 : vector<14x1xf32>
    %cst_118 = arith.constant 0.000000e+00 : f32
    %316 = vector.broadcast %cst_118 : f32 to vector<14x1xf32>
    %317 = arith.subf %316, %315 : vector<14x1xf32>
    %318 = math.exp %317 : vector<14x1xf32>
    %cst_119 = arith.constant 1.000000e+00 : f32
    %319 = vector.broadcast %cst_119 : f32 to vector<14x1xf32>
    %320 = arith.addf %319, %318 : vector<14x1xf32>
    %321 = math.log %320 : vector<14x1xf32>
    %322 = arith.addf %314, %321 : vector<14x1xf32>
    %323 = arith.mulf %310, %322 : vector<14x1xf32>
    %324 = vector.shape_cast %323 : vector<14x1xf32> to vector<1x14x1xf32>
    %cst_120 = arith.constant dense<0.000000e+00> : vector<1xf32>
    %325 = vector.multi_reduction <add>, %324, %cst_120 [1, 2] : vector<1x14x1xf32> to vector<1xf32>
    %326 = vector.shape_cast %325 : vector<1xf32> to vector<1x1x1xf32>
    %327 = vector.extract %326[0, 0, 0] : f32 from vector<1x1x1xf32>
    %328 = vector.broadcast %327 : f32 to vector<1x1xf32>
    %329 = vector.shape_cast %310 : vector<14x1xf32> to vector<1x14x1xf32>
    %cst_121 = arith.constant dense<0.000000e+00> : vector<1xf32>
    %330 = vector.multi_reduction <add>, %329, %cst_121 [1, 2] : vector<1x14x1xf32> to vector<1xf32>
    %331 = vector.shape_cast %330 : vector<1xf32> to vector<1x1x1xf32>
    %332 = vector.extract %331[0, 0, 0] : f32 from vector<1x1x1xf32>
    %333 = vector.broadcast %332 : f32 to vector<1x1xf32>
    %334 = arith.divf %328, %333 : vector<1x1xf32>
    %c0_122 = arith.constant 0 : index
    %c0_123 = arith.constant 0 : index
    %335 = vector.load %arg18[%c0_122, %c0_123] : memref<1x1xf32, #tpu.memory_space<vmem>>, vector<1x1xf32>
    tpu.vector_store %arg18[%c0_122, %c0_123], %334 {strides = array<i32>} : memref<1x1xf32, #tpu.memory_space<vmem>>, vector<1x1xf32>,
    %336 = arith.negf %305 : vector<14x1xf32>
    %337 = math.exp %336 : vector<14x1xf32>
    %cst_124 = arith.constant 1.000000e+00 : f32
    %338 = vector.broadcast %cst_124 : f32 to vector<14x1xf32>
    %339 = arith.addf %338, %337 : vector<14x1xf32>
    %340 = arith.divf %338, %339 : vector<14x1xf32>
    %c0_125 = arith.constant 0 : index
    %c0_126 = arith.constant 0 : index
    %341 = vector.load %arg19[%c0_125, %c0_126] : memref<14x1xf32, #tpu.memory_space<vmem>>, vector<14x1xf32>
    tpu.vector_store %arg19[%c0_125, %c0_126], %340 {strides = array<i32>} : memref<14x1xf32, #tpu.memory_space<vmem>>, vector<14x1xf32>,
    return
  }
}

</mosaic_0001>

<llo_original>
// kernel: model_forward.1
$region0: #{model_forward.1}
  #allocation0 [shape = 'u32[]', space=smem, size = 0x4, offset = 0x4, fixed_abs, tag = 'smem constant byte address 0x4 - core index']
  #allocation1 [shape = 'u32[144,128]{1,0:T(1,128)}', space=vmem, size = 0x12000, scoped, tag = 'internal scratch']
  #allocation2 [shape = 'f32[1,1]{1,0:T(1,128)S(1)}', space=vmem, size = 0x200, scoped, tag = 'scoped memory for model_forward.1']
  %s0 = inlined_call_operand.vmem [shape: s32[14,1], index: 0, kind: input, shape index: {}]
  %s1 = inlined_call_operand.vmem [shape: s32[16,1], index: 1, kind: input, shape index: {}]
  %s2 = inlined_call_operand.vmem [shape: f32[14,1], index: 2, kind: input, shape index: {}]
  %s3 = inlined_call_operand.vmem [shape: f32[8,16], index: 3, kind: input, shape index: {}]
  %s4 = inlined_call_operand.vmem [shape: f32[8,16], index: 4, kind: input, shape index: {}]
  %s5 = inlined_call_operand.vmem [shape: f32[8,8], index: 5, kind: input, shape index: {}]
  %s6 = inlined_call_operand.vmem [shape: f32[2,16,16], index: 6, kind: input, shape index: {}]
  %s7 = inlined_call_operand.vmem [shape: f32[2,32,1], index: 7, kind: input, shape index: {}]
  %s8 = inlined_call_operand.vmem [shape: f32[2,16,16], index: 8, kind: input, shape index: {}]
  %s9 = inlined_call_operand.vmem [shape: f32[2,16,16], index: 9, kind: input, shape index: {}]
  %s10 = inlined_call_operand.vmem [shape: f32[14,16], index: 10, kind: input, shape index: {}]
  %s11 = inlined_call_operand.vmem [shape: f32[32,128], index: 11, kind: input, shape index: {}]
  %s12 = inlined_call_operand.vmem [shape: f32[32,128], index: 12, kind: input, shape index: {}]
  %s13 = inlined_call_operand.vmem [shape: f32[1,128], index: 13, kind: input, shape index: {}]
  %s14 = inlined_call_operand.vmem [shape: f32[48,32], index: 14, kind: input, shape index: {}]
  %s15 = inlined_call_operand.vmem [shape: f32[1,32], index: 15, kind: input, shape index: {}]
  %s16 = inlined_call_operand.vmem [shape: f32[32,1], index: 16, kind: input, shape index: {}]
  %s17 = inlined_call_operand.<no memory space> [shape: f32[1,1], index: 17, kind: input, shape index: {}]
  %s18 = inlined_call_operand.hbm [shape: f32[1,1], index: 18, kind: output, shape index: {0}]
  %s19 = inlined_call_operand.vmem [shape: f32[14,1], index: 19, kind: output, shape index: {1}]
  %20 = xla_tuple %s18, %s19
  %s21 = sld [smem:[#allocation0]]
  $region90: #{model_forward.1} parent=0
    _
  %s23 = ssub.s32 1, %s21
  %s24 = scalar_select 0, %s23, %s21
  %v25 = vstv %s17
  %26 = vst [vmem:[#allocation2] sm:$0x1] %v25
  $region1: #{model_forward.1} parent=0
    #allocation3 [shape = 'u8[512]{0}', space=vmem, size = 0x400, scoped, tag = 'output window, operand 0, single buffered']
    #allocation4 [shape = 's32[1]{0}', space=sflag, size = 0x4, scoped, tag = 'scoped memory for model_forward.1']
    %27 = vsyncpa [#allocation4], 0
    // Predicated region
    $region2: #{model_forward.1} parent=1 // pred_check
      _
    $region3: #{model_forward.1} parent=1 // pred_check_branch
      %29 = sbr.rel (0) target = $region5
    $region4: #{model_forward.1} parent=1 // pred_region
      _
    $region5: #{model_forward.1} parent=1 // pred_fallthru
      _
    // Predicated region
    $region6: #{model_forward.1} parent=1 // pred_check
      _
    $region7: #{model_forward.1} parent=1 // pred_check_branch
      %31 = sbr.rel (0) target = $region9
    $region8: #{model_forward.1} parent=1 // pred_region
      _
    $region9: #{model_forward.1} parent=1 // pred_fallthru
      _
    // Predicated region
    $region10: #{model_forward.1} parent=1 // pred_check
      _
    $region11: #{model_forward.1} parent=1 // pred_check_branch
      %33 = sbr.rel (0) target = $region13
    $region12: #{model_forward.1} parent=1 // pred_region
      _
    $region13: #{model_forward.1} parent=1 // pred_fallthru
      _
    // Predicated region
    $region14: #{model_forward.1} parent=1 // pred_check
      _
    $region15: #{model_forward.1} parent=1 // pred_check_branch
      %35 = sbr.rel (0) target = $region17
    $region16: #{model_forward.1} parent=1 // pred_region
      _
    $region17: #{model_forward.1} parent=1 // pred_fallthru
      _
    // Predicated region
    $region18: #{model_forward.1} parent=1 // pred_check
      _
    $region19: #{model_forward.1} parent=1 // pred_check_branch
      %37 = sbr.rel (0) target = $region21
    $region20: #{model_forward.1} parent=1 // pred_region
      _
    $region21: #{model_forward.1} parent=1 // pred_fallthru
      _
    // Predicated region
    $region22: #{model_forward.1} parent=1 // pred_check
      _
    $region23: #{model_forward.1} parent=1 // pred_check_branch
      %39 = sbr.rel (0) target = $region25
    $region24: #{model_forward.1} parent=1 // pred_region
      _
    $region25: #{model_forward.1} parent=1 // pred_fallthru
      _
    // Predicated region
    $region26: #{model_forward.1} parent=1 // pred_check
      _
    $region27: #{model_forward.1} parent=1 // pred_check_branch
      %41 = sbr.rel (0) target = $region29
    $region28: #{model_forward.1} parent=1 // pred_region
      _
    $region29: #{model_forward.1} parent=1 // pred_fallthru
      _
    // Predicated region
    $region30: #{model_forward.1} parent=1 // pred_check
      _
    $region31: #{model_forward.1} parent=1 // pred_check_branch
      %43 = sbr.rel (0) target = $region33
    $region32: #{model_forward.1} parent=1 // pred_region
      _
    $region33: #{model_forward.1} parent=1 // pred_fallthru
      _
    // Predicated region
    $region34: #{model_forward.1} parent=1 // pred_check
      _
    $region35: #{model_forward.1} parent=1 // pred_check_branch
      %45 = sbr.rel (0) target = $region37
    $region36: #{model_forward.1} parent=1 // pred_region
      _
    $region37: #{model_forward.1} parent=1 // pred_fallthru
      _
    // Predicated region
    $region38: #{model_forward.1} parent=1 // pred_check
      _
    $region39: #{model_forward.1} parent=1 // pred_check_branch
      %47 = sbr.rel (0) target = $region41
    $region40: #{model_forward.1} parent=1 // pred_region
      _
    $region41: #{model_forward.1} parent=1 // pred_fallthru
      _
    // Predicated region
    $region42: #{model_forward.1} parent=1 // pred_check
      _
    $region43: #{model_forward.1} parent=1 // pred_check_branch
      %49 = sbr.rel (0) target = $region45
    $region44: #{model_forward.1} parent=1 // pred_region
      _
    $region45: #{model_forward.1} parent=1 // pred_fallthru
      _
    // Predicated region
    $region46: #{model_forward.1} parent=1 // pred_check
      _
    $region47: #{model_forward.1} parent=1 // pred_check_branch
      %51 = sbr.rel (0) target = $region49
    $region48: #{model_forward.1} parent=1 // pred_region
      _
    $region49: #{model_forward.1} parent=1 // pred_fallthru
      _
    // Predicated region
    $region50: #{model_forward.1} parent=1 // pred_check
      _
    $region51: #{model_forward.1} parent=1 // pred_check_branch
      %53 = sbr.rel (0) target = $region53
    $region52: #{model_forward.1} parent=1 // pred_region
      _
    $region53: #{model_forward.1} parent=1 // pred_fallthru
      _
    // Predicated region
    $region54: #{model_forward.1} parent=1 // pred_check
      _
    $region55: #{model_forward.1} parent=1 // pred_check_branch
      %55 = sbr.rel (0) target = $region57
    $region56: #{model_forward.1} parent=1 // pred_region
      _
    $region57: #{model_forward.1} parent=1 // pred_fallthru
      _
    // Predicated region
    $region58: #{model_forward.1} parent=1 // pred_check
      _
    $region59: #{model_forward.1} parent=1 // pred_check_branch
      %57 = sbr.rel (0) target = $region61
    $region60: #{model_forward.1} parent=1 // pred_region
      _
    $region61: #{model_forward.1} parent=1 // pred_fallthru
      _
    // Predicated region
    $region62: #{model_forward.1} parent=1 // pred_check
      _
    $region63: #{model_forward.1} parent=1 // pred_check_branch
      %59 = sbr.rel (0) target = $region65
    $region64: #{model_forward.1} parent=1 // pred_region
      _
    $region65: #{model_forward.1} parent=1 // pred_fallthru
      _
    // Predicated region
    $region66: #{model_forward.1} parent=1 // pred_check
      _
    $region67: #{model_forward.1} parent=1 // pred_check_branch
      %61 = sbr.rel (0) target = $region69
    $region68: #{model_forward.1} parent=1 // pred_region
      _
    $region69: #{model_forward.1} parent=1 // pred_fallthru
      _
    // Predicated region
    $region70: #{model_forward.1} parent=1 // pred_check
      _
    $region71: #{model_forward.1} parent=1 // pred_check_branch
      %63 = sbr.rel (0) target = $region73
    $region72: #{model_forward.1} parent=1 // pred_region
      _
    $region73: #{model_forward.1} parent=1 // pred_fallthru
      _
    %v64 = vld [vmem:[%s3] sm:$0xff]
    %v65 = vld [vmem:[%s4] sm:$0xff]
    %v66 = vld [vmem:[%s5] sm:$0xff]
    %v67 = vld [vmem:[%s6] sm:$0xff]
    %v68 = vld [vmem:[%s6 + $0x8] sm:$0xff]
    %v69 = vld [vmem:[%s7] sm:$0xff]
    %v70 = vld [vmem:[%s7 + $0x8] sm:$0xff]
    %v71 = vld [vmem:[%s7 + $0x10] sm:$0xff]
    %v72 = vld [vmem:[%s7 + $0x18] sm:$0xff]
    %vm73 = vcmask 130048
    %v75 = vsel %vm73, %v65, 0
    %77 = vmatprep.subr.mxu0 0.0
    %78 = vmatpush1.msra.mxu0 %v67
    %79 = vmatprep.subr.mxu0 0.0
    %80 = vmatpush1.msra.mxu0 %v68
    %81 = vmatprep.subr.mxu0 0.0
    %82 = vmatpush1.msra.mxu0 0.0
    %83 = vmatprep.subr.mxu0 0.0
    %84 = vmatpush1.msra.mxu0 0.0
    %85 = vmatprep.subr.mxu0 0.0
    %86 = vmatpush1.msra.mxu0 0.0
    %87 = vmatprep.subr.mxu0 0.0
    %88 = vmatpush1.msra.mxu0 0.0
    %89 = vmatprep.subr.mxu0 0.0
    %90 = vmatpush1.msra.mxu0 0.0
    %91 = vmatprep.subr.mxu0 0.0
    %92 = vmatpush1.msra.mxu0 0.0
    %93 = vmatprep.subr.mxu0 0.0
    %94 = vmatpush1.msra.mxu0 0.0
    %95 = vmatprep.subr.mxu0 0.0
    %96 = vmatpush1.msra.mxu0 0.0
    %97 = vmatprep.subr.mxu0 0.0
    %98 = vmatpush1.msra.mxu0 0.0
    %99 = vmatprep.subr.mxu0 0.0
    %100 = vmatpush1.msra.mxu0 0.0
    %101 = vmatprep.subr.mxu0 0.0
    %102 = vmatpush1.msra.mxu0 0.0
    %103 = vmatprep.subr.mxu0 0.0
    %104 = vmatpush1.msra.mxu0 0.0
    %105 = vmatprep.subr.mxu0 0.0
    %106 = vmatpush1.msra.mxu0 0.0
    %107 = vmatprep.subr.mxu0 0.0
    %108 = vmatpush1.msra.mxu0 0.0
    %109 = vmatprep.subr.mxu0 0.0
    %110 = vmatpush1.msra.mxu0 0.0
    %111 = vmatprep.subr.mxu0 0.0
    %112 = vmatpush1.msra.mxu0 0.0
    %113 = vmatprep.subr.mxu0 0.0
    %114 = vmatpush1.msra.mxu0 0.0
    %115 = vmatprep.subr.mxu0 0.0
    %116 = vmatpush1.msra.mxu0 0.0
    %117 = vmatprep.subr.mxu0 0.0
    %118 = vmatpush1.msra.mxu0 0.0
    %119 = vmatprep.subr.mxu0 0.0
    %120 = vmatpush1.msra.mxu0 0.0
    %121 = vmatprep.subr.mxu0 0.0
    %122 = vmatpush1.msra.mxu0 0.0
    %123 = vmatprep.subr.mxu0 0.0
    %124 = vmatpush1.msra.mxu0 0.0
    %125 = vmatprep.subr.mxu0 0.0
    %126 = vmatpush1.msra.mxu0 0.0
    %127 = vmatprep.subr.mxu0 0.0
    %128 = vmatpush1.msra.mxu0 0.0
    %129 = vmatprep.subr.mxu0 0.0
    %130 = vmatpush1.msra.mxu0 0.0
    %131 = vmatprep.subr.mxu0 0.0
    %132 = vmatpush1.msra.mxu0 0.0
    %133 = vmatprep.subr.mxu0 0.0
    %134 = vmatpush1.msra.mxu0 0.0
    %135 = vmatprep.subr.mxu0 0.0
    %136 = vmatpush1.msra.mxu0 0.0
    %137 = vmatprep.subr.mxu0 0.0
    %138 = vmatpush1.msra.mxu0 0.0
    %139 = vmatprep.subr.mxu0 0.0
    %140 = vmatpush1.msra.mxu0 0.0
    %141 = vmatprep.mubr.f32.mxu0 0.0
    %142 = vmatmul.mubr.f32.gmra.mrb[0].mxu0 %v75
    %v143 = vpop.f32.mrb[0].mxu0
    %v144 = vadd.f32 0.0, %v143
    %v145 = vpop.f32.mrb[0].mxu0
    %146 = vdwg.mxu0
    %v148 = vsel %vm73, %v64, 0
    %150 = vmatprep.subr.mxu0 0.0
    %151 = vmatpush1.msra.mxu0 %v67
    %152 = vmatprep.subr.mxu0 0.0
    %153 = vmatpush1.msra.mxu0 %v68
    %154 = vmatprep.subr.mxu0 0.0
    %155 = vmatpush1.msra.mxu0 0.0
    %156 = vmatprep.subr.mxu0 0.0
    %157 = vmatpush1.msra.mxu0 0.0
    %158 = vmatprep.subr.mxu0 0.0
    %159 = vmatpush1.msra.mxu0 0.0
    %160 = vmatprep.subr.mxu0 0.0
    %161 = vmatpush1.msra.mxu0 0.0
    %162 = vmatprep.subr.mxu0 0.0
    %163 = vmatpush1.msra.mxu0 0.0
    %164 = vmatprep.subr.mxu0 0.0
    %165 = vmatpush1.msra.mxu0 0.0
    %166 = vmatprep.subr.mxu0 0.0
    %167 = vmatpush1.msra.mxu0 0.0
    %168 = vmatprep.subr.mxu0 0.0
    %169 = vmatpush1.msra.mxu0 0.0
    %170 = vmatprep.subr.mxu0 0.0
    %171 = vmatpush1.msra.mxu0 0.0
    %172 = vmatprep.subr.mxu0 0.0
    %173 = vmatpush1.msra.mxu0 0.0
    %174 = vmatprep.subr.mxu0 0.0
    %175 = vmatpush1.msra.mxu0 0.0
    %176 = vmatprep.subr.mxu0 0.0
    %177 = vmatpush1.msra.mxu0 0.0
    %178 = vmatprep.subr.mxu0 0.0
    %179 = vmatpush1.msra.mxu0 0.0
    %180 = vmatprep.subr.mxu0 0.0
    %181 = vmatpush1.msra.mxu0 0.0
    %182 = vmatprep.subr.mxu0 0.0
    %183 = vmatpush1.msra.mxu0 0.0
    %184 = vmatprep.subr.mxu0 0.0
    %185 = vmatpush1.msra.mxu0 0.0
    %186 = vmatprep.subr.mxu0 0.0
    %187 = vmatpush1.msra.mxu0 0.0
    %188 = vmatprep.subr.mxu0 0.0
    %189 = vmatpush1.msra.mxu0 0.0
    %190 = vmatprep.subr.mxu0 0.0
    %191 = vmatpush1.msra.mxu0 0.0
    %192 = vmatprep.subr.mxu0 0.0
    %193 = vmatpush1.msra.mxu0 0.0
    %194 = vmatprep.subr.mxu0 0.0
    %195 = vmatpush1.msra.mxu0 0.0
    %196 = vmatprep.subr.mxu0 0.0
    %197 = vmatpush1.msra.mxu0 0.0
    %198 = vmatprep.subr.mxu0 0.0
    %199 = vmatpush1.msra.mxu0 0.0
    %200 = vmatprep.subr.mxu0 0.0
    %201 = vmatpush1.msra.mxu0 0.0
    %202 = vmatprep.subr.mxu0 0.0
    %203 = vmatpush1.msra.mxu0 0.0
    %204 = vmatprep.subr.mxu0 0.0
    %205 = vmatpush1.msra.mxu0 0.0
    %206 = vmatprep.subr.mxu0 0.0
    %207 = vmatpush1.msra.mxu0 0.0
    %208 = vmatprep.subr.mxu0 0.0
    %209 = vmatpush1.msra.mxu0 0.0
    %210 = vmatprep.subr.mxu0 0.0
    %211 = vmatpush1.msra.mxu0 0.0
    %212 = vmatprep.subr.mxu0 0.0
    %213 = vmatpush1.msra.mxu0 0.0
    %214 = vmatprep.mubr.f32.mxu0 0.0
    %215 = vmatmul.mubr.f32.gmra.mrb[0].mxu0 %v148
    %v216 = vpop.f32.mrb[0].mxu0
    %v217 = vadd.f32 0.0, %v216
    %v218 = vpop.f32.mrb[0].mxu0
    %219 = vdwg.mxu0
    %v221 = vsel %vm73, %v217, 0
    %223 = vmatprep.subr.mxu0 0.0
    %224 = vmatpush1.msra.mxu0 %v69
    %225 = vmatprep.subr.mxu0 0.0
    %226 = vmatpush1.msra.mxu0 %v70
    %227 = vmatprep.subr.mxu0 0.0
    %228 = vmatpush1.msra.mxu0 0.0
    %229 = vmatprep.subr.mxu0 0.0
    %230 = vmatpush1.msra.mxu0 0.0
    %231 = vmatprep.subr.mxu0 0.0
    %232 = vmatpush1.msra.mxu0 0.0
    %233 = vmatprep.subr.mxu0 0.0
    %234 = vmatpush1.msra.mxu0 0.0
    %235 = vmatprep.subr.mxu0 0.0
    %236 = vmatpush1.msra.mxu0 0.0
    %237 = vmatprep.subr.mxu0 0.0
    %238 = vmatpush1.msra.mxu0 0.0
    %239 = vmatprep.subr.mxu0 0.0
    %240 = vmatpush1.msra.mxu0 0.0
    %241 = vmatprep.subr.mxu0 0.0
    %242 = vmatpush1.msra.mxu0 0.0
    %243 = vmatprep.subr.mxu0 0.0
    %244 = vmatpush1.msra.mxu0 0.0
    %245 = vmatprep.subr.mxu0 0.0
    %246 = vmatpush1.msra.mxu0 0.0
    %247 = vmatprep.subr.mxu0 0.0
    %248 = vmatpush1.msra.mxu0 0.0
    %249 = vmatprep.subr.mxu0 0.0
    %250 = vmatpush1.msra.mxu0 0.0
    %251 = vmatprep.subr.mxu0 0.0
    %252 = vmatpush1.msra.mxu0 0.0
    %253 = vmatprep.subr.mxu0 0.0
    %254 = vmatpush1.msra.mxu0 0.0
    %255 = vmatprep.subr.mxu0 0.0
    %256 = vmatpush1.msra.mxu0 0.0
    %257 = vmatprep.subr.mxu0 0.0
    %258 = vmatpush1.msra.mxu0 0.0
    %259 = vmatprep.subr.mxu0 0.0
    %260 = vmatpush1.msra.mxu0 0.0
    %261 = vmatprep.subr.mxu0 0.0
    %262 = vmatpush1.msra.mxu0 0.0
    %263 = vmatprep.subr.mxu0 0.0
    %264 = vmatpush1.msra.mxu0 0.0
    %265 = vmatprep.subr.mxu0 0.0
    %266 = vmatpush1.msra.mxu0 0.0
    %267 = vmatprep.subr.mxu0 0.0
    %268 = vmatpush1.msra.mxu0 0.0
    %269 = vmatprep.subr.mxu0 0.0
    %270 = vmatpush1.msra.mxu0 0.0
    %271 = vmatprep.subr.mxu0 0.0
    %272 = vmatpush1.msra.mxu0 0.0
    %273 = vmatprep.subr.mxu0 0.0
    %274 = vmatpush1.msra.mxu0 0.0
    %275 = vmatprep.subr.mxu0 0.0
    %276 = vmatpush1.msra.mxu0 0.0
    %277 = vmatprep.subr.mxu0 0.0
    %278 = vmatpush1.msra.mxu0 0.0
    %279 = vmatprep.subr.mxu0 0.0
    %280 = vmatpush1.msra.mxu0 0.0
    %281 = vmatprep.subr.mxu0 0.0
    %282 = vmatpush1.msra.mxu0 0.0
    %283 = vmatprep.subr.mxu0 0.0
    %284 = vmatpush1.msra.mxu0 0.0
    %285 = vmatprep.subr.mxu0 0.0
    %286 = vmatpush1.msra.mxu0 0.0
    %287 = vmatprep.mubr.f32.mxu0 0.0
    %288 = vmatmul.mubr.f32.gmra.mrb[0].mxu0 %v221
    %v289 = vpop.f32.mrb[0].mxu0
    %v290 = vadd.f32 0.0, %v289
    %v291 = vpop.f32.mrb[0].mxu0
    %292 = vdwg.mxu0
    %v294 = vsel %vm73, %v144, 0
    %296 = vmatprep.subr.mxu0 0.0
    %297 = vmatpush1.msra.mxu0 %v71
    %298 = vmatprep.subr.mxu0 0.0
    %299 = vmatpush1.msra.mxu0 %v72
    %300 = vmatprep.subr.mxu0 0.0
    %301 = vmatpush1.msra.mxu0 0.0
    %302 = vmatprep.subr.mxu0 0.0
    %303 = vmatpush1.msra.mxu0 0.0
    %304 = vmatprep.subr.mxu0 0.0
    %305 = vmatpush1.msra.mxu0 0.0
    %306 = vmatprep.subr.mxu0 0.0
    %307 = vmatpush1.msra.mxu0 0.0
    %308 = vmatprep.subr.mxu0 0.0
    %309 = vmatpush1.msra.mxu0 0.0
    %310 = vmatprep.subr.mxu0 0.0
    %311 = vmatpush1.msra.mxu0 0.0
    %312 = vmatprep.subr.mxu0 0.0
    %313 = vmatpush1.msra.mxu0 0.0
    %314 = vmatprep.subr.mxu0 0.0
    %315 = vmatpush1.msra.mxu0 0.0
    %316 = vmatprep.subr.mxu0 0.0
    %317 = vmatpush1.msra.mxu0 0.0
    %318 = vmatprep.subr.mxu0 0.0
    %319 = vmatpush1.msra.mxu0 0.0
    %320 = vmatprep.subr.mxu0 0.0
    %321 = vmatpush1.msra.mxu0 0.0
    %322 = vmatprep.subr.mxu0 0.0
    %323 = vmatpush1.msra.mxu0 0.0
    %324 = vmatprep.subr.mxu0 0.0
    %325 = vmatpush1.msra.mxu0 0.0
    %326 = vmatprep.subr.mxu0 0.0
    %327 = vmatpush1.msra.mxu0 0.0
    %328 = vmatprep.subr.mxu0 0.0
    %329 = vmatpush1.msra.mxu0 0.0
    %330 = vmatprep.subr.mxu0 0.0
    %331 = vmatpush1.msra.mxu0 0.0
    %332 = vmatprep.subr.mxu0 0.0
    %333 = vmatpush1.msra.mxu0 0.0
    %334 = vmatprep.subr.mxu0 0.0
    %335 = vmatpush1.msra.mxu0 0.0
    %336 = vmatprep.subr.mxu0 0.0
    %337 = vmatpush1.msra.mxu0 0.0
    %338 = vmatprep.subr.mxu0 0.0
    %339 = vmatpush1.msra.mxu0 0.0
    %340 = vmatprep.subr.mxu0 0.0
    %341 = vmatpush1.msra.mxu0 0.0
    %342 = vmatprep.subr.mxu0 0.0
    %343 = vmatpush1.msra.mxu0 0.0
    %344 = vmatprep.subr.mxu0 0.0
    %345 = vmatpush1.msra.mxu0 0.0
    %346 = vmatprep.subr.mxu0 0.0
    %347 = vmatpush1.msra.mxu0 0.0
    %348 = vmatprep.subr.mxu0 0.0
    %349 = vmatpush1.msra.mxu0 0.0
    %350 = vmatprep.subr.mxu0 0.0
    %351 = vmatpush1.msra.mxu0 0.0
    %352 = vmatprep.subr.mxu0 0.0
    %353 = vmatpush1.msra.mxu0 0.0
    %354 = vmatprep.subr.mxu0 0.0
    %355 = vmatpush1.msra.mxu0 0.0
    %356 = vmatprep.subr.mxu0 0.0
    %357 = vmatpush1.msra.mxu0 0.0
    %358 = vmatprep.subr.mxu0 0.0
    %359 = vmatpush1.msra.mxu0 0.0
    %360 = vmatprep.mubr.f32.mxu0 0.0
    %361 = vmatmul.mubr.f32.gmra.mrb[0].mxu0 %v294
    %v362 = vpop.f32.mrb[0].mxu0
    %v363 = vadd.f32 0.0, %v362
    %v364 = vpop.f32.mrb[0].mxu0
    %365 = vdwg.mxu0
    %366 = vxpose.xlu0.b32.start [1/16] %v363, 128
    %367 = vxpose.xlu0.b32.cont [2/16] 0.0, 128
    %368 = vxpose.xlu0.b32.cont [3/16] 0.0, 128
    %369 = vxpose.xlu0.b32.cont [4/16] 0.0, 128
    %370 = vxpose.xlu0.b32.cont [5/16] 0.0, 128
    %371 = vxpose.xlu0.b32.cont [6/16] 0.0, 128
    %372 = vxpose.xlu0.b32.cont [7/16] 0.0, 128
    %373 = vxpose.xlu0.b32.cont [8/16] 0.0, 128
    %374 = vxpose.xlu0.b32.cont [9/16] 0.0, 128
    %375 = vxpose.xlu0.b32.cont [10/16] 0.0, 128
    %376 = vxpose.xlu0.b32.cont [11/16] 0.0, 128
    %377 = vxpose.xlu0.b32.cont [12/16] 0.0, 128
    %378 = vxpose.xlu0.b32.cont [13/16] 0.0, 128
    %379 = vxpose.xlu0.b32.cont [14/16] 0.0, 128
    %380 = vxpose.xlu0.b32.cont [15/16] 0.0, 128
    %381 = vxpose.xlu0.b32.end [16/16] 0.0, 128
    %v382 = vpop.trf.xlu0
    %v383 = vpop.trf.xlu0
    %v384 = vpop.trf.xlu0
    %v385 = vpop.trf.xlu0
    %v386 = vpop.trf.xlu0
    %v387 = vpop.trf.xlu0
    %v388 = vpop.trf.xlu0
    %v389 = vpop.trf.xlu0
    %v390 = vpop.trf.xlu0
    %v391 = vpop.trf.xlu0
    %v392 = vpop.trf.xlu0
    %v393 = vpop.trf.xlu0
    %v394 = vpop.trf.xlu0
    %v395 = vpop.trf.xlu0
    %v396 = vpop.trf.xlu0
    %v397 = vpop.trf.xlu0
    %399 = vset.pattern.permute.xlu0 0
    %400 = vperm.xlu0 %399, %v290
    %v401 = vpop.permute.xlu0 %400
    %v403 = vlaneseq
    %v404 = vshrl.u32 %v403, 7
    %v405 = vsub.s32 0, %v404
    %v406 = vrot.slane %v382, %v405
    %v407 = vadd.f32 %v401, %v406
    %vm408 = vcmp.gt.f32.partialorder %v407, 0.0
    %v409 = vmul.f32 %v407, 0.2
    %v410 = vsel %vm408, %v407, %v409
    %vm411 = vcmp.gt.f32.partialorder %v66, 0.0
    %v412 = vsel %vm411, %v410, -9e+15
    %vm413 = vcmask 64512
    %v414 = vsel %vm413, %v412, -inf
    %415 = vmax.xlane.f32.xlu0 %v414
    %v416 = vpop.xlane.xlu0 %415
    %v417 = vsub.f32 %v412, %v416
    %v418 = vmul.f32 %v417, 1.442695
    %v419 = vpow.pop %v418
    %v420 = vsel %vm413, %v419, 0.0
    %421 = vadd.xlane.f32.xlu0 %v420
    %v422 = vpop.xlane.xlu0 %421
    %v423 = vrcp.pop %v422
    %v424 = vmul.f32 %v419, %v423
    %v426 = vsel %vm413, %v424, 0
    %428 = vmatprep.subr.mxu0 0.0
    %429 = vmatpush1.msra.mxu0 %v144
    %430 = vmatprep.subr.mxu0 0.0
    %431 = vmatpush1.msra.mxu0 0.0
    %432 = vmatprep.subr.mxu0 0.0
    %433 = vmatpush1.msra.mxu0 0.0
    %434 = vmatprep.subr.mxu0 0.0
    %435 = vmatpush1.msra.mxu0 0.0
    %436 = vmatprep.subr.mxu0 0.0
    %437 = vmatpush1.msra.mxu0 0.0
    %438 = vmatprep.subr.mxu0 0.0
    %439 = vmatpush1.msra.mxu0 0.0
    %440 = vmatprep.subr.mxu0 0.0
    %441 = vmatpush1.msra.mxu0 0.0
    %442 = vmatprep.subr.mxu0 0.0
    %443 = vmatpush1.msra.mxu0 0.0
    %444 = vmatprep.subr.mxu0 0.0
    %445 = vmatpush1.msra.mxu0 0.0
    %446 = vmatprep.subr.mxu0 0.0
    %447 = vmatpush1.msra.mxu0 0.0
    %448 = vmatprep.subr.mxu0 0.0
    %449 = vmatpush1.msra.mxu0 0.0
    %450 = vmatprep.subr.mxu0 0.0
    %451 = vmatpush1.msra.mxu0 0.0
    %452 = vmatprep.subr.mxu0 0.0
    %453 = vmatpush1.msra.mxu0 0.0
    %454 = vmatprep.subr.mxu0 0.0
    %455 = vmatpush1.msra.mxu0 0.0
    %456 = vmatprep.subr.mxu0 0.0
    %457 = vmatpush1.msra.mxu0 0.0
    %458 = vmatprep.subr.mxu0 0.0
    %459 = vmatpush1.msra.mxu0 0.0
    %460 = vmatprep.subr.mxu0 0.0
    %461 = vmatpush1.msra.mxu0 0.0
    %462 = vmatprep.subr.mxu0 0.0
    %463 = vmatpush1.msra.mxu0 0.0
    %464 = vmatprep.subr.mxu0 0.0
    %465 = vmatpush1.msra.mxu0 0.0
    %466 = vmatprep.subr.mxu0 0.0
    %467 = vmatpush1.msra.mxu0 0.0
    %468 = vmatprep.subr.mxu0 0.0
    %469 = vmatpush1.msra.mxu0 0.0
    %470 = vmatprep.subr.mxu0 0.0
    %471 = vmatpush1.msra.mxu0 0.0
    %472 = vmatprep.subr.mxu0 0.0
    %473 = vmatpush1.msra.mxu0 0.0
    %474 = vmatprep.subr.mxu0 0.0
    %475 = vmatpush1.msra.mxu0 0.0
    %476 = vmatprep.subr.mxu0 0.0
    %477 = vmatpush1.msra.mxu0 0.0
    %478 = vmatprep.subr.mxu0 0.0
    %479 = vmatpush1.msra.mxu0 0.0
    %480 = vmatprep.subr.mxu0 0.0
    %481 = vmatpush1.msra.mxu0 0.0
    %482 = vmatprep.subr.mxu0 0.0
    %483 = vmatpush1.msra.mxu0 0.0
    %484 = vmatprep.subr.mxu0 0.0
    %485 = vmatpush1.msra.mxu0 0.0
    %486 = vmatprep.subr.mxu0 0.0
    %487 = vmatpush1.msra.mxu0 0.0
    %488 = vmatprep.subr.mxu0 0.0
    %489 = vmatpush1.msra.mxu0 0.0
    %490 = vmatprep.subr.mxu0 0.0
    %491 = vmatpush1.msra.mxu0 0.0
    %492 = vmatprep.mubr.f32.mxu0 0.0
    %493 = vmatmul.mubr.f32.gmra.mrb[0].mxu0 %v426
    %v494 = vpop.f32.mrb[0].mxu0
    %v495 = vadd.f32 0.0, %v494
    %v496 = vpop.f32.mrb[0].mxu0
    %497 = vdwg.mxu0
    %v498 = vld [vmem:[%s8] sm:$0xff]
    %v499 = vld [vmem:[%s8 + $0x8] sm:$0xff]
    %500 = vmatprep.subr.mxu0 0.0
    %501 = vmatpush1.msra.mxu0 %v498
    %502 = vmatprep.subr.mxu0 0.0
    %503 = vmatpush1.msra.mxu0 %v499
    %504 = vmatprep.subr.mxu0 0.0
    %505 = vmatpush1.msra.mxu0 0.0
    %506 = vmatprep.subr.mxu0 0.0
    %507 = vmatpush1.msra.mxu0 0.0
    %508 = vmatprep.subr.mxu0 0.0
    %509 = vmatpush1.msra.mxu0 0.0
    %510 = vmatprep.subr.mxu0 0.0
    %511 = vmatpush1.msra.mxu0 0.0
    %512 = vmatprep.subr.mxu0 0.0
    %513 = vmatpush1.msra.mxu0 0.0
    %514 = vmatprep.subr.mxu0 0.0
    %515 = vmatpush1.msra.mxu0 0.0
    %516 = vmatprep.subr.mxu0 0.0
    %517 = vmatpush1.msra.mxu0 0.0
    %518 = vmatprep.subr.mxu0 0.0
    %519 = vmatpush1.msra.mxu0 0.0
    %520 = vmatprep.subr.mxu0 0.0
    %521 = vmatpush1.msra.mxu0 0.0
    %522 = vmatprep.subr.mxu0 0.0
    %523 = vmatpush1.msra.mxu0 0.0
    %524 = vmatprep.subr.mxu0 0.0
    %525 = vmatpush1.msra.mxu0 0.0
    %526 = vmatprep.subr.mxu0 0.0
    %527 = vmatpush1.msra.mxu0 0.0
    %528 = vmatprep.subr.mxu0 0.0
    %529 = vmatpush1.msra.mxu0 0.0
    %530 = vmatprep.subr.mxu0 0.0
    %531 = vmatpush1.msra.mxu0 0.0
    %532 = vmatprep.subr.mxu0 0.0
    %533 = vmatpush1.msra.mxu0 0.0
    %534 = vmatprep.subr.mxu0 0.0
    %535 = vmatpush1.msra.mxu0 0.0
    %536 = vmatprep.subr.mxu0 0.0
    %537 = vmatpush1.msra.mxu0 0.0
    %538 = vmatprep.subr.mxu0 0.0
    %539 = vmatpush1.msra.mxu0 0.0
    %540 = vmatprep.subr.mxu0 0.0
    %541 = vmatpush1.msra.mxu0 0.0
    %542 = vmatprep.subr.mxu0 0.0
    %543 = vmatpush1.msra.mxu0 0.0
    %544 = vmatprep.subr.mxu0 0.0
    %545 = vmatpush1.msra.mxu0 0.0
    %546 = vmatprep.subr.mxu0 0.0
    %547 = vmatpush1.msra.mxu0 0.0
    %548 = vmatprep.subr.mxu0 0.0
    %549 = vmatpush1.msra.mxu0 0.0
    %550 = vmatprep.subr.mxu0 0.0
    %551 = vmatpush1.msra.mxu0 0.0
    %552 = vmatprep.subr.mxu0 0.0
    %553 = vmatpush1.msra.mxu0 0.0
    %554 = vmatprep.subr.mxu0 0.0
    %555 = vmatpush1.msra.mxu0 0.0
    %556 = vmatprep.subr.mxu0 0.0
    %557 = vmatpush1.msra.mxu0 0.0
    %558 = vmatprep.subr.mxu0 0.0
    %559 = vmatpush1.msra.mxu0 0.0
    %560 = vmatprep.subr.mxu0 0.0
    %561 = vmatpush1.msra.mxu0 0.0
    %562 = vmatprep.subr.mxu0 0.0
    %563 = vmatpush1.msra.mxu0 0.0
    %564 = vmatprep.mubr.f32.mxu0 0.0
    %565 = vmatmul.mubr.f32.gmra.mrb[0].mxu0 %v148
    %v566 = vpop.f32.mrb[0].mxu0
    %v567 = vadd.f32 0.0, %v566
    %v568 = vpop.f32.mrb[0].mxu0
    %569 = vdwg.mxu0
    %v570 = vmul.f32 %v495, %v567
    %vm571 = vcmp.gt.f32.partialorder %v570, 0.0
    %v572 = vmin.f32 %v570, 0.0
    %v573 = vmul.f32 %v572, 1.442695
    %v574 = vpow.pop %v573
    %v575 = vsub.f32 %v574, 1.0
    %v576 = vsel %vm571, %v570, %v575
    %v577 = vld [vmem:[%s9] sm:$0xff]
    %v578 = vld [vmem:[%s9 + $0x8] sm:$0xff]
    %s579 = scalar_lea.vmem %s6, 16
    %v580 = vld [vmem:[%s579] sm:$0xff]
    %v581 = vld [vmem:[%s579 + $0x8] sm:$0xff]
    %s582 = scalar_lea.vmem %s7, 32
    %v583 = vld [vmem:[%s582] sm:$0xff]
    %v584 = vld [vmem:[%s582 + $0x8] sm:$0xff]
    %v585 = vld [vmem:[%s582 + $0x10] sm:$0xff]
    %v586 = vld [vmem:[%s582 + $0x18] sm:$0xff]
    %587 = vmatprep.subr.mxu0 0.0
    %588 = vmatpush1.msra.mxu0 %v580
    %589 = vmatprep.subr.mxu0 0.0
    %590 = vmatpush1.msra.mxu0 %v581
    %591 = vmatprep.subr.mxu0 0.0
    %592 = vmatpush1.msra.mxu0 0.0
    %593 = vmatprep.subr.mxu0 0.0
    %594 = vmatpush1.msra.mxu0 0.0
    %595 = vmatprep.subr.mxu0 0.0
    %596 = vmatpush1.msra.mxu0 0.0
    %597 = vmatprep.subr.mxu0 0.0
    %598 = vmatpush1.msra.mxu0 0.0
    %599 = vmatprep.subr.mxu0 0.0
    %600 = vmatpush1.msra.mxu0 0.0
    %601 = vmatprep.subr.mxu0 0.0
    %602 = vmatpush1.msra.mxu0 0.0
    %603 = vmatprep.subr.mxu0 0.0
    %604 = vmatpush1.msra.mxu0 0.0
    %605 = vmatprep.subr.mxu0 0.0
    %606 = vmatpush1.msra.mxu0 0.0
    %607 = vmatprep.subr.mxu0 0.0
    %608 = vmatpush1.msra.mxu0 0.0
    %609 = vmatprep.subr.mxu0 0.0
    %610 = vmatpush1.msra.mxu0 0.0
    %611 = vmatprep.subr.mxu0 0.0
    %612 = vmatpush1.msra.mxu0 0.0
    %613 = vmatprep.subr.mxu0 0.0
    %614 = vmatpush1.msra.mxu0 0.0
    %615 = vmatprep.subr.mxu0 0.0
    %616 = vmatpush1.msra.mxu0 0.0
    %617 = vmatprep.subr.mxu0 0.0
    %618 = vmatpush1.msra.mxu0 0.0
    %619 = vmatprep.subr.mxu0 0.0
    %620 = vmatpush1.msra.mxu0 0.0
    %621 = vmatprep.subr.mxu0 0.0
    %622 = vmatpush1.msra.mxu0 0.0
    %623 = vmatprep.subr.mxu0 0.0
    %624 = vmatpush1.msra.mxu0 0.0
    %625 = vmatprep.subr.mxu0 0.0
    %626 = vmatpush1.msra.mxu0 0.0
    %627 = vmatprep.subr.mxu0 0.0
    %628 = vmatpush1.msra.mxu0 0.0
    %629 = vmatprep.subr.mxu0 0.0
    %630 = vmatpush1.msra.mxu0 0.0
    %631 = vmatprep.subr.mxu0 0.0
    %632 = vmatpush1.msra.mxu0 0.0
    %633 = vmatprep.subr.mxu0 0.0
    %634 = vmatpush1.msra.mxu0 0.0
    %635 = vmatprep.subr.mxu0 0.0
    %636 = vmatpush1.msra.mxu0 0.0
    %637 = vmatprep.subr.mxu0 0.0
    %638 = vmatpush1.msra.mxu0 0.0
    %639 = vmatprep.subr.mxu0 0.0
    %640 = vmatpush1.msra.mxu0 0.0
    %641 = vmatprep.subr.mxu0 0.0
    %642 = vmatpush1.msra.mxu0 0.0
    %643 = vmatprep.subr.mxu0 0.0
    %644 = vmatpush1.msra.mxu0 0.0
    %645 = vmatprep.subr.mxu0 0.0
    %646 = vmatpush1.msra.mxu0 0.0
    %647 = vmatprep.subr.mxu0 0.0
    %648 = vmatpush1.msra.mxu0 0.0
    %649 = vmatprep.subr.mxu0 0.0
    %650 = vmatpush1.msra.mxu0 0.0
    %651 = vmatprep.mubr.f32.mxu0 0.0
    %652 = vmatmul.mubr.f32.gmra.mrb[0].mxu0 %v75
    %v653 = vpop.f32.mrb[0].mxu0
    %v654 = vadd.f32 0.0, %v653
    %v655 = vpop.f32.mrb[0].mxu0
    %656 = vdwg.mxu0
    %657 = vmatprep.subr.mxu0 0.0
    %658 = vmatpush1.msra.mxu0 %v580
    %659 = vmatprep.subr.mxu0 0.0
    %660 = vmatpush1.msra.mxu0 %v581
    %661 = vmatprep.subr.mxu0 0.0
    %662 = vmatpush1.msra.mxu0 0.0
    %663 = vmatprep.subr.mxu0 0.0
    %664 = vmatpush1.msra.mxu0 0.0
    %665 = vmatprep.subr.mxu0 0.0
    %666 = vmatpush1.msra.mxu0 0.0
    %667 = vmatprep.subr.mxu0 0.0
    %668 = vmatpush1.msra.mxu0 0.0
    %669 = vmatprep.subr.mxu0 0.0
    %670 = vmatpush1.msra.mxu0 0.0
    %671 = vmatprep.subr.mxu0 0.0
    %672 = vmatpush1.msra.mxu0 0.0
    %673 = vmatprep.subr.mxu0 0.0
    %674 = vmatpush1.msra.mxu0 0.0
    %675 = vmatprep.subr.mxu0 0.0
    %676 = vmatpush1.msra.mxu0 0.0
    %677 = vmatprep.subr.mxu0 0.0
    %678 = vmatpush1.msra.mxu0 0.0
    %679 = vmatprep.subr.mxu0 0.0
    %680 = vmatpush1.msra.mxu0 0.0
    %681 = vmatprep.subr.mxu0 0.0
    %682 = vmatpush1.msra.mxu0 0.0
    %683 = vmatprep.subr.mxu0 0.0
    %684 = vmatpush1.msra.mxu0 0.0
    %685 = vmatprep.subr.mxu0 0.0
    %686 = vmatpush1.msra.mxu0 0.0
    %687 = vmatprep.subr.mxu0 0.0
    %688 = vmatpush1.msra.mxu0 0.0
    %689 = vmatprep.subr.mxu0 0.0
    %690 = vmatpush1.msra.mxu0 0.0
    %691 = vmatprep.subr.mxu0 0.0
    %692 = vmatpush1.msra.mxu0 0.0
    %693 = vmatprep.subr.mxu0 0.0
    %694 = vmatpush1.msra.mxu0 0.0
    %695 = vmatprep.subr.mxu0 0.0
    %696 = vmatpush1.msra.mxu0 0.0
    %697 = vmatprep.subr.mxu0 0.0
    %698 = vmatpush1.msra.mxu0 0.0
    %699 = vmatprep.subr.mxu0 0.0
    %700 = vmatpush1.msra.mxu0 0.0
    %701 = vmatprep.subr.mxu0 0.0
    %702 = vmatpush1.msra.mxu0 0.0
    %703 = vmatprep.subr.mxu0 0.0
    %704 = vmatpush1.msra.mxu0 0.0
    %705 = vmatprep.subr.mxu0 0.0
    %706 = vmatpush1.msra.mxu0 0.0
    %707 = vmatprep.subr.mxu0 0.0
    %708 = vmatpush1.msra.mxu0 0.0
    %709 = vmatprep.subr.mxu0 0.0
    %710 = vmatpush1.msra.mxu0 0.0
    %711 = vmatprep.subr.mxu0 0.0
    %712 = vmatpush1.msra.mxu0 0.0
    %713 = vmatprep.subr.mxu0 0.0
    %714 = vmatpush1.msra.mxu0 0.0
    %715 = vmatprep.subr.mxu0 0.0
    %716 = vmatpush1.msra.mxu0 0.0
    %717 = vmatprep.subr.mxu0 0.0
    %718 = vmatpush1.msra.mxu0 0.0
    %719 = vmatprep.subr.mxu0 0.0
    %720 = vmatpush1.msra.mxu0 0.0
    %721 = vmatprep.mubr.f32.mxu0 0.0
    %722 = vmatmul.mubr.f32.gmra.mrb[0].mxu0 %v148
    %v723 = vpop.f32.mrb[0].mxu0
    %v724 = vadd.f32 0.0, %v723
    %v725 = vpop.f32.mrb[0].mxu0
    %726 = vdwg.mxu0
    %v728 = vsel %vm73, %v724, 0
    %730 = vmatprep.subr.mxu0 0.0
    %731 = vmatpush1.msra.mxu0 %v583
    %732 = vmatprep.subr.mxu0 0.0
    %733 = vmatpush1.msra.mxu0 %v584
    %734 = vmatprep.subr.mxu0 0.0
    %735 = vmatpush1.msra.mxu0 0.0
    %736 = vmatprep.subr.mxu0 0.0
    %737 = vmatpush1.msra.mxu0 0.0
    %738 = vmatprep.subr.mxu0 0.0
    %739 = vmatpush1.msra.mxu0 0.0
    %740 = vmatprep.subr.mxu0 0.0
    %741 = vmatpush1.msra.mxu0 0.0
    %742 = vmatprep.subr.mxu0 0.0
    %743 = vmatpush1.msra.mxu0 0.0
    %744 = vmatprep.subr.mxu0 0.0
    %745 = vmatpush1.msra.mxu0 0.0
    %746 = vmatprep.subr.mxu0 0.0
    %747 = vmatpush1.msra.mxu0 0.0
    %748 = vmatprep.subr.mxu0 0.0
    %749 = vmatpush1.msra.mxu0 0.0
    %750 = vmatprep.subr.mxu0 0.0
    %751 = vmatpush1.msra.mxu0 0.0
    %752 = vmatprep.subr.mxu0 0.0
    %753 = vmatpush1.msra.mxu0 0.0
    %754 = vmatprep.subr.mxu0 0.0
    %755 = vmatpush1.msra.mxu0 0.0
    %756 = vmatprep.subr.mxu0 0.0
    %757 = vmatpush1.msra.mxu0 0.0
    %758 = vmatprep.subr.mxu0 0.0
    %759 = vmatpush1.msra.mxu0 0.0
    %760 = vmatprep.subr.mxu0 0.0
    %761 = vmatpush1.msra.mxu0 0.0
    %762 = vmatprep.subr.mxu0 0.0
    %763 = vmatpush1.msra.mxu0 0.0
    %764 = vmatprep.subr.mxu0 0.0
    %765 = vmatpush1.msra.mxu0 0.0
    %766 = vmatprep.subr.mxu0 0.0
    %767 = vmatpush1.msra.mxu0 0.0
    %768 = vmatprep.subr.mxu0 0.0
    %769 = vmatpush1.msra.mxu0 0.0
    %770 = vmatprep.subr.mxu0 0.0
    %771 = vmatpush1.msra.mxu0 0.0
    %772 = vmatprep.subr.mxu0 0.0
    %773 = vmatpush1.msra.mxu0 0.0
    %774 = vmatprep.subr.mxu0 0.0
    %775 = vmatpush1.msra.mxu0 0.0
    %776 = vmatprep.subr.mxu0 0.0
    %777 = vmatpush1.msra.mxu0 0.0
    %778 = vmatprep.subr.mxu0 0.0
    %779 = vmatpush1.msra.mxu0 0.0
    %780 = vmatprep.subr.mxu0 0.0
    %781 = vmatpush1.msra.mxu0 0.0
    %782 = vmatprep.subr.mxu0 0.0
    %783 = vmatpush1.msra.mxu0 0.0
    %784 = vmatprep.subr.mxu0 0.0
    %785 = vmatpush1.msra.mxu0 0.0
    %786 = vmatprep.subr.mxu0 0.0
    %787 = vmatpush1.msra.mxu0 0.0
    %788 = vmatprep.subr.mxu0 0.0
    %789 = vmatpush1.msra.mxu0 0.0
    %790 = vmatprep.subr.mxu0 0.0
    %791 = vmatpush1.msra.mxu0 0.0
    %792 = vmatprep.subr.mxu0 0.0
    %793 = vmatpush1.msra.mxu0 0.0
    %794 = vmatprep.mubr.f32.mxu0 0.0
    %795 = vmatmul.mubr.f32.gmra.mrb[0].mxu0 %v728
    %v796 = vpop.f32.mrb[0].mxu0
    %v797 = vadd.f32 0.0, %v796
    %v798 = vpop.f32.mrb[0].mxu0
    %799 = vdwg.mxu0
    %v801 = vsel %vm73, %v654, 0
    %803 = vmatprep.subr.mxu0 0.0
    %804 = vmatpush1.msra.mxu0 %v585
    %805 = vmatprep.subr.mxu0 0.0
    %806 = vmatpush1.msra.mxu0 %v586
    %807 = vmatprep.subr.mxu0 0.0
    %808 = vmatpush1.msra.mxu0 0.0
    %809 = vmatprep.subr.mxu0 0.0
    %810 = vmatpush1.msra.mxu0 0.0
    %811 = vmatprep.subr.mxu0 0.0
    %812 = vmatpush1.msra.mxu0 0.0
    %813 = vmatprep.subr.mxu0 0.0
    %814 = vmatpush1.msra.mxu0 0.0
    %815 = vmatprep.subr.mxu0 0.0
    %816 = vmatpush1.msra.mxu0 0.0
    %817 = vmatprep.subr.mxu0 0.0
    %818 = vmatpush1.msra.mxu0 0.0
    %819 = vmatprep.subr.mxu0 0.0
    %820 = vmatpush1.msra.mxu0 0.0
    %821 = vmatprep.subr.mxu0 0.0
    %822 = vmatpush1.msra.mxu0 0.0
    %823 = vmatprep.subr.mxu0 0.0
    %824 = vmatpush1.msra.mxu0 0.0
    %825 = vmatprep.subr.mxu0 0.0
    %826 = vmatpush1.msra.mxu0 0.0
    %827 = vmatprep.subr.mxu0 0.0
    %828 = vmatpush1.msra.mxu0 0.0
    %829 = vmatprep.subr.mxu0 0.0
    %830 = vmatpush1.msra.mxu0 0.0
    %831 = vmatprep.subr.mxu0 0.0
    %832 = vmatpush1.msra.mxu0 0.0
    %833 = vmatprep.subr.mxu0 0.0
    %834 = vmatpush1.msra.mxu0 0.0
    %835 = vmatprep.subr.mxu0 0.0
    %836 = vmatpush1.msra.mxu0 0.0
    %837 = vmatprep.subr.mxu0 0.0
    %838 = vmatpush1.msra.mxu0 0.0
    %839 = vmatprep.subr.mxu0 0.0
    %840 = vmatpush1.msra.mxu0 0.0
    %841 = vmatprep.subr.mxu0 0.0
    %842 = vmatpush1.msra.mxu0 0.0
    %843 = vmatprep.subr.mxu0 0.0
    %844 = vmatpush1.msra.mxu0 0.0
    %845 = vmatprep.subr.mxu0 0.0
    %846 = vmatpush1.msra.mxu0 0.0
    %847 = vmatprep.subr.mxu0 0.0
    %848 = vmatpush1.msra.mxu0 0.0
    %849 = vmatprep.subr.mxu0 0.0
    %850 = vmatpush1.msra.mxu0 0.0
    %851 = vmatprep.subr.mxu0 0.0
    %852 = vmatpush1.msra.mxu0 0.0
    %853 = vmatprep.subr.mxu0 0.0
    %854 = vmatpush1.msra.mxu0 0.0
    %855 = vmatprep.subr.mxu0 0.0
    %856 = vmatpush1.msra.mxu0 0.0
    %857 = vmatprep.subr.mxu0 0.0
    %858 = vmatpush1.msra.mxu0 0.0
    %859 = vmatprep.subr.mxu0 0.0
    %860 = vmatpush1.msra.mxu0 0.0
    %861 = vmatprep.subr.mxu0 0.0
    %862 = vmatpush1.msra.mxu0 0.0
    %863 = vmatprep.subr.mxu0 0.0
    %864 = vmatpush1.msra.mxu0 0.0
    %865 = vmatprep.subr.mxu0 0.0
    %866 = vmatpush1.msra.mxu0 0.0
    %867 = vmatprep.mubr.f32.mxu0 0.0
    %868 = vmatmul.mubr.f32.gmra.mrb[0].mxu0 %v801
    %v869 = vpop.f32.mrb[0].mxu0
    %v870 = vadd.f32 0.0, %v869
    %v871 = vpop.f32.mrb[0].mxu0
    %872 = vdwg.mxu0
    %873 = vxpose.xlu0.b32.start [1/16] %v870, 128
    %874 = vxpose.xlu0.b32.cont [2/16] 0.0, 128
    %875 = vxpose.xlu0.b32.cont [3/16] 0.0, 128
    %876 = vxpose.xlu0.b32.cont [4/16] 0.0, 128
    %877 = vxpose.xlu0.b32.cont [5/16] 0.0, 128
    %878 = vxpose.xlu0.b32.cont [6/16] 0.0, 128
    %879 = vxpose.xlu0.b32.cont [7/16] 0.0, 128
    %880 = vxpose.xlu0.b32.cont [8/16] 0.0, 128
    %881 = vxpose.xlu0.b32.cont [9/16] 0.0, 128
    %882 = vxpose.xlu0.b32.cont [10/16] 0.0, 128
    %883 = vxpose.xlu0.b32.cont [11/16] 0.0, 128
    %884 = vxpose.xlu0.b32.cont [12/16] 0.0, 128
    %885 = vxpose.xlu0.b32.cont [13/16] 0.0, 128
    %886 = vxpose.xlu0.b32.cont [14/16] 0.0, 128
    %887 = vxpose.xlu0.b32.cont [15/16] 0.0, 128
    %888 = vxpose.xlu0.b32.end [16/16] 0.0, 128
    %v889 = vpop.trf.xlu0
    %v890 = vpop.trf.xlu0
    %v891 = vpop.trf.xlu0
    %v892 = vpop.trf.xlu0
    %v893 = vpop.trf.xlu0
    %v894 = vpop.trf.xlu0
    %v895 = vpop.trf.xlu0
    %v896 = vpop.trf.xlu0
    %v897 = vpop.trf.xlu0
    %v898 = vpop.trf.xlu0
    %v899 = vpop.trf.xlu0
    %v900 = vpop.trf.xlu0
    %v901 = vpop.trf.xlu0
    %v902 = vpop.trf.xlu0
    %v903 = vpop.trf.xlu0
    %v904 = vpop.trf.xlu0
    %906 = vset.pattern.permute.xlu0 0
    %907 = vperm.xlu0 %906, %v797
    %v908 = vpop.permute.xlu0 %907
    %v910 = vlaneseq
    %v911 = vshrl.u32 %v910, 7
    %v912 = vsub.s32 0, %v911
    %v913 = vrot.slane %v889, %v912
    %v914 = vadd.f32 %v908, %v913
    %vm915 = vcmp.gt.f32.partialorder %v914, 0.0
    %v916 = vmul.f32 %v914, 0.2
    %v917 = vsel %vm915, %v914, %v916
    %v918 = vsel %vm411, %v917, -9e+15
    %v919 = vsel %vm413, %v918, -inf
    %920 = vmax.xlane.f32.xlu0 %v919
    %v921 = vpop.xlane.xlu0 %920
    %v922 = vsub.f32 %v918, %v921
    %v923 = vmul.f32 %v922, 1.442695
    %v924 = vpow.pop %v923
    %v925 = vsel %vm413, %v924, 0.0
    %926 = vadd.xlane.f32.xlu0 %v925
    %v927 = vpop.xlane.xlu0 %926
    %v928 = vrcp.pop %v927
    %v929 = vmul.f32 %v924, %v928
    %v931 = vsel %vm413, %v929, 0
    %933 = vmatprep.subr.mxu0 0.0
    %934 = vmatpush1.msra.mxu0 %v654
    %935 = vmatprep.subr.mxu0 0.0
    %936 = vmatpush1.msra.mxu0 0.0
    %937 = vmatprep.subr.mxu0 0.0
    %938 = vmatpush1.msra.mxu0 0.0
    %939 = vmatprep.subr.mxu0 0.0
    %940 = vmatpush1.msra.mxu0 0.0
    %941 = vmatprep.subr.mxu0 0.0
    %942 = vmatpush1.msra.mxu0 0.0
    %943 = vmatprep.subr.mxu0 0.0
    %944 = vmatpush1.msra.mxu0 0.0
    %945 = vmatprep.subr.mxu0 0.0
    %946 = vmatpush1.msra.mxu0 0.0
    %947 = vmatprep.subr.mxu0 0.0
    %948 = vmatpush1.msra.mxu0 0.0
    %949 = vmatprep.subr.mxu0 0.0
    %950 = vmatpush1.msra.mxu0 0.0
    %951 = vmatprep.subr.mxu0 0.0
    %952 = vmatpush1.msra.mxu0 0.0
    %953 = vmatprep.subr.mxu0 0.0
    %954 = vmatpush1.msra.mxu0 0.0
    %955 = vmatprep.subr.mxu0 0.0
    %956 = vmatpush1.msra.mxu0 0.0
    %957 = vmatprep.subr.mxu0 0.0
    %958 = vmatpush1.msra.mxu0 0.0
    %959 = vmatprep.subr.mxu0 0.0
    %960 = vmatpush1.msra.mxu0 0.0
    %961 = vmatprep.subr.mxu0 0.0
    %962 = vmatpush1.msra.mxu0 0.0
    %963 = vmatprep.subr.mxu0 0.0
    %964 = vmatpush1.msra.mxu0 0.0
    %965 = vmatprep.subr.mxu0 0.0
    %966 = vmatpush1.msra.mxu0 0.0
    %967 = vmatprep.subr.mxu0 0.0
    %968 = vmatpush1.msra.mxu0 0.0
    %969 = vmatprep.subr.mxu0 0.0
    %970 = vmatpush1.msra.mxu0 0.0
    %971 = vmatprep.subr.mxu0 0.0
    %972 = vmatpush1.msra.mxu0 0.0
    %973 = vmatprep.subr.mxu0 0.0
    %974 = vmatpush1.msra.mxu0 0.0
    %975 = vmatprep.subr.mxu0 0.0
    %976 = vmatpush1.msra.mxu0 0.0
    %977 = vmatprep.subr.mxu0 0.0
    %978 = vmatpush1.msra.mxu0 0.0
    %979 = vmatprep.subr.mxu0 0.0
    %980 = vmatpush1.msra.mxu0 0.0
    %981 = vmatprep.subr.mxu0 0.0
    %982 = vmatpush1.msra.mxu0 0.0
    %983 = vmatprep.subr.mxu0 0.0
    %984 = vmatpush1.msra.mxu0 0.0
    %985 = vmatprep.subr.mxu0 0.0
    %986 = vmatpush1.msra.mxu0 0.0
    %987 = vmatprep.subr.mxu0 0.0
    %988 = vmatpush1.msra.mxu0 0.0
    %989 = vmatprep.subr.mxu0 0.0
    %990 = vmatpush1.msra.mxu0 0.0
    %991 = vmatprep.subr.mxu0 0.0
    %992 = vmatpush1.msra.mxu0 0.0
    %993 = vmatprep.subr.mxu0 0.0
    %994 = vmatpush1.msra.mxu0 0.0
    %995 = vmatprep.subr.mxu0 0.0
    %996 = vmatpush1.msra.mxu0 0.0
    %997 = vmatprep.mubr.f32.mxu0 0.0
    %998 = vmatmul.mubr.f32.gmra.mrb[0].mxu0 %v931
    %v999 = vpop.f32.mrb[0].mxu0
    %v1000 = vadd.f32 0.0, %v999
    %v1001 = vpop.f32.mrb[0].mxu0
    %1002 = vdwg.mxu0
    %s1003 = scalar_lea.vmem %s8, 16
    %v1004 = vld [vmem:[%s1003] sm:$0xff]
    %v1005 = vld [vmem:[%s1003 + $0x8] sm:$0xff]
    %1006 = vmatprep.subr.mxu0 0.0
    %1007 = vmatpush1.msra.mxu0 %v1004
    %1008 = vmatprep.subr.mxu0 0.0
    %1009 = vmatpush1.msra.mxu0 %v1005
    %1010 = vmatprep.subr.mxu0 0.0
    %1011 = vmatpush1.msra.mxu0 0.0
    %1012 = vmatprep.subr.mxu0 0.0
    %1013 = vmatpush1.msra.mxu0 0.0
    %1014 = vmatprep.subr.mxu0 0.0
    %1015 = vmatpush1.msra.mxu0 0.0
    %1016 = vmatprep.subr.mxu0 0.0
    %1017 = vmatpush1.msra.mxu0 0.0
    %1018 = vmatprep.subr.mxu0 0.0
    %1019 = vmatpush1.msra.mxu0 0.0
    %1020 = vmatprep.subr.mxu0 0.0
    %1021 = vmatpush1.msra.mxu0 0.0
    %1022 = vmatprep.subr.mxu0 0.0
    %1023 = vmatpush1.msra.mxu0 0.0
    %1024 = vmatprep.subr.mxu0 0.0
    %1025 = vmatpush1.msra.mxu0 0.0
    %1026 = vmatprep.subr.mxu0 0.0
    %1027 = vmatpush1.msra.mxu0 0.0
    %1028 = vmatprep.subr.mxu0 0.0
    %1029 = vmatpush1.msra.mxu0 0.0
    %1030 = vmatprep.subr.mxu0 0.0
    %1031 = vmatpush1.msra.mxu0 0.0
    %1032 = vmatprep.subr.mxu0 0.0
    %1033 = vmatpush1.msra.mxu0 0.0
    %1034 = vmatprep.subr.mxu0 0.0
    %1035 = vmatpush1.msra.mxu0 0.0
    %1036 = vmatprep.subr.mxu0 0.0
    %1037 = vmatpush1.msra.mxu0 0.0
    %1038 = vmatprep.subr.mxu0 0.0
    %1039 = vmatpush1.msra.mxu0 0.0
    %1040 = vmatprep.subr.mxu0 0.0
    %1041 = vmatpush1.msra.mxu0 0.0
    %1042 = vmatprep.subr.mxu0 0.0
    %1043 = vmatpush1.msra.mxu0 0.0
    %1044 = vmatprep.subr.mxu0 0.0
    %1045 = vmatpush1.msra.mxu0 0.0
    %1046 = vmatprep.subr.mxu0 0.0
    %1047 = vmatpush1.msra.mxu0 0.0
    %1048 = vmatprep.subr.mxu0 0.0
    %1049 = vmatpush1.msra.mxu0 0.0
    %1050 = vmatprep.subr.mxu0 0.0
    %1051 = vmatpush1.msra.mxu0 0.0
    %1052 = vmatprep.subr.mxu0 0.0
    %1053 = vmatpush1.msra.mxu0 0.0
    %1054 = vmatprep.subr.mxu0 0.0
    %1055 = vmatpush1.msra.mxu0 0.0
    %1056 = vmatprep.subr.mxu0 0.0
    %1057 = vmatpush1.msra.mxu0 0.0
    %1058 = vmatprep.subr.mxu0 0.0
    %1059 = vmatpush1.msra.mxu0 0.0
    %1060 = vmatprep.subr.mxu0 0.0
    %1061 = vmatpush1.msra.mxu0 0.0
    %1062 = vmatprep.subr.mxu0 0.0
    %1063 = vmatpush1.msra.mxu0 0.0
    %1064 = vmatprep.subr.mxu0 0.0
    %1065 = vmatpush1.msra.mxu0 0.0
    %1066 = vmatprep.subr.mxu0 0.0
    %1067 = vmatpush1.msra.mxu0 0.0
    %1068 = vmatprep.subr.mxu0 0.0
    %1069 = vmatpush1.msra.mxu0 0.0
    %1070 = vmatprep.mubr.f32.mxu0 0.0
    %1071 = vmatmul.mubr.f32.gmra.mrb[0].mxu0 %v148
    %v1072 = vpop.f32.mrb[0].mxu0
    %v1073 = vadd.f32 0.0, %v1072
    %v1074 = vpop.f32.mrb[0].mxu0
    %1075 = vdwg.mxu0
    %v1076 = vmul.f32 %v1000, %v1073
    %vm1077 = vcmp.gt.f32.partialorder %v1076, 0.0
    %v1078 = vmin.f32 %v1076, 0.0
    %v1079 = vmul.f32 %v1078, 1.442695
    %v1080 = vpow.pop %v1079
    %v1081 = vsub.f32 %v1080, 1.0
    %v1082 = vsel %vm1077, %v1076, %v1081
    %s1083 = scalar_lea.vmem %s9, 16
    %v1084 = vld [vmem:[%s1083] sm:$0xff]
    %v1085 = vld [vmem:[%s1083 + $0x8] sm:$0xff]
    %v1087 = vsel %vm73, %v1082, 0
    %1089 = vmatprep.subr.mxu0 0.0
    %1090 = vmatpush1.msra.mxu0 %v1084
    %1091 = vmatprep.subr.mxu0 0.0
    %1092 = vmatpush1.msra.mxu0 %v1085
    %1093 = vmatprep.subr.mxu0 0.0
    %1094 = vmatpush1.msra.mxu0 0.0
    %1095 = vmatprep.subr.mxu0 0.0
    %1096 = vmatpush1.msra.mxu0 0.0
    %1097 = vmatprep.subr.mxu0 0.0
    %1098 = vmatpush1.msra.mxu0 0.0
    %1099 = vmatprep.subr.mxu0 0.0
    %1100 = vmatpush1.msra.mxu0 0.0
    %1101 = vmatprep.subr.mxu0 0.0
    %1102 = vmatpush1.msra.mxu0 0.0
    %1103 = vmatprep.subr.mxu0 0.0
    %1104 = vmatpush1.msra.mxu0 0.0
    %1105 = vmatprep.subr.mxu0 0.0
    %1106 = vmatpush1.msra.mxu0 0.0
    %1107 = vmatprep.subr.mxu0 0.0
    %1108 = vmatpush1.msra.mxu0 0.0
    %1109 = vmatprep.subr.mxu0 0.0
    %1110 = vmatpush1.msra.mxu0 0.0
    %1111 = vmatprep.subr.mxu0 0.0
    %1112 = vmatpush1.msra.mxu0 0.0
    %1113 = vmatprep.subr.mxu0 0.0
    %1114 = vmatpush1.msra.mxu0 0.0
    %1115 = vmatprep.subr.mxu0 0.0
    %1116 = vmatpush1.msra.mxu0 0.0
    %1117 = vmatprep.subr.mxu0 0.0
    %1118 = vmatpush1.msra.mxu0 0.0
    %1119 = vmatprep.subr.mxu0 0.0
    %1120 = vmatpush1.msra.mxu0 0.0
    %1121 = vmatprep.subr.mxu0 0.0
    %1122 = vmatpush1.msra.mxu0 0.0
    %1123 = vmatprep.subr.mxu0 0.0
    %1124 = vmatpush1.msra.mxu0 0.0
    %1125 = vmatprep.subr.mxu0 0.0
    %1126 = vmatpush1.msra.mxu0 0.0
    %1127 = vmatprep.subr.mxu0 0.0
    %1128 = vmatpush1.msra.mxu0 0.0
    %1129 = vmatprep.subr.mxu0 0.0
    %1130 = vmatpush1.msra.mxu0 0.0
    %1131 = vmatprep.subr.mxu0 0.0
    %1132 = vmatpush1.msra.mxu0 0.0
    %1133 = vmatprep.subr.mxu0 0.0
    %1134 = vmatpush1.msra.mxu0 0.0
    %1135 = vmatprep.subr.mxu0 0.0
    %1136 = vmatpush1.msra.mxu0 0.0
    %1137 = vmatprep.subr.mxu0 0.0
    %1138 = vmatpush1.msra.mxu0 0.0
    %1139 = vmatprep.subr.mxu0 0.0
    %1140 = vmatpush1.msra.mxu0 0.0
    %1141 = vmatprep.subr.mxu0 0.0
    %1142 = vmatpush1.msra.mxu0 0.0
    %1143 = vmatprep.subr.mxu0 0.0
    %1144 = vmatpush1.msra.mxu0 0.0
    %1145 = vmatprep.subr.mxu0 0.0
    %1146 = vmatpush1.msra.mxu0 0.0
    %1147 = vmatprep.subr.mxu0 0.0
    %1148 = vmatpush1.msra.mxu0 0.0
    %1149 = vmatprep.subr.mxu0 0.0
    %1150 = vmatpush1.msra.mxu0 0.0
    %1151 = vmatprep.subr.mxu0 0.0
    %1152 = vmatpush1.msra.mxu0 0.0
    %1153 = vmatprep.mubr.f32.mxu0 0.0
    %1154 = vmatmul.mubr.f32.gmra.mrb[0].mxu0 %v1087
    %v1155 = vpop.f32.mrb[0].mxu0
    %v1156 = vadd.f32 0.0, %v1155
    %v1157 = vpop.f32.mrb[0].mxu0
    %1158 = vdwg.mxu0
    %v1160 = vsel %vm73, %v576, 0
    %1162 = vmatprep.subr.mxu0 0.0
    %1163 = vmatpush1.msra.mxu0 %v577
    %1164 = vmatprep.subr.mxu0 0.0
    %1165 = vmatpush1.msra.mxu0 %v578
    %1166 = vmatprep.subr.mxu0 0.0
    %1167 = vmatpush1.msra.mxu0 0.0
    %1168 = vmatprep.subr.mxu0 0.0
    %1169 = vmatpush1.msra.mxu0 0.0
    %1170 = vmatprep.subr.mxu0 0.0
    %1171 = vmatpush1.msra.mxu0 0.0
    %1172 = vmatprep.subr.mxu0 0.0
    %1173 = vmatpush1.msra.mxu0 0.0
    %1174 = vmatprep.subr.mxu0 0.0
    %1175 = vmatpush1.msra.mxu0 0.0
    %1176 = vmatprep.subr.mxu0 0.0
    %1177 = vmatpush1.msra.mxu0 0.0
    %1178 = vmatprep.subr.mxu0 0.0
    %1179 = vmatpush1.msra.mxu0 0.0
    %1180 = vmatprep.subr.mxu0 0.0
    %1181 = vmatpush1.msra.mxu0 0.0
    %1182 = vmatprep.subr.mxu0 0.0
    %1183 = vmatpush1.msra.mxu0 0.0
    %1184 = vmatprep.subr.mxu0 0.0
    %1185 = vmatpush1.msra.mxu0 0.0
    %1186 = vmatprep.subr.mxu0 0.0
    %1187 = vmatpush1.msra.mxu0 0.0
    %1188 = vmatprep.subr.mxu0 0.0
    %1189 = vmatpush1.msra.mxu0 0.0
    %1190 = vmatprep.subr.mxu0 0.0
    %1191 = vmatpush1.msra.mxu0 0.0
    %1192 = vmatprep.subr.mxu0 0.0
    %1193 = vmatpush1.msra.mxu0 0.0
    %1194 = vmatprep.subr.mxu0 0.0
    %1195 = vmatpush1.msra.mxu0 0.0
    %1196 = vmatprep.subr.mxu0 0.0
    %1197 = vmatpush1.msra.mxu0 0.0
    %1198 = vmatprep.subr.mxu0 0.0
    %1199 = vmatpush1.msra.mxu0 0.0
    %1200 = vmatprep.subr.mxu0 0.0
    %1201 = vmatpush1.msra.mxu0 0.0
    %1202 = vmatprep.subr.mxu0 0.0
    %1203 = vmatpush1.msra.mxu0 0.0
    %1204 = vmatprep.subr.mxu0 0.0
    %1205 = vmatpush1.msra.mxu0 0.0
    %1206 = vmatprep.subr.mxu0 0.0
    %1207 = vmatpush1.msra.mxu0 0.0
    %1208 = vmatprep.subr.mxu0 0.0
    %1209 = vmatpush1.msra.mxu0 0.0
    %1210 = vmatprep.subr.mxu0 0.0
    %1211 = vmatpush1.msra.mxu0 0.0
    %1212 = vmatprep.subr.mxu0 0.0
    %1213 = vmatpush1.msra.mxu0 0.0
    %1214 = vmatprep.subr.mxu0 0.0
    %1215 = vmatpush1.msra.mxu0 0.0
    %1216 = vmatprep.subr.mxu0 0.0
    %1217 = vmatpush1.msra.mxu0 0.0
    %1218 = vmatprep.subr.mxu0 0.0
    %1219 = vmatpush1.msra.mxu0 0.0
    %1220 = vmatprep.subr.mxu0 0.0
    %1221 = vmatpush1.msra.mxu0 0.0
    %1222 = vmatprep.subr.mxu0 0.0
    %1223 = vmatpush1.msra.mxu0 0.0
    %1224 = vmatprep.subr.mxu0 0.0
    %1225 = vmatpush1.msra.mxu0 0.0
    %1226 = vmatprep.mubr.f32.mxu0 0.0
    %1227 = vmatmul.mubr.f32.gmra.mrb[0].mxu0 %v1160
    %v1228 = vpop.f32.mrb[0].mxu0
    %v1229 = vadd.f32 %v1156, %v1228
    %v1230 = vpop.f32.mrb[0].mxu0
    %1231 = vdwg.mxu0
    %v1232 = vld [vmem:[%s1] sm:$0xff]
    %v1233 = vld [vmem:[%s1 + $0x8] sm:$0xff]
    %v1234 = vlaneseq
    %v1235 = vand.u32 %v1234, 127
    %v1236 = vsub.s32 %v1232, 9
    %v1237 = vsub.s32 %v1233, 9
    %1238 = vset.pattern.permute.xlu0 0
    %1239 = vperm.xlu0 %1238, %v1236
    %v1240 = vpop.permute.xlu0 %1239
    %1241 = vset.pattern.permute.xlu0 0
    %1242 = vperm.xlu0 %1241, %v1237
    %v1243 = vpop.permute.xlu0 %1242
    %vm1244 = vcmp.eq.s32.totalorder %v1235, %v1240
    %vm1245 = vcmp.eq.s32.totalorder %v1235, %v1243
    %v1246 = vsel %vm1244, 1, 0
    %v1247 = vsel %vm1245, 1, 0
    %v1248 = vcvt.s32.f32 %v1246
    %v1249 = vcvt.s32.f32 %v1247
    %v1250 = vsub.s32 %v1232, 1
    %v1251 = vsub.s32 %v1233, 1
    %1252 = vset.pattern.permute.xlu0 0
    %1253 = vperm.xlu0 %1252, %v1250
    %v1254 = vpop.permute.xlu0 %1253
    %1255 = vset.pattern.permute.xlu0 0
    %1256 = vperm.xlu0 %1255, %v1251
    %v1257 = vpop.permute.xlu0 %1256
    %vm1258 = vcmp.eq.s32.totalorder %v1235, %v1254
    %vm1259 = vcmp.eq.s32.totalorder %v1235, %v1257
    %v1260 = vsel %vm1258, 1, 0
    %v1261 = vsel %vm1259, 1, 0
    %v1262 = vcvt.s32.f32 %v1260
    %v1263 = vcvt.s32.f32 %v1261
    %v1265 = vsel %vm413, %v1248, 0
    %v1268 = vsel %vm413, %v1249, 0
    %1270 = vmatprep.subr.mxu0 0.0
    %1271 = vmatpush1.msra.mxu0 %v1229
    %1272 = vmatprep.subr.mxu0 0.0
    %1273 = vmatpush1.msra.mxu0 0.0
    %1274 = vmatprep.subr.mxu0 0.0
    %1275 = vmatpush1.msra.mxu0 0.0
    %1276 = vmatprep.subr.mxu0 0.0
    %1277 = vmatpush1.msra.mxu0 0.0
    %1278 = vmatprep.subr.mxu0 0.0
    %1279 = vmatpush1.msra.mxu0 0.0
    %1280 = vmatprep.subr.mxu0 0.0
    %1281 = vmatpush1.msra.mxu0 0.0
    %1282 = vmatprep.subr.mxu0 0.0
    %1283 = vmatpush1.msra.mxu0 0.0
    %1284 = vmatprep.subr.mxu0 0.0
    %1285 = vmatpush1.msra.mxu0 0.0
    %1286 = vmatprep.subr.mxu0 0.0
    %1287 = vmatpush1.msra.mxu0 0.0
    %1288 = vmatprep.subr.mxu0 0.0
    %1289 = vmatpush1.msra.mxu0 0.0
    %1290 = vmatprep.subr.mxu0 0.0
    %1291 = vmatpush1.msra.mxu0 0.0
    %1292 = vmatprep.subr.mxu0 0.0
    %1293 = vmatpush1.msra.mxu0 0.0
    %1294 = vmatprep.subr.mxu0 0.0
    %1295 = vmatpush1.msra.mxu0 0.0
    %1296 = vmatprep.subr.mxu0 0.0
    %1297 = vmatpush1.msra.mxu0 0.0
    %1298 = vmatprep.subr.mxu0 0.0
    %1299 = vmatpush1.msra.mxu0 0.0
    %1300 = vmatprep.subr.mxu0 0.0
    %1301 = vmatpush1.msra.mxu0 0.0
    %1302 = vmatprep.subr.mxu0 0.0
    %1303 = vmatpush1.msra.mxu0 0.0
    %1304 = vmatprep.subr.mxu0 0.0
    %1305 = vmatpush1.msra.mxu0 0.0
    %1306 = vmatprep.subr.mxu0 0.0
    %1307 = vmatpush1.msra.mxu0 0.0
    %1308 = vmatprep.subr.mxu0 0.0
    %1309 = vmatpush1.msra.mxu0 0.0
    %1310 = vmatprep.subr.mxu0 0.0
    %1311 = vmatpush1.msra.mxu0 0.0
    %1312 = vmatprep.subr.mxu0 0.0
    %1313 = vmatpush1.msra.mxu0 0.0
    %1314 = vmatprep.subr.mxu0 0.0
    %1315 = vmatpush1.msra.mxu0 0.0
    %1316 = vmatprep.subr.mxu0 0.0
    %1317 = vmatpush1.msra.mxu0 0.0
    %1318 = vmatprep.subr.mxu0 0.0
    %1319 = vmatpush1.msra.mxu0 0.0
    %1320 = vmatprep.subr.mxu0 0.0
    %1321 = vmatpush1.msra.mxu0 0.0
    %1322 = vmatprep.subr.mxu0 0.0
    %1323 = vmatpush1.msra.mxu0 0.0
    %1324 = vmatprep.subr.mxu0 0.0
    %1325 = vmatpush1.msra.mxu0 0.0
    %1326 = vmatprep.subr.mxu0 0.0
    %1327 = vmatpush1.msra.mxu0 0.0
    %1328 = vmatprep.subr.mxu0 0.0
    %1329 = vmatpush1.msra.mxu0 0.0
    %1330 = vmatprep.subr.mxu0 0.0
    %1331 = vmatpush1.msra.mxu0 0.0
    %1332 = vmatprep.subr.mxu0 0.0
    %1333 = vmatpush1.msra.mxu0 0.0
    %1334 = vmatprep.mubr.f32.mxu0 0.0
    %1335 = vmatmul.mubr.f32.gmra.mrb[0].mxu0 %v1265
    %v1336 = vpop.f32.mrb[0].mxu0
    %v1337 = vadd.f32 0.0, %v1336
    %v1338 = vpop.f32.mrb[0].mxu0
    %1339 = vmatprep.mubr.f32.mxu0 0.0
    %1340 = vmatmul.mubr.f32.gmra.mrb[0].mxu0 %v1268
    %v1341 = vpop.f32.mrb[0].mxu0
    %v1342 = vadd.f32 0.0, %v1341
    %v1343 = vpop.f32.mrb[0].mxu0
    %1344 = vdwg.mxu0
    %v1346 = vsel %vm413, %v1262, 0
    %v1349 = vsel %vm413, %v1263, 0
    %1351 = vmatprep.subr.mxu0 0.0
    %1352 = vmatpush1.msra.mxu0 %v1229
    %1353 = vmatprep.subr.mxu0 0.0
    %1354 = vmatpush1.msra.mxu0 0.0
    %1355 = vmatprep.subr.mxu0 0.0
    %1356 = vmatpush1.msra.mxu0 0.0
    %1357 = vmatprep.subr.mxu0 0.0
    %1358 = vmatpush1.msra.mxu0 0.0
    %1359 = vmatprep.subr.mxu0 0.0
    %1360 = vmatpush1.msra.mxu0 0.0
    %1361 = vmatprep.subr.mxu0 0.0
    %1362 = vmatpush1.msra.mxu0 0.0
    %1363 = vmatprep.subr.mxu0 0.0
    %1364 = vmatpush1.msra.mxu0 0.0
    %1365 = vmatprep.subr.mxu0 0.0
    %1366 = vmatpush1.msra.mxu0 0.0
    %1367 = vmatprep.subr.mxu0 0.0
    %1368 = vmatpush1.msra.mxu0 0.0
    %1369 = vmatprep.subr.mxu0 0.0
    %1370 = vmatpush1.msra.mxu0 0.0
    %1371 = vmatprep.subr.mxu0 0.0
    %1372 = vmatpush1.msra.mxu0 0.0
    %1373 = vmatprep.subr.mxu0 0.0
    %1374 = vmatpush1.msra.mxu0 0.0
    %1375 = vmatprep.subr.mxu0 0.0
    %1376 = vmatpush1.msra.mxu0 0.0
    %1377 = vmatprep.subr.mxu0 0.0
    %1378 = vmatpush1.msra.mxu0 0.0
    %1379 = vmatprep.subr.mxu0 0.0
    %1380 = vmatpush1.msra.mxu0 0.0
    %1381 = vmatprep.subr.mxu0 0.0
    %1382 = vmatpush1.msra.mxu0 0.0
    %1383 = vmatprep.subr.mxu0 0.0
    %1384 = vmatpush1.msra.mxu0 0.0
    %1385 = vmatprep.subr.mxu0 0.0
    %1386 = vmatpush1.msra.mxu0 0.0
    %1387 = vmatprep.subr.mxu0 0.0
    %1388 = vmatpush1.msra.mxu0 0.0
    %1389 = vmatprep.subr.mxu0 0.0
    %1390 = vmatpush1.msra.mxu0 0.0
    %1391 = vmatprep.subr.mxu0 0.0
    %1392 = vmatpush1.msra.mxu0 0.0
    %1393 = vmatprep.subr.mxu0 0.0
    %1394 = vmatpush1.msra.mxu0 0.0
    %1395 = vmatprep.subr.mxu0 0.0
    %1396 = vmatpush1.msra.mxu0 0.0
    %1397 = vmatprep.subr.mxu0 0.0
    %1398 = vmatpush1.msra.mxu0 0.0
    %1399 = vmatprep.subr.mxu0 0.0
    %1400 = vmatpush1.msra.mxu0 0.0
    %1401 = vmatprep.subr.mxu0 0.0
    %1402 = vmatpush1.msra.mxu0 0.0
    %1403 = vmatprep.subr.mxu0 0.0
    %1404 = vmatpush1.msra.mxu0 0.0
    %1405 = vmatprep.subr.mxu0 0.0
    %1406 = vmatpush1.msra.mxu0 0.0
    %1407 = vmatprep.subr.mxu0 0.0
    %1408 = vmatpush1.msra.mxu0 0.0
    %1409 = vmatprep.subr.mxu0 0.0
    %1410 = vmatpush1.msra.mxu0 0.0
    %1411 = vmatprep.subr.mxu0 0.0
    %1412 = vmatpush1.msra.mxu0 0.0
    %1413 = vmatprep.subr.mxu0 0.0
    %1414 = vmatpush1.msra.mxu0 0.0
    %1415 = vmatprep.mubr.f32.mxu0 0.0
    %1416 = vmatmul.mubr.f32.gmra.mrb[0].mxu0 %v1346
    %v1417 = vpop.f32.mrb[0].mxu0
    %v1418 = vadd.f32 0.0, %v1417
    %v1419 = vpop.f32.mrb[0].mxu0
    %1420 = vmatprep.mubr.f32.mxu0 0.0
    %1421 = vmatmul.mubr.f32.gmra.mrb[0].mxu0 %v1349
    %v1422 = vpop.f32.mrb[0].mxu0
    %v1423 = vadd.f32 0.0, %v1422
    %v1424 = vpop.f32.mrb[0].mxu0
    %1425 = vdwg.mxu0
    %v1426 = vld [vmem:[%s11] sm:$0xff]
    %v1427 = vld [vmem:[%s11 + $0x8] sm:$0xff]
    %v1428 = vld [vmem:[%s11 + $0x10] sm:$0xff]
    %v1429 = vld [vmem:[%s11 + $0x18] sm:$0xff]
    %v1431 = vsel %vm73, %v1418, 0
    %v1434 = vsel %vm73, %v1423, 0
    %1436 = vmatprep.subr.mxu0 0.0
    %1437 = vmatpush1.msra.mxu0 %v1428
    %1438 = vmatprep.subr.mxu0 0.0
    %1439 = vmatpush1.msra.mxu0 %v1429
    %1440 = vmatprep.subr.mxu0 0.0
    %1441 = vmatpush1.msra.mxu0 0.0
    %1442 = vmatprep.subr.mxu0 0.0
    %1443 = vmatpush1.msra.mxu0 0.0
    %1444 = vmatprep.subr.mxu0 0.0
    %1445 = vmatpush1.msra.mxu0 0.0
    %1446 = vmatprep.subr.mxu0 0.0
    %1447 = vmatpush1.msra.mxu0 0.0
    %1448 = vmatprep.subr.mxu0 0.0
    %1449 = vmatpush1.msra.mxu0 0.0
    %1450 = vmatprep.subr.mxu0 0.0
    %1451 = vmatpush1.msra.mxu0 0.0
    %1452 = vmatprep.subr.mxu0 0.0
    %1453 = vmatpush1.msra.mxu0 0.0
    %1454 = vmatprep.subr.mxu0 0.0
    %1455 = vmatpush1.msra.mxu0 0.0
    %1456 = vmatprep.subr.mxu0 0.0
    %1457 = vmatpush1.msra.mxu0 0.0
    %1458 = vmatprep.subr.mxu0 0.0
    %1459 = vmatpush1.msra.mxu0 0.0
    %1460 = vmatprep.subr.mxu0 0.0
    %1461 = vmatpush1.msra.mxu0 0.0
    %1462 = vmatprep.subr.mxu0 0.0
    %1463 = vmatpush1.msra.mxu0 0.0
    %1464 = vmatprep.subr.mxu0 0.0
    %1465 = vmatpush1.msra.mxu0 0.0
    %1466 = vmatprep.subr.mxu0 0.0
    %1467 = vmatpush1.msra.mxu0 0.0
    %1468 = vmatprep.subr.mxu0 0.0
    %1469 = vmatpush1.msra.mxu0 0.0
    %1470 = vmatprep.subr.mxu0 0.0
    %1471 = vmatpush1.msra.mxu0 0.0
    %1472 = vmatprep.subr.mxu0 0.0
    %1473 = vmatpush1.msra.mxu0 0.0
    %1474 = vmatprep.subr.mxu0 0.0
    %1475 = vmatpush1.msra.mxu0 0.0
    %1476 = vmatprep.subr.mxu0 0.0
    %1477 = vmatpush1.msra.mxu0 0.0
    %1478 = vmatprep.subr.mxu0 0.0
    %1479 = vmatpush1.msra.mxu0 0.0
    %1480 = vmatprep.subr.mxu0 0.0
    %1481 = vmatpush1.msra.mxu0 0.0
    %1482 = vmatprep.subr.mxu0 0.0
    %1483 = vmatpush1.msra.mxu0 0.0
    %1484 = vmatprep.subr.mxu0 0.0
    %1485 = vmatpush1.msra.mxu0 0.0
    %1486 = vmatprep.subr.mxu0 0.0
    %1487 = vmatpush1.msra.mxu0 0.0
    %1488 = vmatprep.subr.mxu0 0.0
    %1489 = vmatpush1.msra.mxu0 0.0
    %1490 = vmatprep.subr.mxu0 0.0
    %1491 = vmatpush1.msra.mxu0 0.0
    %1492 = vmatprep.subr.mxu0 0.0
    %1493 = vmatpush1.msra.mxu0 0.0
    %1494 = vmatprep.subr.mxu0 0.0
    %1495 = vmatpush1.msra.mxu0 0.0
    %1496 = vmatprep.subr.mxu0 0.0
    %1497 = vmatpush1.msra.mxu0 0.0
    %1498 = vmatprep.subr.mxu0 0.0
    %1499 = vmatpush1.msra.mxu0 0.0
    %1500 = vmatprep.mubr.f32.mxu0 0.0
    %1501 = vmatmul.mubr.f32.gmra.mrb[0].mxu0 %v1431
    %v1502 = vpop.f32.mrb[0].mxu0
    %v1503 = vadd.f32 0.0, %v1502
    %v1504 = vpop.f32.mrb[0].mxu0
    %1505 = vmatprep.mubr.f32.mxu0 0.0
    %1506 = vmatmul.mubr.f32.gmra.mrb[0].mxu0 %v1434
    %v1507 = vpop.f32.mrb[0].mxu0
    %v1508 = vadd.f32 0.0, %v1507
    %v1509 = vpop.f32.mrb[0].mxu0
    %1510 = vdwg.mxu0
    %v1512 = vsel %vm73, %v1337, 0
    %v1515 = vsel %vm73, %v1342, 0
    %1517 = vmatprep.subr.mxu0 0.0
    %1518 = vmatpush1.msra.mxu0 %v1426
    %1519 = vmatprep.subr.mxu0 0.0
    %1520 = vmatpush1.msra.mxu0 %v1427
    %1521 = vmatprep.subr.mxu0 0.0
    %1522 = vmatpush1.msra.mxu0 0.0
    %1523 = vmatprep.subr.mxu0 0.0
    %1524 = vmatpush1.msra.mxu0 0.0
    %1525 = vmatprep.subr.mxu0 0.0
    %1526 = vmatpush1.msra.mxu0 0.0
    %1527 = vmatprep.subr.mxu0 0.0
    %1528 = vmatpush1.msra.mxu0 0.0
    %1529 = vmatprep.subr.mxu0 0.0
    %1530 = vmatpush1.msra.mxu0 0.0
    %1531 = vmatprep.subr.mxu0 0.0
    %1532 = vmatpush1.msra.mxu0 0.0
    %1533 = vmatprep.subr.mxu0 0.0
    %1534 = vmatpush1.msra.mxu0 0.0
    %1535 = vmatprep.subr.mxu0 0.0
    %1536 = vmatpush1.msra.mxu0 0.0
    %1537 = vmatprep.subr.mxu0 0.0
    %1538 = vmatpush1.msra.mxu0 0.0
    %1539 = vmatprep.subr.mxu0 0.0
    %1540 = vmatpush1.msra.mxu0 0.0
    %1541 = vmatprep.subr.mxu0 0.0
    %1542 = vmatpush1.msra.mxu0 0.0
    %1543 = vmatprep.subr.mxu0 0.0
    %1544 = vmatpush1.msra.mxu0 0.0
    %1545 = vmatprep.subr.mxu0 0.0
    %1546 = vmatpush1.msra.mxu0 0.0
    %1547 = vmatprep.subr.mxu0 0.0
    %1548 = vmatpush1.msra.mxu0 0.0
    %1549 = vmatprep.subr.mxu0 0.0
    %1550 = vmatpush1.msra.mxu0 0.0
    %1551 = vmatprep.subr.mxu0 0.0
    %1552 = vmatpush1.msra.mxu0 0.0
    %1553 = vmatprep.subr.mxu0 0.0
    %1554 = vmatpush1.msra.mxu0 0.0
    %1555 = vmatprep.subr.mxu0 0.0
    %1556 = vmatpush1.msra.mxu0 0.0
    %1557 = vmatprep.subr.mxu0 0.0
    %1558 = vmatpush1.msra.mxu0 0.0
    %1559 = vmatprep.subr.mxu0 0.0
    %1560 = vmatpush1.msra.mxu0 0.0
    %1561 = vmatprep.subr.mxu0 0.0
    %1562 = vmatpush1.msra.mxu0 0.0
    %1563 = vmatprep.subr.mxu0 0.0
    %1564 = vmatpush1.msra.mxu0 0.0
    %1565 = vmatprep.subr.mxu0 0.0
    %1566 = vmatpush1.msra.mxu0 0.0
    %1567 = vmatprep.subr.mxu0 0.0
    %1568 = vmatpush1.msra.mxu0 0.0
    %1569 = vmatprep.subr.mxu0 0.0
    %1570 = vmatpush1.msra.mxu0 0.0
    %1571 = vmatprep.subr.mxu0 0.0
    %1572 = vmatpush1.msra.mxu0 0.0
    %1573 = vmatprep.subr.mxu0 0.0
    %1574 = vmatpush1.msra.mxu0 0.0
    %1575 = vmatprep.subr.mxu0 0.0
    %1576 = vmatpush1.msra.mxu0 0.0
    %1577 = vmatprep.subr.mxu0 0.0
    %1578 = vmatpush1.msra.mxu0 0.0
    %1579 = vmatprep.subr.mxu0 0.0
    %1580 = vmatpush1.msra.mxu0 0.0
    %1581 = vmatprep.mubr.f32.mxu0 0.0
    %1582 = vmatmul.mubr.f32.gmra.mrb[0].mxu0 %v1512
    %v1583 = vpop.f32.mrb[0].mxu0
    %v1584 = vadd.f32 %v1503, %v1583
    %v1585 = vpop.f32.mrb[0].mxu0
    %1586 = vmatprep.mubr.f32.mxu0 0.0
    %1587 = vmatmul.mubr.f32.gmra.mrb[0].mxu0 %v1515
    %v1588 = vpop.f32.mrb[0].mxu0
    %v1589 = vadd.f32 %v1508, %v1588
    %v1590 = vpop.f32.mrb[0].mxu0
    %1591 = vdwg.mxu0
    %v1592 = vld [vmem:[%s13] sm:$0x1]
    %v1594 = vlaneseq
    %v1595 = vshrl.u32 %v1594, 7
    %v1596 = vsub.s32 0, %v1595
    %v1597 = vrot.slane %v1592, %v1596
    %v1599 = vadd.f32 %v1584, %v1597
    %v1600 = vadd.f32 %v1589, %v1597
    %v1601 = vld [vmem:[%s12] sm:$0xff]
    %v1602 = vld [vmem:[%s12 + $0x8] sm:$0xff]
    %v1603 = vld [vmem:[%s12 + $0x10] sm:$0xff]
    %v1604 = vld [vmem:[%s12 + $0x18] sm:$0xff]
    %v1605 = vld [vmem:[%s10] sm:$0xff]
    %v1606 = vld [vmem:[%s10 + $0x8] sm:$0x3f]
    %vm1607 = vcmask 261120
    %v1609 = vsel %vm1607, 0.0, 0
    %1611 = vmatprep.subr.mxu0 0.0
    %1612 = vmatpush1.msra.mxu0 %v1601
    %1613 = vmatprep.subr.mxu0 0.0
    %1614 = vmatpush1.msra.mxu0 %v1602
    %1615 = vmatprep.subr.mxu0 0.0
    %1616 = vmatpush1.msra.mxu0 %v1603
    %1617 = vmatprep.subr.mxu0 0.0
    %1618 = vmatpush1.msra.mxu0 %v1604
    %1619 = vmatprep.subr.mxu0 0.0
    %1620 = vmatpush1.msra.mxu0 0.0
    %1621 = vmatprep.subr.mxu0 0.0
    %1622 = vmatpush1.msra.mxu0 0.0
    %1623 = vmatprep.subr.mxu0 0.0
    %1624 = vmatpush1.msra.mxu0 0.0
    %1625 = vmatprep.subr.mxu0 0.0
    %1626 = vmatpush1.msra.mxu0 0.0
    %1627 = vmatprep.subr.mxu0 0.0
    %1628 = vmatpush1.msra.mxu0 0.0
    %1629 = vmatprep.subr.mxu0 0.0
    %1630 = vmatpush1.msra.mxu0 0.0
    %1631 = vmatprep.subr.mxu0 0.0
    %1632 = vmatpush1.msra.mxu0 0.0
    %1633 = vmatprep.subr.mxu0 0.0
    %1634 = vmatpush1.msra.mxu0 0.0
    %1635 = vmatprep.subr.mxu0 0.0
    %1636 = vmatpush1.msra.mxu0 0.0
    %1637 = vmatprep.subr.mxu0 0.0
    %1638 = vmatpush1.msra.mxu0 0.0
    %1639 = vmatprep.subr.mxu0 0.0
    %1640 = vmatpush1.msra.mxu0 0.0
    %1641 = vmatprep.subr.mxu0 0.0
    %1642 = vmatpush1.msra.mxu0 0.0
    %1643 = vmatprep.subr.mxu0 0.0
    %1644 = vmatpush1.msra.mxu0 0.0
    %1645 = vmatprep.subr.mxu0 0.0
    %1646 = vmatpush1.msra.mxu0 0.0
    %1647 = vmatprep.subr.mxu0 0.0
    %1648 = vmatpush1.msra.mxu0 0.0
    %1649 = vmatprep.subr.mxu0 0.0
    %1650 = vmatpush1.msra.mxu0 0.0
    %1651 = vmatprep.subr.mxu0 0.0
    %1652 = vmatpush1.msra.mxu0 0.0
    %1653 = vmatprep.subr.mxu0 0.0
    %1654 = vmatpush1.msra.mxu0 0.0
    %1655 = vmatprep.subr.mxu0 0.0
    %1656 = vmatpush1.msra.mxu0 0.0
    %1657 = vmatprep.subr.mxu0 0.0
    %1658 = vmatpush1.msra.mxu0 0.0
    %1659 = vmatprep.subr.mxu0 0.0
    %1660 = vmatpush1.msra.mxu0 0.0
    %1661 = vmatprep.subr.mxu0 0.0
    %1662 = vmatpush1.msra.mxu0 0.0
    %1663 = vmatprep.subr.mxu0 0.0
    %1664 = vmatpush1.msra.mxu0 0.0
    %1665 = vmatprep.subr.mxu0 0.0
    %1666 = vmatpush1.msra.mxu0 0.0
    %1667 = vmatprep.subr.mxu0 0.0
    %1668 = vmatpush1.msra.mxu0 0.0
    %1669 = vmatprep.subr.mxu0 0.0
    %1670 = vmatpush1.msra.mxu0 0.0
    %1671 = vmatprep.subr.mxu0 0.0
    %1672 = vmatpush1.msra.mxu0 0.0
    %1673 = vmatprep.subr.mxu0 0.0
    %1674 = vmatpush1.msra.mxu0 0.0
    %1675 = vmatprep.mubr.f32.mxu0 0.0
    %1676 = vmatmul.mubr.f32.gmra.mrb[0].mxu0 %v1609
    %v1677 = vpop.f32.mrb[0].mxu0
    %v1678 = vadd.f32 0.0, %v1677
    %v1679 = vpop.f32.mrb[0].mxu0
    %1680 = vdwg.mxu0
    %v1681 = vadd.f32 %v1599, %v1678
    %v1682 = vxor.u32 %v1681, 2147483648
    %v1683 = vmul.f32 %v1682, 1.442695
    %v1684 = vpow.pop %v1683
    %v1685 = vadd.f32 %v1684, 1.0
    %v1686 = vrcp.pop %v1685
    %v1687 = vmul.f32 1.0, %v1686
    %v1688 = vtanh.pop %v1681
    %v1689 = vmul.f32 %v1687, 0.0
    %1691 = vrot.lane.b32.xlu0 %v1688, 64
    %v1692 = vpop.permute.xlu0 %1691
    %v1694 = vmul.f32 %v1687, %v1692
    %1696 = vrot.lane.b32.xlu0 %v1694, 32
    %v1697 = vpop.permute.xlu0 %1696
    %v1699 = vadd.f32 %v1689, %v1697
    %v1700 = vtanh.pop %v1699
    %1702 = vrot.lane.b32.xlu0 %v1700, 64
    %v1703 = vpop.permute.xlu0 %1702
    %v1705 = vmul.f32 %v1687, %v1703
    %1707 = vrot.lane.b32.xlu0 %v1705, 32
    %v1708 = vpop.permute.xlu0 %1707
    %v1709 = vsel %vm1607, %v1708, 0
    %1711 = vmatprep.subr.mxu0 0.0
    %1712 = vmatpush1.msra.mxu0 %v1601
    %1713 = vmatprep.subr.mxu0 0.0
    %1714 = vmatpush1.msra.mxu0 %v1602
    %1715 = vmatprep.subr.mxu0 0.0
    %1716 = vmatpush1.msra.mxu0 %v1603
    %1717 = vmatprep.subr.mxu0 0.0
    %1718 = vmatpush1.msra.mxu0 %v1604
    %1719 = vmatprep.subr.mxu0 0.0
    %1720 = vmatpush1.msra.mxu0 0.0
    %1721 = vmatprep.subr.mxu0 0.0
    %1722 = vmatpush1.msra.mxu0 0.0
    %1723 = vmatprep.subr.mxu0 0.0
    %1724 = vmatpush1.msra.mxu0 0.0
    %1725 = vmatprep.subr.mxu0 0.0
    %1726 = vmatpush1.msra.mxu0 0.0
    %1727 = vmatprep.subr.mxu0 0.0
    %1728 = vmatpush1.msra.mxu0 0.0
    %1729 = vmatprep.subr.mxu0 0.0
    %1730 = vmatpush1.msra.mxu0 0.0
    %1731 = vmatprep.subr.mxu0 0.0
    %1732 = vmatpush1.msra.mxu0 0.0
    %1733 = vmatprep.subr.mxu0 0.0
    %1734 = vmatpush1.msra.mxu0 0.0
    %1735 = vmatprep.subr.mxu0 0.0
    %1736 = vmatpush1.msra.mxu0 0.0
    %1737 = vmatprep.subr.mxu0 0.0
    %1738 = vmatpush1.msra.mxu0 0.0
    %1739 = vmatprep.subr.mxu0 0.0
    %1740 = vmatpush1.msra.mxu0 0.0
    %1741 = vmatprep.subr.mxu0 0.0
    %1742 = vmatpush1.msra.mxu0 0.0
    %1743 = vmatprep.subr.mxu0 0.0
    %1744 = vmatpush1.msra.mxu0 0.0
    %1745 = vmatprep.subr.mxu0 0.0
    %1746 = vmatpush1.msra.mxu0 0.0
    %1747 = vmatprep.subr.mxu0 0.0
    %1748 = vmatpush1.msra.mxu0 0.0
    %1749 = vmatprep.subr.mxu0 0.0
    %1750 = vmatpush1.msra.mxu0 0.0
    %1751 = vmatprep.subr.mxu0 0.0
    %1752 = vmatpush1.msra.mxu0 0.0
    %1753 = vmatprep.subr.mxu0 0.0
    %1754 = vmatpush1.msra.mxu0 0.0
    %1755 = vmatprep.subr.mxu0 0.0
    %1756 = vmatpush1.msra.mxu0 0.0
    %1757 = vmatprep.subr.mxu0 0.0
    %1758 = vmatpush1.msra.mxu0 0.0
    %1759 = vmatprep.subr.mxu0 0.0
    %1760 = vmatpush1.msra.mxu0 0.0
    %1761 = vmatprep.subr.mxu0 0.0
    %1762 = vmatpush1.msra.mxu0 0.0
    %1763 = vmatprep.subr.mxu0 0.0
    %1764 = vmatpush1.msra.mxu0 0.0
    %1765 = vmatprep.subr.mxu0 0.0
    %1766 = vmatpush1.msra.mxu0 0.0
    %1767 = vmatprep.subr.mxu0 0.0
    %1768 = vmatpush1.msra.mxu0 0.0
    %1769 = vmatprep.subr.mxu0 0.0
    %1770 = vmatpush1.msra.mxu0 0.0
    %1771 = vmatprep.subr.mxu0 0.0
    %1772 = vmatpush1.msra.mxu0 0.0
    %1773 = vmatprep.subr.mxu0 0.0
    %1774 = vmatpush1.msra.mxu0 0.0
    %1775 = vmatprep.mubr.f32.mxu0 0.0
    %1776 = vmatmul.mubr.f32.gmra.mrb[0].mxu0 %v1709
    %v1777 = vpop.f32.mrb[0].mxu0
    %v1778 = vadd.f32 0.0, %v1777
    %v1779 = vpop.f32.mrb[0].mxu0
    %1780 = vdwg.mxu0
    %v1782 = vrot.slane %v1778, 6
    %v1784 = vadd.f32 %v1599, %v1782
    %v1785 = vxor.u32 %v1784, 2147483648
    %v1786 = vmul.f32 %v1785, 1.442695
    %v1787 = vpow.pop %v1786
    %v1788 = vadd.f32 %v1787, 1.0
    %v1789 = vrcp.pop %v1788
    %v1790 = vmul.f32 1.0, %v1789
    %v1791 = vtanh.pop %v1784
    %v1793 = vrot.slane %v1699, 6
    %v1795 = vmul.f32 %v1790, %v1793
    %1797 = vrot.lane.b32.xlu0 %v1791, 64
    %v1798 = vpop.permute.xlu0 %1797
    %v1800 = vmul.f32 %v1790, %v1798
    %1802 = vrot.lane.b32.xlu0 %v1800, 32
    %v1803 = vpop.permute.xlu0 %1802
    %v1805 = vadd.f32 %v1795, %v1803
    %v1806 = vtanh.pop %v1805
    %1808 = vrot.lane.b32.xlu0 %v1806, 64
    %v1809 = vpop.permute.xlu0 %1808
    %v1811 = vmul.f32 %v1790, %v1809
    %1814 = vrot.lane.b32.xlu0 %v1605, 126
    %v1815 = vpop.permute.xlu0 %1814
    %1816 = vrot.lane.b32.xlu0 %v1606, 126
    %v1817 = vpop.permute.xlu0 %1816
    %v1819 = vrot.slane %v1811, 2
    %1820 = vrot.lane.b32.xlu0 %v1819, 32
    %v1821 = vpop.permute.xlu0 %1820
    %vm1822 = vcmask 15360
    %v1823 = vsel %vm1822, %v1815, 0
    %v1825 = vsel %vm1822, %v1817, 0
    %vm1827 = vcmask 1041408
    %v1828 = vsel %vm1827, %v1821, 0
    %1830 = vmatprep.subr.mxu0 0.0
    %1831 = vmatpush1.msra.mxu0 %v1828
    %1832 = vmatprep.subr.mxu0 0.0
    %1833 = vmatpush1.msra.mxu0 0.0
    %1834 = vmatprep.subr.mxu0 0.0
    %1835 = vmatpush1.msra.mxu0 0.0
    %1836 = vmatprep.subr.mxu0 0.0
    %1837 = vmatpush1.msra.mxu0 0.0
    %1838 = vmatprep.subr.mxu0 0.0
    %1839 = vmatpush1.msra.mxu0 0.0
    %1840 = vmatprep.subr.mxu0 0.0
    %1841 = vmatpush1.msra.mxu0 0.0
    %1842 = vmatprep.subr.mxu0 0.0
    %1843 = vmatpush1.msra.mxu0 0.0
    %1844 = vmatprep.subr.mxu0 0.0
    %1845 = vmatpush1.msra.mxu0 0.0
    %1846 = vmatprep.subr.mxu0 0.0
    %1847 = vmatpush1.msra.mxu0 0.0
    %1848 = vmatprep.subr.mxu0 0.0
    %1849 = vmatpush1.msra.mxu0 0.0
    %1850 = vmatprep.subr.mxu0 0.0
    %1851 = vmatpush1.msra.mxu0 0.0
    %1852 = vmatprep.subr.mxu0 0.0
    %1853 = vmatpush1.msra.mxu0 0.0
    %1854 = vmatprep.subr.mxu0 0.0
    %1855 = vmatpush1.msra.mxu0 0.0
    %1856 = vmatprep.subr.mxu0 0.0
    %1857 = vmatpush1.msra.mxu0 0.0
    %1858 = vmatprep.subr.mxu0 0.0
    %1859 = vmatpush1.msra.mxu0 0.0
    %1860 = vmatprep.subr.mxu0 0.0
    %1861 = vmatpush1.msra.mxu0 0.0
    %1862 = vmatprep.subr.mxu0 0.0
    %1863 = vmatpush1.msra.mxu0 0.0
    %1864 = vmatprep.subr.mxu0 0.0
    %1865 = vmatpush1.msra.mxu0 0.0
    %1866 = vmatprep.subr.mxu0 0.0
    %1867 = vmatpush1.msra.mxu0 0.0
    %1868 = vmatprep.subr.mxu0 0.0
    %1869 = vmatpush1.msra.mxu0 0.0
    %1870 = vmatprep.subr.mxu0 0.0
    %1871 = vmatpush1.msra.mxu0 0.0
    %1872 = vmatprep.subr.mxu0 0.0
    %1873 = vmatpush1.msra.mxu0 0.0
    %1874 = vmatprep.subr.mxu0 0.0
    %1875 = vmatpush1.msra.mxu0 0.0
    %1876 = vmatprep.subr.mxu0 0.0
    %1877 = vmatpush1.msra.mxu0 0.0
    %1878 = vmatprep.subr.mxu0 0.0
    %1879 = vmatpush1.msra.mxu0 0.0
    %1880 = vmatprep.subr.mxu0 0.0
    %1881 = vmatpush1.msra.mxu0 0.0
    %1882 = vmatprep.subr.mxu0 0.0
    %1883 = vmatpush1.msra.mxu0 0.0
    %1884 = vmatprep.subr.mxu0 0.0
    %1885 = vmatpush1.msra.mxu0 0.0
    %1886 = vmatprep.subr.mxu0 0.0
    %1887 = vmatpush1.msra.mxu0 0.0
    %1888 = vmatprep.subr.mxu0 0.0
    %1889 = vmatpush1.msra.mxu0 0.0
    %1890 = vmatprep.subr.mxu0 0.0
    %1891 = vmatpush1.msra.mxu0 0.0
    %1892 = vmatprep.subr.mxu0 0.0
    %1893 = vmatpush1.msra.mxu0 0.0
    %1894 = vmatprep.mubr.f32.mxu0 0.0
    %1895 = vmatmul.mubr.f32.gmra.mrb[0].mxu0 %v1823
    %v1896 = vpop.f32.mrb[0].mxu0
    %v1897 = vadd.f32 0.0, %v1896
    %v1898 = vpop.f32.mrb[0].mxu0
    %1899 = vmatprep.mubr.f32.mxu0 0.0
    %1900 = vmatmul.mubr.f32.gmra.mrb[0].mxu0 %v1825
    %v1901 = vpop.f32.mrb[0].mxu0
    %v1902 = vadd.f32 0.0, %v1901
    %v1903 = vpop.f32.mrb[0].mxu0
    %1904 = vdwg.mxu0
    %v1905 = vsel %vm1822, %v1605, 0
    %v1907 = vsel %vm1822, %v1606, 0
    %v1909 = vsel %vm1827, %v1708, 0
    %1911 = vmatprep.subr.mxu0 0.0
    %1912 = vmatpush1.msra.mxu0 %v1909
    %1913 = vmatprep.subr.mxu0 0.0
    %1914 = vmatpush1.msra.mxu0 0.0
    %1915 = vmatprep.subr.mxu0 0.0
    %1916 = vmatpush1.msra.mxu0 0.0
    %1917 = vmatprep.subr.mxu0 0.0
    %1918 = vmatpush1.msra.mxu0 0.0
    %1919 = vmatprep.subr.mxu0 0.0
    %1920 = vmatpush1.msra.mxu0 0.0
    %1921 = vmatprep.subr.mxu0 0.0
    %1922 = vmatpush1.msra.mxu0 0.0
    %1923 = vmatprep.subr.mxu0 0.0
    %1924 = vmatpush1.msra.mxu0 0.0
    %1925 = vmatprep.subr.mxu0 0.0
    %1926 = vmatpush1.msra.mxu0 0.0
    %1927 = vmatprep.subr.mxu0 0.0
    %1928 = vmatpush1.msra.mxu0 0.0
    %1929 = vmatprep.subr.mxu0 0.0
    %1930 = vmatpush1.msra.mxu0 0.0
    %1931 = vmatprep.subr.mxu0 0.0
    %1932 = vmatpush1.msra.mxu0 0.0
    %1933 = vmatprep.subr.mxu0 0.0
    %1934 = vmatpush1.msra.mxu0 0.0
    %1935 = vmatprep.subr.mxu0 0.0
    %1936 = vmatpush1.msra.mxu0 0.0
    %1937 = vmatprep.subr.mxu0 0.0
    %1938 = vmatpush1.msra.mxu0 0.0
    %1939 = vmatprep.subr.mxu0 0.0
    %1940 = vmatpush1.msra.mxu0 0.0
    %1941 = vmatprep.subr.mxu0 0.0
    %1942 = vmatpush1.msra.mxu0 0.0
    %1943 = vmatprep.subr.mxu0 0.0
    %1944 = vmatpush1.msra.mxu0 0.0
    %1945 = vmatprep.subr.mxu0 0.0
    %1946 = vmatpush1.msra.mxu0 0.0
    %1947 = vmatprep.subr.mxu0 0.0
    %1948 = vmatpush1.msra.mxu0 0.0
    %1949 = vmatprep.subr.mxu0 0.0
    %1950 = vmatpush1.msra.mxu0 0.0
    %1951 = vmatprep.subr.mxu0 0.0
    %1952 = vmatpush1.msra.mxu0 0.0
    %1953 = vmatprep.subr.mxu0 0.0
    %1954 = vmatpush1.msra.mxu0 0.0
    %1955 = vmatprep.subr.mxu0 0.0
    %1956 = vmatpush1.msra.mxu0 0.0
    %1957 = vmatprep.subr.mxu0 0.0
    %1958 = vmatpush1.msra.mxu0 0.0
    %1959 = vmatprep.subr.mxu0 0.0
    %1960 = vmatpush1.msra.mxu0 0.0
    %1961 = vmatprep.subr.mxu0 0.0
    %1962 = vmatpush1.msra.mxu0 0.0
    %1963 = vmatprep.subr.mxu0 0.0
    %1964 = vmatpush1.msra.mxu0 0.0
    %1965 = vmatprep.subr.mxu0 0.0
    %1966 = vmatpush1.msra.mxu0 0.0
    %1967 = vmatprep.subr.mxu0 0.0
    %1968 = vmatpush1.msra.mxu0 0.0
    %1969 = vmatprep.subr.mxu0 0.0
    %1970 = vmatpush1.msra.mxu0 0.0
    %1971 = vmatprep.subr.mxu0 0.0
    %1972 = vmatpush1.msra.mxu0 0.0
    %1973 = vmatprep.subr.mxu0 0.0
    %1974 = vmatpush1.msra.mxu0 0.0
    %1975 = vmatprep.mubr.f32.mxu0 0.0
    %1976 = vmatmul.mubr.f32.gmra.mrb[0].mxu0 %v1905
    %v1977 = vpop.f32.mrb[0].mxu0
    %v1978 = vadd.f32 %v1897, %v1977
    %v1979 = vpop.f32.mrb[0].mxu0
    %1980 = vmatprep.mubr.f32.mxu0 0.0
    %1981 = vmatmul.mubr.f32.gmra.mrb[0].mxu0 %v1907
    %v1982 = vpop.f32.mrb[0].mxu0
    %v1983 = vadd.f32 %v1902, %v1982
    %v1984 = vpop.f32.mrb[0].mxu0
    %1985 = vdwg.mxu0
    %v1986 = vsel %vm1607, %v1821, 0
    %1988 = vmatprep.subr.mxu0 0.0
    %1989 = vmatpush1.msra.mxu0 %v1601
    %1990 = vmatprep.subr.mxu0 0.0
    %1991 = vmatpush1.msra.mxu0 %v1602
    %1992 = vmatprep.subr.mxu0 0.0
    %1993 = vmatpush1.msra.mxu0 %v1603
    %1994 = vmatprep.subr.mxu0 0.0
    %1995 = vmatpush1.msra.mxu0 %v1604
    %1996 = vmatprep.subr.mxu0 0.0
    %1997 = vmatpush1.msra.mxu0 0.0
    %1998 = vmatprep.subr.mxu0 0.0
    %1999 = vmatpush1.msra.mxu0 0.0
    %2000 = vmatprep.subr.mxu0 0.0
    %2001 = vmatpush1.msra.mxu0 0.0
    %2002 = vmatprep.subr.mxu0 0.0
    %2003 = vmatpush1.msra.mxu0 0.0
    %2004 = vmatprep.subr.mxu0 0.0
    %2005 = vmatpush1.msra.mxu0 0.0
    %2006 = vmatprep.subr.mxu0 0.0
    %2007 = vmatpush1.msra.mxu0 0.0
    %2008 = vmatprep.subr.mxu0 0.0
    %2009 = vmatpush1.msra.mxu0 0.0
    %2010 = vmatprep.subr.mxu0 0.0
    %2011 = vmatpush1.msra.mxu0 0.0
    %2012 = vmatprep.subr.mxu0 0.0
    %2013 = vmatpush1.msra.mxu0 0.0
    %2014 = vmatprep.subr.mxu0 0.0
    %2015 = vmatpush1.msra.mxu0 0.0
    %2016 = vmatprep.subr.mxu0 0.0
    %2017 = vmatpush1.msra.mxu0 0.0
    %2018 = vmatprep.subr.mxu0 0.0
    %2019 = vmatpush1.msra.mxu0 0.0
    %2020 = vmatprep.subr.mxu0 0.0
    %2021 = vmatpush1.msra.mxu0 0.0
    %2022 = vmatprep.subr.mxu0 0.0
    %2023 = vmatpush1.msra.mxu0 0.0
    %2024 = vmatprep.subr.mxu0 0.0
    %2025 = vmatpush1.msra.mxu0 0.0
    %2026 = vmatprep.subr.mxu0 0.0
    %2027 = vmatpush1.msra.mxu0 0.0
    %2028 = vmatprep.subr.mxu0 0.0
    %2029 = vmatpush1.msra.mxu0 0.0
    %2030 = vmatprep.subr.mxu0 0.0
    %2031 = vmatpush1.msra.mxu0 0.0
    %2032 = vmatprep.subr.mxu0 0.0
    %2033 = vmatpush1.msra.mxu0 0.0
    %2034 = vmatprep.subr.mxu0 0.0
    %2035 = vmatpush1.msra.mxu0 0.0
    %2036 = vmatprep.subr.mxu0 0.0
    %2037 = vmatpush1.msra.mxu0 0.0
    %2038 = vmatprep.subr.mxu0 0.0
    %2039 = vmatpush1.msra.mxu0 0.0
    %2040 = vmatprep.subr.mxu0 0.0
    %2041 = vmatpush1.msra.mxu0 0.0
    %2042 = vmatprep.subr.mxu0 0.0
    %2043 = vmatpush1.msra.mxu0 0.0
    %2044 = vmatprep.subr.mxu0 0.0
    %2045 = vmatpush1.msra.mxu0 0.0
    %2046 = vmatprep.subr.mxu0 0.0
    %2047 = vmatpush1.msra.mxu0 0.0
    %2048 = vmatprep.subr.mxu0 0.0
    %2049 = vmatpush1.msra.mxu0 0.0
    %2050 = vmatprep.subr.mxu0 0.0
    %2051 = vmatpush1.msra.mxu0 0.0
    %2052 = vmatprep.mubr.f32.mxu0 0.0
    %2053 = vmatmul.mubr.f32.gmra.mrb[0].mxu0 %v1986
    %v2054 = vpop.f32.mrb[0].mxu0
    %v2055 = vadd.f32 0.0, %v2054
    %v2056 = vpop.f32.mrb[0].mxu0
    %2057 = vdwg.mxu0
    %v2059 = vrot.slane %v2055, 4
    %v2061 = vadd.f32 %v1599, %v2059
    %v2062 = vxor.u32 %v2061, 2147483648
    %v2063 = vmul.f32 %v2062, 1.442695
    %v2064 = vpow.pop %v2063
    %v2065 = vadd.f32 %v2064, 1.0
    %v2066 = vrcp.pop %v2065
    %v2067 = vmul.f32 1.0, %v2066
    %v2068 = vtanh.pop %v2061
    %v2070 = vrot.slane %v1805, 6
    %v2072 = vmul.f32 %v2067, %v2070
    %2074 = vrot.lane.b32.xlu0 %v2068, 64
    %v2075 = vpop.permute.xlu0 %2074
    %v2077 = vmul.f32 %v2067, %v2075
    %2079 = vrot.lane.b32.xlu0 %v2077, 32
    %v2080 = vpop.permute.xlu0 %2079
    %v2082 = vadd.f32 %v2072, %v2080
    %v2083 = vtanh.pop %v2082
    %2085 = vrot.lane.b32.xlu0 %v2083, 64
    %v2086 = vpop.permute.xlu0 %2085
    %v2088 = vmul.f32 %v2067, %v2086
    %2089 = vrot.lane.b32.xlu0 %v1605, 124
    %v2090 = vpop.permute.xlu0 %2089
    %2091 = vrot.lane.b32.xlu0 %v1606, 124
    %v2092 = vpop.permute.xlu0 %2091
    %v2094 = vrot.slane %v2088, 4
    %2095 = vrot.lane.b32.xlu0 %v2094, 32
    %v2096 = vpop.permute.xlu0 %2095
    %v2097 = vsel %vm1822, %v2090, 0
    %v2099 = vsel %vm1822, %v2092, 0
    %v2101 = vsel %vm1827, %v2096, 0
    %2103 = vmatprep.subr.mxu0 0.0
    %2104 = vmatpush1.msra.mxu0 %v2101
    %2105 = vmatprep.subr.mxu0 0.0
    %2106 = vmatpush1.msra.mxu0 0.0
    %2107 = vmatprep.subr.mxu0 0.0
    %2108 = vmatpush1.msra.mxu0 0.0
    %2109 = vmatprep.subr.mxu0 0.0
    %2110 = vmatpush1.msra.mxu0 0.0
    %2111 = vmatprep.subr.mxu0 0.0
    %2112 = vmatpush1.msra.mxu0 0.0
    %2113 = vmatprep.subr.mxu0 0.0
    %2114 = vmatpush1.msra.mxu0 0.0
    %2115 = vmatprep.subr.mxu0 0.0
    %2116 = vmatpush1.msra.mxu0 0.0
    %2117 = vmatprep.subr.mxu0 0.0
    %2118 = vmatpush1.msra.mxu0 0.0
    %2119 = vmatprep.subr.mxu0 0.0
    %2120 = vmatpush1.msra.mxu0 0.0
    %2121 = vmatprep.subr.mxu0 0.0
    %2122 = vmatpush1.msra.mxu0 0.0
    %2123 = vmatprep.subr.mxu0 0.0
    %2124 = vmatpush1.msra.mxu0 0.0
    %2125 = vmatprep.subr.mxu0 0.0
    %2126 = vmatpush1.msra.mxu0 0.0
    %2127 = vmatprep.subr.mxu0 0.0
    %2128 = vmatpush1.msra.mxu0 0.0
    %2129 = vmatprep.subr.mxu0 0.0
    %2130 = vmatpush1.msra.mxu0 0.0
    %2131 = vmatprep.subr.mxu0 0.0
    %2132 = vmatpush1.msra.mxu0 0.0
    %2133 = vmatprep.subr.mxu0 0.0
    %2134 = vmatpush1.msra.mxu0 0.0
    %2135 = vmatprep.subr.mxu0 0.0
    %2136 = vmatpush1.msra.mxu0 0.0
    %2137 = vmatprep.subr.mxu0 0.0
    %2138 = vmatpush1.msra.mxu0 0.0
    %2139 = vmatprep.subr.mxu0 0.0
    %2140 = vmatpush1.msra.mxu0 0.0
    %2141 = vmatprep.subr.mxu0 0.0
    %2142 = vmatpush1.msra.mxu0 0.0
    %2143 = vmatprep.subr.mxu0 0.0
    %2144 = vmatpush1.msra.mxu0 0.0
    %2145 = vmatprep.subr.mxu0 0.0
    %2146 = vmatpush1.msra.mxu0 0.0
    %2147 = vmatprep.subr.mxu0 0.0
    %2148 = vmatpush1.msra.mxu0 0.0
    %2149 = vmatprep.subr.mxu0 0.0
    %2150 = vmatpush1.msra.mxu0 0.0
    %2151 = vmatprep.subr.mxu0 0.0
    %2152 = vmatpush1.msra.mxu0 0.0
    %2153 = vmatprep.subr.mxu0 0.0
    %2154 = vmatpush1.msra.mxu0 0.0
    %2155 = vmatprep.subr.mxu0 0.0
    %2156 = vmatpush1.msra.mxu0 0.0
    %2157 = vmatprep.subr.mxu0 0.0
    %2158 = vmatpush1.msra.mxu0 0.0
    %2159 = vmatprep.subr.mxu0 0.0
    %2160 = vmatpush1.msra.mxu0 0.0
    %2161 = vmatprep.subr.mxu0 0.0
    %2162 = vmatpush1.msra.mxu0 0.0
    %2163 = vmatprep.subr.mxu0 0.0
    %2164 = vmatpush1.msra.mxu0 0.0
    %2165 = vmatprep.subr.mxu0 0.0
    %2166 = vmatpush1.msra.mxu0 0.0
    %2167 = vmatprep.mubr.f32.mxu0 0.0
    %2168 = vmatmul.mubr.f32.gmra.mrb[0].mxu0 %v2097
    %v2169 = vpop.f32.mrb[0].mxu0
    %v2170 = vadd.f32 0.0, %v2169
    %v2171 = vpop.f32.mrb[0].mxu0
    %2172 = vmatprep.mubr.f32.mxu0 0.0
    %2173 = vmatmul.mubr.f32.gmra.mrb[0].mxu0 %v2099
    %v2174 = vpop.f32.mrb[0].mxu0
    %v2175 = vadd.f32 0.0, %v2174
    %v2176 = vpop.f32.mrb[0].mxu0
    %2177 = vdwg.mxu0
    %v2178 = vadd.f32 %v1978, %v2170
    %v2179 = vadd.f32 %v1983, %v2175
    %v2180 = vsel %vm1607, %v2096, 0
    %2182 = vmatprep.subr.mxu0 0.0
    %2183 = vmatpush1.msra.mxu0 %v1601
    %2184 = vmatprep.subr.mxu0 0.0
    %2185 = vmatpush1.msra.mxu0 %v1602
    %2186 = vmatprep.subr.mxu0 0.0
    %2187 = vmatpush1.msra.mxu0 %v1603
    %2188 = vmatprep.subr.mxu0 0.0
    %2189 = vmatpush1.msra.mxu0 %v1604
    %2190 = vmatprep.subr.mxu0 0.0
    %2191 = vmatpush1.msra.mxu0 0.0
    %2192 = vmatprep.subr.mxu0 0.0
    %2193 = vmatpush1.msra.mxu0 0.0
    %2194 = vmatprep.subr.mxu0 0.0
    %2195 = vmatpush1.msra.mxu0 0.0
    %2196 = vmatprep.subr.mxu0 0.0
    %2197 = vmatpush1.msra.mxu0 0.0
    %2198 = vmatprep.subr.mxu0 0.0
    %2199 = vmatpush1.msra.mxu0 0.0
    %2200 = vmatprep.subr.mxu0 0.0
    %2201 = vmatpush1.msra.mxu0 0.0
    %2202 = vmatprep.subr.mxu0 0.0
    %2203 = vmatpush1.msra.mxu0 0.0
    %2204 = vmatprep.subr.mxu0 0.0
    %2205 = vmatpush1.msra.mxu0 0.0
    %2206 = vmatprep.subr.mxu0 0.0
    %2207 = vmatpush1.msra.mxu0 0.0
    %2208 = vmatprep.subr.mxu0 0.0
    %2209 = vmatpush1.msra.mxu0 0.0
    %2210 = vmatprep.subr.mxu0 0.0
    %2211 = vmatpush1.msra.mxu0 0.0
    %2212 = vmatprep.subr.mxu0 0.0
    %2213 = vmatpush1.msra.mxu0 0.0
    %2214 = vmatprep.subr.mxu0 0.0
    %2215 = vmatpush1.msra.mxu0 0.0
    %2216 = vmatprep.subr.mxu0 0.0
    %2217 = vmatpush1.msra.mxu0 0.0
    %2218 = vmatprep.subr.mxu0 0.0
    %2219 = vmatpush1.msra.mxu0 0.0
    %2220 = vmatprep.subr.mxu0 0.0
    %2221 = vmatpush1.msra.mxu0 0.0
    %2222 = vmatprep.subr.mxu0 0.0
    %2223 = vmatpush1.msra.mxu0 0.0
    %2224 = vmatprep.subr.mxu0 0.0
    %2225 = vmatpush1.msra.mxu0 0.0
    %2226 = vmatprep.subr.mxu0 0.0
    %2227 = vmatpush1.msra.mxu0 0.0
    %2228 = vmatprep.subr.mxu0 0.0
    %2229 = vmatpush1.msra.mxu0 0.0
    %2230 = vmatprep.subr.mxu0 0.0
    %2231 = vmatpush1.msra.mxu0 0.0
    %2232 = vmatprep.subr.mxu0 0.0
    %2233 = vmatpush1.msra.mxu0 0.0
    %2234 = vmatprep.subr.mxu0 0.0
    %2235 = vmatpush1.msra.mxu0 0.0
    %2236 = vmatprep.subr.mxu0 0.0
    %2237 = vmatpush1.msra.mxu0 0.0
    %2238 = vmatprep.subr.mxu0 0.0
    %2239 = vmatpush1.msra.mxu0 0.0
    %2240 = vmatprep.subr.mxu0 0.0
    %2241 = vmatpush1.msra.mxu0 0.0
    %2242 = vmatprep.subr.mxu0 0.0
    %2243 = vmatpush1.msra.mxu0 0.0
    %2244 = vmatprep.subr.mxu0 0.0
    %2245 = vmatpush1.msra.mxu0 0.0
    %2246 = vmatprep.mubr.f32.mxu0 0.0
    %2247 = vmatmul.mubr.f32.gmra.mrb[0].mxu0 %v2180
    %v2248 = vpop.f32.mrb[0].mxu0
    %v2249 = vadd.f32 0.0, %v2248
    %v2250 = vpop.f32.mrb[0].mxu0
    %2251 = vdwg.mxu0
    %v2253 = vrot.slane %v2249, 2
    %v2255 = vadd.f32 %v1599, %v2253
    %v2256 = vxor.u32 %v2255, 2147483648
    %v2257 = vmul.f32 %v2256, 1.442695
    %v2258 = vpow.pop %v2257
    %v2259 = vadd.f32 %v2258, 1.0
    %v2260 = vrcp.pop %v2259
    %v2261 = vmul.f32 1.0, %v2260
    %v2262 = vtanh.pop %v2255
    %v2264 = vrot.slane %v2082, 6
    %v2266 = vmul.f32 %v2261, %v2264
    %2268 = vrot.lane.b32.xlu0 %v2262, 64
    %v2269 = vpop.permute.xlu0 %2268
    %v2271 = vmul.f32 %v2261, %v2269
    %2273 = vrot.lane.b32.xlu0 %v2271, 32
    %v2274 = vpop.permute.xlu0 %2273
    %v2276 = vadd.f32 %v2266, %v2274
    %v2277 = vtanh.pop %v2276
    %2279 = vrot.lane.b32.xlu0 %v2277, 64
    %v2280 = vpop.permute.xlu0 %2279
    %v2282 = vmul.f32 %v2261, %v2280
    %2283 = vrot.lane.b32.xlu0 %v1605, 122
    %v2284 = vpop.permute.xlu0 %2283
    %2285 = vrot.lane.b32.xlu0 %v1606, 122
    %v2286 = vpop.permute.xlu0 %2285
    %v2288 = vrot.slane %v2282, 6
    %2289 = vrot.lane.b32.xlu0 %v2288, 32
    %v2290 = vpop.permute.xlu0 %2289
    %v2291 = vsel %vm1822, %v2284, 0
    %v2293 = vsel %vm1822, %v2286, 0
    %v2295 = vsel %vm1827, %v2290, 0
    %2297 = vmatprep.subr.mxu0 0.0
    %2298 = vmatpush1.msra.mxu0 %v2295
    %2299 = vmatprep.subr.mxu0 0.0
    %2300 = vmatpush1.msra.mxu0 0.0
    %2301 = vmatprep.subr.mxu0 0.0
    %2302 = vmatpush1.msra.mxu0 0.0
    %2303 = vmatprep.subr.mxu0 0.0
    %2304 = vmatpush1.msra.mxu0 0.0
    %2305 = vmatprep.subr.mxu0 0.0
    %2306 = vmatpush1.msra.mxu0 0.0
    %2307 = vmatprep.subr.mxu0 0.0
    %2308 = vmatpush1.msra.mxu0 0.0
    %2309 = vmatprep.subr.mxu0 0.0
    %2310 = vmatpush1.msra.mxu0 0.0
    %2311 = vmatprep.subr.mxu0 0.0
    %2312 = vmatpush1.msra.mxu0 0.0
    %2313 = vmatprep.subr.mxu0 0.0
    %2314 = vmatpush1.msra.mxu0 0.0
    %2315 = vmatprep.subr.mxu0 0.0
    %2316 = vmatpush1.msra.mxu0 0.0
    %2317 = vmatprep.subr.mxu0 0.0
    %2318 = vmatpush1.msra.mxu0 0.0
    %2319 = vmatprep.subr.mxu0 0.0
    %2320 = vmatpush1.msra.mxu0 0.0
    %2321 = vmatprep.subr.mxu0 0.0
    %2322 = vmatpush1.msra.mxu0 0.0
    %2323 = vmatprep.subr.mxu0 0.0
    %2324 = vmatpush1.msra.mxu0 0.0
    %2325 = vmatprep.subr.mxu0 0.0
    %2326 = vmatpush1.msra.mxu0 0.0
    %2327 = vmatprep.subr.mxu0 0.0
    %2328 = vmatpush1.msra.mxu0 0.0
    %2329 = vmatprep.subr.mxu0 0.0
    %2330 = vmatpush1.msra.mxu0 0.0
    %2331 = vmatprep.subr.mxu0 0.0
    %2332 = vmatpush1.msra.mxu0 0.0
    %2333 = vmatprep.subr.mxu0 0.0
    %2334 = vmatpush1.msra.mxu0 0.0
    %2335 = vmatprep.subr.mxu0 0.0
    %2336 = vmatpush1.msra.mxu0 0.0
    %2337 = vmatprep.subr.mxu0 0.0
    %2338 = vmatpush1.msra.mxu0 0.0
    %2339 = vmatprep.subr.mxu0 0.0
    %2340 = vmatpush1.msra.mxu0 0.0
    %2341 = vmatprep.subr.mxu0 0.0
    %2342 = vmatpush1.msra.mxu0 0.0
    %2343 = vmatprep.subr.mxu0 0.0
    %2344 = vmatpush1.msra.mxu0 0.0
    %2345 = vmatprep.subr.mxu0 0.0
    %2346 = vmatpush1.msra.mxu0 0.0
    %2347 = vmatprep.subr.mxu0 0.0
    %2348 = vmatpush1.msra.mxu0 0.0
    %2349 = vmatprep.subr.mxu0 0.0
    %2350 = vmatpush1.msra.mxu0 0.0
    %2351 = vmatprep.subr.mxu0 0.0
    %2352 = vmatpush1.msra.mxu0 0.0
    %2353 = vmatprep.subr.mxu0 0.0
    %2354 = vmatpush1.msra.mxu0 0.0
    %2355 = vmatprep.subr.mxu0 0.0
    %2356 = vmatpush1.msra.mxu0 0.0
    %2357 = vmatprep.subr.mxu0 0.0
    %2358 = vmatpush1.msra.mxu0 0.0
    %2359 = vmatprep.subr.mxu0 0.0
    %2360 = vmatpush1.msra.mxu0 0.0
    %2361 = vmatprep.mubr.f32.mxu0 0.0
    %2362 = vmatmul.mubr.f32.gmra.mrb[0].mxu0 %v2291
    %v2363 = vpop.f32.mrb[0].mxu0
    %v2364 = vadd.f32 0.0, %v2363
    %v2365 = vpop.f32.mrb[0].mxu0
    %2366 = vmatprep.mubr.f32.mxu0 0.0
    %2367 = vmatmul.mubr.f32.gmra.mrb[0].mxu0 %v2293
    %v2368 = vpop.f32.mrb[0].mxu0
    %v2369 = vadd.f32 0.0, %v2368
    %v2370 = vpop.f32.mrb[0].mxu0
    %2371 = vdwg.mxu0
    %v2372 = vadd.f32 %v2178, %v2364
    %v2373 = vadd.f32 %v2179, %v2369
    %v2374 = vsel %vm1607, %v2290, 0
    %2376 = vmatprep.subr.mxu0 0.0
    %2377 = vmatpush1.msra.mxu0 %v1601
    %2378 = vmatprep.subr.mxu0 0.0
    %2379 = vmatpush1.msra.mxu0 %v1602
    %2380 = vmatprep.subr.mxu0 0.0
    %2381 = vmatpush1.msra.mxu0 %v1603
    %2382 = vmatprep.subr.mxu0 0.0
    %2383 = vmatpush1.msra.mxu0 %v1604
    %2384 = vmatprep.subr.mxu0 0.0
    %2385 = vmatpush1.msra.mxu0 0.0
    %2386 = vmatprep.subr.mxu0 0.0
    %2387 = vmatpush1.msra.mxu0 0.0
    %2388 = vmatprep.subr.mxu0 0.0
    %2389 = vmatpush1.msra.mxu0 0.0
    %2390 = vmatprep.subr.mxu0 0.0
    %2391 = vmatpush1.msra.mxu0 0.0
    %2392 = vmatprep.subr.mxu0 0.0
    %2393 = vmatpush1.msra.mxu0 0.0
    %2394 = vmatprep.subr.mxu0 0.0
    %2395 = vmatpush1.msra.mxu0 0.0
    %2396 = vmatprep.subr.mxu0 0.0
    %2397 = vmatpush1.msra.mxu0 0.0
    %2398 = vmatprep.subr.mxu0 0.0
    %2399 = vmatpush1.msra.mxu0 0.0
    %2400 = vmatprep.subr.mxu0 0.0
    %2401 = vmatpush1.msra.mxu0 0.0
    %2402 = vmatprep.subr.mxu0 0.0
    %2403 = vmatpush1.msra.mxu0 0.0
    %2404 = vmatprep.subr.mxu0 0.0
    %2405 = vmatpush1.msra.mxu0 0.0
    %2406 = vmatprep.subr.mxu0 0.0
    %2407 = vmatpush1.msra.mxu0 0.0
    %2408 = vmatprep.subr.mxu0 0.0
    %2409 = vmatpush1.msra.mxu0 0.0
    %2410 = vmatprep.subr.mxu0 0.0
    %2411 = vmatpush1.msra.mxu0 0.0
    %2412 = vmatprep.subr.mxu0 0.0
    %2413 = vmatpush1.msra.mxu0 0.0
    %2414 = vmatprep.subr.mxu0 0.0
    %2415 = vmatpush1.msra.mxu0 0.0
    %2416 = vmatprep.subr.mxu0 0.0
    %2417 = vmatpush1.msra.mxu0 0.0
    %2418 = vmatprep.subr.mxu0 0.0
    %2419 = vmatpush1.msra.mxu0 0.0
    %2420 = vmatprep.subr.mxu0 0.0
    %2421 = vmatpush1.msra.mxu0 0.0
    %2422 = vmatprep.subr.mxu0 0.0
    %2423 = vmatpush1.msra.mxu0 0.0
    %2424 = vmatprep.subr.mxu0 0.0
    %2425 = vmatpush1.msra.mxu0 0.0
    %2426 = vmatprep.subr.mxu0 0.0
    %2427 = vmatpush1.msra.mxu0 0.0
    %2428 = vmatprep.subr.mxu0 0.0
    %2429 = vmatpush1.msra.mxu0 0.0
    %2430 = vmatprep.subr.mxu0 0.0
    %2431 = vmatpush1.msra.mxu0 0.0
    %2432 = vmatprep.subr.mxu0 0.0
    %2433 = vmatpush1.msra.mxu0 0.0
    %2434 = vmatprep.subr.mxu0 0.0
    %2435 = vmatpush1.msra.mxu0 0.0
    %2436 = vmatprep.subr.mxu0 0.0
    %2437 = vmatpush1.msra.mxu0 0.0
    %2438 = vmatprep.subr.mxu0 0.0
    %2439 = vmatpush1.msra.mxu0 0.0
    %2440 = vmatprep.mubr.f32.mxu0 0.0
    %2441 = vmatmul.mubr.f32.gmra.mrb[0].mxu0 %v2374
    %v2442 = vpop.f32.mrb[0].mxu0
    %v2443 = vadd.f32 0.0, %v2442
    %v2444 = vpop.f32.mrb[0].mxu0
    %2445 = vdwg.mxu0
    %v2446 = vadd.f32 %v1600, %v2443
    %v2447 = vxor.u32 %v2446, 2147483648
    %v2448 = vmul.f32 %v2447, 1.442695
    %v2449 = vpow.pop %v2448
    %v2450 = vadd.f32 %v2449, 1.0
    %v2451 = vrcp.pop %v2450
    %v2452 = vmul.f32 1.0, %v2451
    %v2453 = vtanh.pop %v2446
    %v2455 = vrot.slane %v2276, 6
    %v2457 = vmul.f32 %v2452, %v2455
    %2459 = vrot.lane.b32.xlu0 %v2453, 64
    %v2460 = vpop.permute.xlu0 %2459
    %v2462 = vmul.f32 %v2452, %v2460
    %2464 = vrot.lane.b32.xlu0 %v2462, 32
    %v2465 = vpop.permute.xlu0 %2464
    %v2467 = vadd.f32 %v2457, %v2465
    %v2468 = vtanh.pop %v2467
    %2470 = vrot.lane.b32.xlu0 %v2468, 64
    %v2471 = vpop.permute.xlu0 %2470
    %v2473 = vmul.f32 %v2452, %v2471
    %2474 = vrot.lane.b32.xlu0 %v1605, 120
    %v2475 = vpop.permute.xlu0 %2474
    %2476 = vrot.lane.b32.xlu0 %v1606, 120
    %v2477 = vpop.permute.xlu0 %2476
    %2479 = vrot.lane.b32.xlu0 %v2473, 32
    %v2480 = vpop.permute.xlu0 %2479
    %v2481 = vsel %vm1822, %v2475, 0
    %v2483 = vsel %vm1822, %v2477, 0
    %v2485 = vsel %vm1827, %v2480, 0
    %2487 = vmatprep.subr.mxu0 0.0
    %2488 = vmatpush1.msra.mxu0 %v2485
    %2489 = vmatprep.subr.mxu0 0.0
    %2490 = vmatpush1.msra.mxu0 0.0
    %2491 = vmatprep.subr.mxu0 0.0
    %2492 = vmatpush1.msra.mxu0 0.0
    %2493 = vmatprep.subr.mxu0 0.0
    %2494 = vmatpush1.msra.mxu0 0.0
    %2495 = vmatprep.subr.mxu0 0.0
    %2496 = vmatpush1.msra.mxu0 0.0
    %2497 = vmatprep.subr.mxu0 0.0
    %2498 = vmatpush1.msra.mxu0 0.0
    %2499 = vmatprep.subr.mxu0 0.0
    %2500 = vmatpush1.msra.mxu0 0.0
    %2501 = vmatprep.subr.mxu0 0.0
    %2502 = vmatpush1.msra.mxu0 0.0
    %2503 = vmatprep.subr.mxu0 0.0
    %2504 = vmatpush1.msra.mxu0 0.0
    %2505 = vmatprep.subr.mxu0 0.0
    %2506 = vmatpush1.msra.mxu0 0.0
    %2507 = vmatprep.subr.mxu0 0.0
    %2508 = vmatpush1.msra.mxu0 0.0
    %2509 = vmatprep.subr.mxu0 0.0
    %2510 = vmatpush1.msra.mxu0 0.0
    %2511 = vmatprep.subr.mxu0 0.0
    %2512 = vmatpush1.msra.mxu0 0.0
    %2513 = vmatprep.subr.mxu0 0.0
    %2514 = vmatpush1.msra.mxu0 0.0
    %2515 = vmatprep.subr.mxu0 0.0
    %2516 = vmatpush1.msra.mxu0 0.0
    %2517 = vmatprep.subr.mxu0 0.0
    %2518 = vmatpush1.msra.mxu0 0.0
    %2519 = vmatprep.subr.mxu0 0.0
    %2520 = vmatpush1.msra.mxu0 0.0
    %2521 = vmatprep.subr.mxu0 0.0
    %2522 = vmatpush1.msra.mxu0 0.0
    %2523 = vmatprep.subr.mxu0 0.0
    %2524 = vmatpush1.msra.mxu0 0.0
    %2525 = vmatprep.subr.mxu0 0.0
    %2526 = vmatpush1.msra.mxu0 0.0
    %2527 = vmatprep.subr.mxu0 0.0
    %2528 = vmatpush1.msra.mxu0 0.0
    %2529 = vmatprep.subr.mxu0 0.0
    %2530 = vmatpush1.msra.mxu0 0.0
    %2531 = vmatprep.subr.mxu0 0.0
    %2532 = vmatpush1.msra.mxu0 0.0
    %2533 = vmatprep.subr.mxu0 0.0
    %2534 = vmatpush1.msra.mxu0 0.0
    %2535 = vmatprep.subr.mxu0 0.0
    %2536 = vmatpush1.msra.mxu0 0.0
    %2537 = vmatprep.subr.mxu0 0.0
    %2538 = vmatpush1.msra.mxu0 0.0
    %2539 = vmatprep.subr.mxu0 0.0
    %2540 = vmatpush1.msra.mxu0 0.0
    %2541 = vmatprep.subr.mxu0 0.0
    %2542 = vmatpush1.msra.mxu0 0.0
    %2543 = vmatprep.subr.mxu0 0.0
    %2544 = vmatpush1.msra.mxu0 0.0
    %2545 = vmatprep.subr.mxu0 0.0
    %2546 = vmatpush1.msra.mxu0 0.0
    %2547 = vmatprep.subr.mxu0 0.0
    %2548 = vmatpush1.msra.mxu0 0.0
    %2549 = vmatprep.subr.mxu0 0.0
    %2550 = vmatpush1.msra.mxu0 0.0
    %2551 = vmatprep.mubr.f32.mxu0 0.0
    %2552 = vmatmul.mubr.f32.gmra.mrb[0].mxu0 %v2481
    %v2553 = vpop.f32.mrb[0].mxu0
    %v2554 = vadd.f32 0.0, %v2553
    %v2555 = vpop.f32.mrb[0].mxu0
    %2556 = vmatprep.mubr.f32.mxu0 0.0
    %2557 = vmatmul.mubr.f32.gmra.mrb[0].mxu0 %v2483
    %v2558 = vpop.f32.mrb[0].mxu0
    %v2559 = vadd.f32 0.0, %v2558
    %v2560 = vpop.f32.mrb[0].mxu0
    %2561 = vdwg.mxu0
    %v2562 = vadd.f32 %v2372, %v2554
    %v2563 = vadd.f32 %v2373, %v2559
    %v2564 = vsel %vm1607, %v2480, 0
    %2566 = vmatprep.subr.mxu0 0.0
    %2567 = vmatpush1.msra.mxu0 %v1601
    %2568 = vmatprep.subr.mxu0 0.0
    %2569 = vmatpush1.msra.mxu0 %v1602
    %2570 = vmatprep.subr.mxu0 0.0
    %2571 = vmatpush1.msra.mxu0 %v1603
    %2572 = vmatprep.subr.mxu0 0.0
    %2573 = vmatpush1.msra.mxu0 %v1604
    %2574 = vmatprep.subr.mxu0 0.0
    %2575 = vmatpush1.msra.mxu0 0.0
    %2576 = vmatprep.subr.mxu0 0.0
    %2577 = vmatpush1.msra.mxu0 0.0
    %2578 = vmatprep.subr.mxu0 0.0
    %2579 = vmatpush1.msra.mxu0 0.0
    %2580 = vmatprep.subr.mxu0 0.0
    %2581 = vmatpush1.msra.mxu0 0.0
    %2582 = vmatprep.subr.mxu0 0.0
    %2583 = vmatpush1.msra.mxu0 0.0
    %2584 = vmatprep.subr.mxu0 0.0
    %2585 = vmatpush1.msra.mxu0 0.0
    %2586 = vmatprep.subr.mxu0 0.0
    %2587 = vmatpush1.msra.mxu0 0.0
    %2588 = vmatprep.subr.mxu0 0.0
    %2589 = vmatpush1.msra.mxu0 0.0
    %2590 = vmatprep.subr.mxu0 0.0
    %2591 = vmatpush1.msra.mxu0 0.0
    %2592 = vmatprep.subr.mxu0 0.0
    %2593 = vmatpush1.msra.mxu0 0.0
    %2594 = vmatprep.subr.mxu0 0.0
    %2595 = vmatpush1.msra.mxu0 0.0
    %2596 = vmatprep.subr.mxu0 0.0
    %2597 = vmatpush1.msra.mxu0 0.0
    %2598 = vmatprep.subr.mxu0 0.0
    %2599 = vmatpush1.msra.mxu0 0.0
    %2600 = vmatprep.subr.mxu0 0.0
    %2601 = vmatpush1.msra.mxu0 0.0
    %2602 = vmatprep.subr.mxu0 0.0
    %2603 = vmatpush1.msra.mxu0 0.0
    %2604 = vmatprep.subr.mxu0 0.0
    %2605 = vmatpush1.msra.mxu0 0.0
    %2606 = vmatprep.subr.mxu0 0.0
    %2607 = vmatpush1.msra.mxu0 0.0
    %2608 = vmatprep.subr.mxu0 0.0
    %2609 = vmatpush1.msra.mxu0 0.0
    %2610 = vmatprep.subr.mxu0 0.0
    %2611 = vmatpush1.msra.mxu0 0.0
    %2612 = vmatprep.subr.mxu0 0.0
    %2613 = vmatpush1.msra.mxu0 0.0
    %2614 = vmatprep.subr.mxu0 0.0
    %2615 = vmatpush1.msra.mxu0 0.0
    %2616 = vmatprep.subr.mxu0 0.0
    %2617 = vmatpush1.msra.mxu0 0.0
    %2618 = vmatprep.subr.mxu0 0.0
    %2619 = vmatpush1.msra.mxu0 0.0
    %2620 = vmatprep.subr.mxu0 0.0
    %2621 = vmatpush1.msra.mxu0 0.0
    %2622 = vmatprep.subr.mxu0 0.0
    %2623 = vmatpush1.msra.mxu0 0.0
    %2624 = vmatprep.subr.mxu0 0.0
    %2625 = vmatpush1.msra.mxu0 0.0
    %2626 = vmatprep.subr.mxu0 0.0
    %2627 = vmatpush1.msra.mxu0 0.0
    %2628 = vmatprep.subr.mxu0 0.0
    %2629 = vmatpush1.msra.mxu0 0.0
    %2630 = vmatprep.mubr.f32.mxu0 0.0
    %2631 = vmatmul.mubr.f32.gmra.mrb[0].mxu0 %v2564
    %v2632 = vpop.f32.mrb[0].mxu0
    %v2633 = vadd.f32 0.0, %v2632
    %v2634 = vpop.f32.mrb[0].mxu0
    %2635 = vdwg.mxu0
    %v2637 = vrot.slane %v2633, 6
    %v2639 = vadd.f32 %v1600, %v2637
    %v2640 = vxor.u32 %v2639, 2147483648
    %v2641 = vmul.f32 %v2640, 1.442695
    %v2642 = vpow.pop %v2641
    %v2643 = vadd.f32 %v2642, 1.0
    %v2644 = vrcp.pop %v2643
    %v2645 = vmul.f32 1.0, %v2644
    %v2646 = vtanh.pop %v2639
    %v2648 = vrot.slane %v2467, 6
    %v2650 = vmul.f32 %v2645, %v2648
    %2652 = vrot.lane.b32.xlu0 %v2646, 64
    %v2653 = vpop.permute.xlu0 %2652
    %v2655 = vmul.f32 %v2645, %v2653
    %2657 = vrot.lane.b32.xlu0 %v2655, 32
    %v2658 = vpop.permute.xlu0 %2657
    %v2660 = vadd.f32 %v2650, %v2658
    %v2661 = vtanh.pop %v2660
    %2663 = vrot.lane.b32.xlu0 %v2661, 64
    %v2664 = vpop.permute.xlu0 %2663
    %v2666 = vmul.f32 %v2645, %v2664
    %2667 = vrot.lane.b32.xlu0 %v1605, 118
    %v2668 = vpop.permute.xlu0 %2667
    %2669 = vrot.lane.b32.xlu0 %v1606, 118
    %v2670 = vpop.permute.xlu0 %2669
    %v2672 = vrot.slane %v2666, 2
    %2673 = vrot.lane.b32.xlu0 %v2672, 32
    %v2674 = vpop.permute.xlu0 %2673
    %v2675 = vsel %vm1822, %v2668, 0
    %v2677 = vsel %vm1822, %v2670, 0
    %v2679 = vsel %vm1827, %v2674, 0
    %2681 = vmatprep.subr.mxu0 0.0
    %2682 = vmatpush1.msra.mxu0 %v2679
    %2683 = vmatprep.subr.mxu0 0.0
    %2684 = vmatpush1.msra.mxu0 0.0
    %2685 = vmatprep.subr.mxu0 0.0
    %2686 = vmatpush1.msra.mxu0 0.0
    %2687 = vmatprep.subr.mxu0 0.0
    %2688 = vmatpush1.msra.mxu0 0.0
    %2689 = vmatprep.subr.mxu0 0.0
    %2690 = vmatpush1.msra.mxu0 0.0
    %2691 = vmatprep.subr.mxu0 0.0
    %2692 = vmatpush1.msra.mxu0 0.0
    %2693 = vmatprep.subr.mxu0 0.0
    %2694 = vmatpush1.msra.mxu0 0.0
    %2695 = vmatprep.subr.mxu0 0.0
    %2696 = vmatpush1.msra.mxu0 0.0
    %2697 = vmatprep.subr.mxu0 0.0
    %2698 = vmatpush1.msra.mxu0 0.0
    %2699 = vmatprep.subr.mxu0 0.0
    %2700 = vmatpush1.msra.mxu0 0.0
    %2701 = vmatprep.subr.mxu0 0.0
    %2702 = vmatpush1.msra.mxu0 0.0
    %2703 = vmatprep.subr.mxu0 0.0
    %2704 = vmatpush1.msra.mxu0 0.0
    %2705 = vmatprep.subr.mxu0 0.0
    %2706 = vmatpush1.msra.mxu0 0.0
    %2707 = vmatprep.subr.mxu0 0.0
    %2708 = vmatpush1.msra.mxu0 0.0
    %2709 = vmatprep.subr.mxu0 0.0
    %2710 = vmatpush1.msra.mxu0 0.0
    %2711 = vmatprep.subr.mxu0 0.0
    %2712 = vmatpush1.msra.mxu0 0.0
    %2713 = vmatprep.subr.mxu0 0.0
    %2714 = vmatpush1.msra.mxu0 0.0
    %2715 = vmatprep.subr.mxu0 0.0
    %2716 = vmatpush1.msra.mxu0 0.0
    %2717 = vmatprep.subr.mxu0 0.0
    %2718 = vmatpush1.msra.mxu0 0.0
    %2719 = vmatprep.subr.mxu0 0.0
    %2720 = vmatpush1.msra.mxu0 0.0
    %2721 = vmatprep.subr.mxu0 0.0
    %2722 = vmatpush1.msra.mxu0 0.0
    %2723 = vmatprep.subr.mxu0 0.0
    %2724 = vmatpush1.msra.mxu0 0.0
    %2725 = vmatprep.subr.mxu0 0.0
    %2726 = vmatpush1.msra.mxu0 0.0
    %2727 = vmatprep.subr.mxu0 0.0
    %2728 = vmatpush1.msra.mxu0 0.0
    %2729 = vmatprep.subr.mxu0 0.0
    %2730 = vmatpush1.msra.mxu0 0.0
    %2731 = vmatprep.subr.mxu0 0.0
    %2732 = vmatpush1.msra.mxu0 0.0
    %2733 = vmatprep.subr.mxu0 0.0
    %2734 = vmatpush1.msra.mxu0 0.0
    %2735 = vmatprep.subr.mxu0 0.0
    %2736 = vmatpush1.msra.mxu0 0.0
    %2737 = vmatprep.subr.mxu0 0.0
    %2738 = vmatpush1.msra.mxu0 0.0
    %2739 = vmatprep.subr.mxu0 0.0
    %2740 = vmatpush1.msra.mxu0 0.0
    %2741 = vmatprep.subr.mxu0 0.0
    %2742 = vmatpush1.msra.mxu0 0.0
    %2743 = vmatprep.subr.mxu0 0.0
    %2744 = vmatpush1.msra.mxu0 0.0
    %2745 = vmatprep.mubr.f32.mxu0 0.0
    %2746 = vmatmul.mubr.f32.gmra.mrb[0].mxu0 %v2675
    %v2747 = vpop.f32.mrb[0].mxu0
    %v2748 = vadd.f32 0.0, %v2747
    %v2749 = vpop.f32.mrb[0].mxu0
    %2750 = vmatprep.mubr.f32.mxu0 0.0
    %2751 = vmatmul.mubr.f32.gmra.mrb[0].mxu0 %v2677
    %v2752 = vpop.f32.mrb[0].mxu0
    %v2753 = vadd.f32 0.0, %v2752
    %v2754 = vpop.f32.mrb[0].mxu0
    %2755 = vdwg.mxu0
    %v2756 = vadd.f32 %v2562, %v2748
    %v2757 = vadd.f32 %v2563, %v2753
    %v2758 = vsel %vm1607, %v2674, 0
    %2760 = vmatprep.subr.mxu0 0.0
    %2761 = vmatpush1.msra.mxu0 %v1601
    %2762 = vmatprep.subr.mxu0 0.0
    %2763 = vmatpush1.msra.mxu0 %v1602
    %2764 = vmatprep.subr.mxu0 0.0
    %2765 = vmatpush1.msra.mxu0 %v1603
    %2766 = vmatprep.subr.mxu0 0.0
    %2767 = vmatpush1.msra.mxu0 %v1604
    %2768 = vmatprep.subr.mxu0 0.0
    %2769 = vmatpush1.msra.mxu0 0.0
    %2770 = vmatprep.subr.mxu0 0.0
    %2771 = vmatpush1.msra.mxu0 0.0
    %2772 = vmatprep.subr.mxu0 0.0
    %2773 = vmatpush1.msra.mxu0 0.0
    %2774 = vmatprep.subr.mxu0 0.0
    %2775 = vmatpush1.msra.mxu0 0.0
    %2776 = vmatprep.subr.mxu0 0.0
    %2777 = vmatpush1.msra.mxu0 0.0
    %2778 = vmatprep.subr.mxu0 0.0
    %2779 = vmatpush1.msra.mxu0 0.0
    %2780 = vmatprep.subr.mxu0 0.0
    %2781 = vmatpush1.msra.mxu0 0.0
    %2782 = vmatprep.subr.mxu0 0.0
    %2783 = vmatpush1.msra.mxu0 0.0
    %2784 = vmatprep.subr.mxu0 0.0
    %2785 = vmatpush1.msra.mxu0 0.0
    %2786 = vmatprep.subr.mxu0 0.0
    %2787 = vmatpush1.msra.mxu0 0.0
    %2788 = vmatprep.subr.mxu0 0.0
    %2789 = vmatpush1.msra.mxu0 0.0
    %2790 = vmatprep.subr.mxu0 0.0
    %2791 = vmatpush1.msra.mxu0 0.0
    %2792 = vmatprep.subr.mxu0 0.0
    %2793 = vmatpush1.msra.mxu0 0.0
    %2794 = vmatprep.subr.mxu0 0.0
    %2795 = vmatpush1.msra.mxu0 0.0
    %2796 = vmatprep.subr.mxu0 0.0
    %2797 = vmatpush1.msra.mxu0 0.0
    %2798 = vmatprep.subr.mxu0 0.0
    %2799 = vmatpush1.msra.mxu0 0.0
    %2800 = vmatprep.subr.mxu0 0.0
    %2801 = vmatpush1.msra.mxu0 0.0
    %2802 = vmatprep.subr.mxu0 0.0
    %2803 = vmatpush1.msra.mxu0 0.0
    %2804 = vmatprep.subr.mxu0 0.0
    %2805 = vmatpush1.msra.mxu0 0.0
    %2806 = vmatprep.subr.mxu0 0.0
    %2807 = vmatpush1.msra.mxu0 0.0
    %2808 = vmatprep.subr.mxu0 0.0
    %2809 = vmatpush1.msra.mxu0 0.0
    %2810 = vmatprep.subr.mxu0 0.0
    %2811 = vmatpush1.msra.mxu0 0.0
    %2812 = vmatprep.subr.mxu0 0.0
    %2813 = vmatpush1.msra.mxu0 0.0
    %2814 = vmatprep.subr.mxu0 0.0
    %2815 = vmatpush1.msra.mxu0 0.0
    %2816 = vmatprep.subr.mxu0 0.0
    %2817 = vmatpush1.msra.mxu0 0.0
    %2818 = vmatprep.subr.mxu0 0.0
    %2819 = vmatpush1.msra.mxu0 0.0
    %2820 = vmatprep.subr.mxu0 0.0
    %2821 = vmatpush1.msra.mxu0 0.0
    %2822 = vmatprep.subr.mxu0 0.0
    %2823 = vmatpush1.msra.mxu0 0.0
    %2824 = vmatprep.mubr.f32.mxu0 0.0
    %2825 = vmatmul.mubr.f32.gmra.mrb[0].mxu0 %v2758
    %v2826 = vpop.f32.mrb[0].mxu0
    %v2827 = vadd.f32 0.0, %v2826
    %v2828 = vpop.f32.mrb[0].mxu0
    %2829 = vdwg.mxu0
    %v2831 = vrot.slane %v2827, 4
    %v2833 = vadd.f32 %v1600, %v2831
    %v2834 = vxor.u32 %v2833, 2147483648
    %v2835 = vmul.f32 %v2834, 1.442695
    %v2836 = vpow.pop %v2835
    %v2837 = vadd.f32 %v2836, 1.0
    %v2838 = vrcp.pop %v2837
    %v2839 = vmul.f32 1.0, %v2838
    %v2840 = vtanh.pop %v2833
    %v2842 = vrot.slane %v2660, 6
    %v2844 = vmul.f32 %v2839, %v2842
    %2846 = vrot.lane.b32.xlu0 %v2840, 64
    %v2847 = vpop.permute.xlu0 %2846
    %v2849 = vmul.f32 %v2839, %v2847
    %2851 = vrot.lane.b32.xlu0 %v2849, 32
    %v2852 = vpop.permute.xlu0 %2851
    %v2854 = vadd.f32 %v2844, %v2852
    %v2855 = vtanh.pop %v2854
    %2857 = vrot.lane.b32.xlu0 %v2855, 64
    %v2858 = vpop.permute.xlu0 %2857
    %v2860 = vmul.f32 %v2839, %v2858
    %2861 = vrot.lane.b32.xlu0 %v1605, 116
    %v2862 = vpop.permute.xlu0 %2861
    %2863 = vrot.lane.b32.xlu0 %v1606, 116
    %v2864 = vpop.permute.xlu0 %2863
    %v2866 = vrot.slane %v2860, 4
    %2867 = vrot.lane.b32.xlu0 %v2866, 32
    %v2868 = vpop.permute.xlu0 %2867
    %v2869 = vsel %vm1822, %v2862, 0
    %v2871 = vsel %vm1822, %v2864, 0
    %v2873 = vsel %vm1827, %v2868, 0
    %2875 = vmatprep.subr.mxu0 0.0
    %2876 = vmatpush1.msra.mxu0 %v2873
    %2877 = vmatprep.subr.mxu0 0.0
    %2878 = vmatpush1.msra.mxu0 0.0
    %2879 = vmatprep.subr.mxu0 0.0
    %2880 = vmatpush1.msra.mxu0 0.0
    %2881 = vmatprep.subr.mxu0 0.0
    %2882 = vmatpush1.msra.mxu0 0.0
    %2883 = vmatprep.subr.mxu0 0.0
    %2884 = vmatpush1.msra.mxu0 0.0
    %2885 = vmatprep.subr.mxu0 0.0
    %2886 = vmatpush1.msra.mxu0 0.0
    %2887 = vmatprep.subr.mxu0 0.0
    %2888 = vmatpush1.msra.mxu0 0.0
    %2889 = vmatprep.subr.mxu0 0.0
    %2890 = vmatpush1.msra.mxu0 0.0
    %2891 = vmatprep.subr.mxu0 0.0
    %2892 = vmatpush1.msra.mxu0 0.0
    %2893 = vmatprep.subr.mxu0 0.0
    %2894 = vmatpush1.msra.mxu0 0.0
    %2895 = vmatprep.subr.mxu0 0.0
    %2896 = vmatpush1.msra.mxu0 0.0
    %2897 = vmatprep.subr.mxu0 0.0
    %2898 = vmatpush1.msra.mxu0 0.0
    %2899 = vmatprep.subr.mxu0 0.0
    %2900 = vmatpush1.msra.mxu0 0.0
    %2901 = vmatprep.subr.mxu0 0.0
    %2902 = vmatpush1.msra.mxu0 0.0
    %2903 = vmatprep.subr.mxu0 0.0
    %2904 = vmatpush1.msra.mxu0 0.0
    %2905 = vmatprep.subr.mxu0 0.0
    %2906 = vmatpush1.msra.mxu0 0.0
    %2907 = vmatprep.subr.mxu0 0.0
    %2908 = vmatpush1.msra.mxu0 0.0
    %2909 = vmatprep.subr.mxu0 0.0
    %2910 = vmatpush1.msra.mxu0 0.0
    %2911 = vmatprep.subr.mxu0 0.0
    %2912 = vmatpush1.msra.mxu0 0.0
    %2913 = vmatprep.subr.mxu0 0.0
    %2914 = vmatpush1.msra.mxu0 0.0
    %2915 = vmatprep.subr.mxu0 0.0
    %2916 = vmatpush1.msra.mxu0 0.0
    %2917 = vmatprep.subr.mxu0 0.0
    %2918 = vmatpush1.msra.mxu0 0.0
    %2919 = vmatprep.subr.mxu0 0.0
    %2920 = vmatpush1.msra.mxu0 0.0
    %2921 = vmatprep.subr.mxu0 0.0
    %2922 = vmatpush1.msra.mxu0 0.0
    %2923 = vmatprep.subr.mxu0 0.0
    %2924 = vmatpush1.msra.mxu0 0.0
    %2925 = vmatprep.subr.mxu0 0.0
    %2926 = vmatpush1.msra.mxu0 0.0
    %2927 = vmatprep.subr.mxu0 0.0
    %2928 = vmatpush1.msra.mxu0 0.0
    %2929 = vmatprep.subr.mxu0 0.0
    %2930 = vmatpush1.msra.mxu0 0.0
    %2931 = vmatprep.subr.mxu0 0.0
    %2932 = vmatpush1.msra.mxu0 0.0
    %2933 = vmatprep.subr.mxu0 0.0
    %2934 = vmatpush1.msra.mxu0 0.0
    %2935 = vmatprep.subr.mxu0 0.0
    %2936 = vmatpush1.msra.mxu0 0.0
    %2937 = vmatprep.subr.mxu0 0.0
    %2938 = vmatpush1.msra.mxu0 0.0
    %2939 = vmatprep.mubr.f32.mxu0 0.0
    %2940 = vmatmul.mubr.f32.gmra.mrb[0].mxu0 %v2869
    %v2941 = vpop.f32.mrb[0].mxu0
    %v2942 = vadd.f32 0.0, %v2941
    %v2943 = vpop.f32.mrb[0].mxu0
    %2944 = vmatprep.mubr.f32.mxu0 0.0
    %2945 = vmatmul.mubr.f32.gmra.mrb[0].mxu0 %v2871
    %v2946 = vpop.f32.mrb[0].mxu0
    %v2947 = vadd.f32 0.0, %v2946
    %v2948 = vpop.f32.mrb[0].mxu0
    %2949 = vdwg.mxu0
    %v2950 = vadd.f32 %v2756, %v2942
    %v2951 = vadd.f32 %v2757, %v2947
    %v2952 = vld [vmem:[%s0] sm:$0xff]
    %v2953 = vld [vmem:[%s0 + $0x8] sm:$0x3f]
    %v2954 = vsub.s32 %v2952, 1
    %v2955 = vsub.s32 %v2953, 1
    %2956 = vset.pattern.permute.xlu0 0
    %2957 = vperm.xlu0 %2956, %v2954
    %v2958 = vpop.permute.xlu0 %2957
    %2959 = vset.pattern.permute.xlu0 0
    %2960 = vperm.xlu0 %2959, %v2955
    %v2961 = vpop.permute.xlu0 %2960
    %vm2962 = vcmp.eq.s32.totalorder %v1235, %v2958
    %vm2963 = vcmp.eq.s32.totalorder %v1235, %v2961
    %v2964 = vsel %vm2962, 1, 0
    %v2965 = vsel %vm2963, 1, 0
    %v2966 = vcvt.s32.f32 %v2964
    %v2967 = vcvt.s32.f32 %v2965
    %v2969 = vsel %vm413, %v2966, 0
    %v2972 = vsel %vm413, %v2967, 0
    %2974 = vmatprep.subr.mxu0 0.0
    %2975 = vmatpush1.msra.mxu0 %v1229
    %2976 = vmatprep.subr.mxu0 0.0
    %2977 = vmatpush1.msra.mxu0 0.0
    %2978 = vmatprep.subr.mxu0 0.0
    %2979 = vmatpush1.msra.mxu0 0.0
    %2980 = vmatprep.subr.mxu0 0.0
    %2981 = vmatpush1.msra.mxu0 0.0
    %2982 = vmatprep.subr.mxu0 0.0
    %2983 = vmatpush1.msra.mxu0 0.0
    %2984 = vmatprep.subr.mxu0 0.0
    %2985 = vmatpush1.msra.mxu0 0.0
    %2986 = vmatprep.subr.mxu0 0.0
    %2987 = vmatpush1.msra.mxu0 0.0
    %2988 = vmatprep.subr.mxu0 0.0
    %2989 = vmatpush1.msra.mxu0 0.0
    %2990 = vmatprep.subr.mxu0 0.0
    %2991 = vmatpush1.msra.mxu0 0.0
    %2992 = vmatprep.subr.mxu0 0.0
    %2993 = vmatpush1.msra.mxu0 0.0
    %2994 = vmatprep.subr.mxu0 0.0
    %2995 = vmatpush1.msra.mxu0 0.0
    %2996 = vmatprep.subr.mxu0 0.0
    %2997 = vmatpush1.msra.mxu0 0.0
    %2998 = vmatprep.subr.mxu0 0.0
    %2999 = vmatpush1.msra.mxu0 0.0
    %3000 = vmatprep.subr.mxu0 0.0
    %3001 = vmatpush1.msra.mxu0 0.0
    %3002 = vmatprep.subr.mxu0 0.0
    %3003 = vmatpush1.msra.mxu0 0.0
    %3004 = vmatprep.subr.mxu0 0.0
    %3005 = vmatpush1.msra.mxu0 0.0
    %3006 = vmatprep.subr.mxu0 0.0
    %3007 = vmatpush1.msra.mxu0 0.0
    %3008 = vmatprep.subr.mxu0 0.0
    %3009 = vmatpush1.msra.mxu0 0.0
    %3010 = vmatprep.subr.mxu0 0.0
    %3011 = vmatpush1.msra.mxu0 0.0
    %3012 = vmatprep.subr.mxu0 0.0
    %3013 = vmatpush1.msra.mxu0 0.0
    %3014 = vmatprep.subr.mxu0 0.0
    %3015 = vmatpush1.msra.mxu0 0.0
    %3016 = vmatprep.subr.mxu0 0.0
    %3017 = vmatpush1.msra.mxu0 0.0
    %3018 = vmatprep.subr.mxu0 0.0
    %3019 = vmatpush1.msra.mxu0 0.0
    %3020 = vmatprep.subr.mxu0 0.0
    %3021 = vmatpush1.msra.mxu0 0.0
    %3022 = vmatprep.subr.mxu0 0.0
    %3023 = vmatpush1.msra.mxu0 0.0
    %3024 = vmatprep.subr.mxu0 0.0
    %3025 = vmatpush1.msra.mxu0 0.0
    %3026 = vmatprep.subr.mxu0 0.0
    %3027 = vmatpush1.msra.mxu0 0.0
    %3028 = vmatprep.subr.mxu0 0.0
    %3029 = vmatpush1.msra.mxu0 0.0
    %3030 = vmatprep.subr.mxu0 0.0
    %3031 = vmatpush1.msra.mxu0 0.0
    %3032 = vmatprep.subr.mxu0 0.0
    %3033 = vmatpush1.msra.mxu0 0.0
    %3034 = vmatprep.subr.mxu0 0.0
    %3035 = vmatpush1.msra.mxu0 0.0
    %3036 = vmatprep.subr.mxu0 0.0
    %3037 = vmatpush1.msra.mxu0 0.0
    %3038 = vmatprep.mubr.f32.mxu0 0.0
    %3039 = vmatmul.mubr.f32.gmra.mrb[0].mxu0 %v2969
    %v3040 = vpop.f32.mrb[0].mxu0
    %v3041 = vadd.f32 0.0, %v3040
    %v3042 = vpop.f32.mrb[0].mxu0
    %3043 = vmatprep.mubr.f32.mxu0 0.0
    %3044 = vmatmul.mubr.f32.gmra.mrb[0].mxu0 %v2972
    %v3045 = vpop.f32.mrb[0].mxu0
    %v3046 = vadd.f32 0.0, %v3045
    %v3047 = vpop.f32.mrb[0].mxu0
    %3048 = vdwg.mxu0
    %v3049 = vld [vmem:[%s14] sm:$0xff]
    %v3050 = vld [vmem:[%s14 + $0x8] sm:$0xff]
    %v3051 = vld [vmem:[%s14 + $0x10] sm:$0xff]
    %v3052 = vld [vmem:[%s14 + $0x18] sm:$0xff]
    %v3053 = vld [vmem:[%s14 + $0x20] sm:$0xff]
    %v3054 = vld [vmem:[%s14 + $0x28] sm:$0xff]
    %v3056 = vsel %vm73, %v3041, 0
    %v3059 = vsel %vm73, %v3046, 0
    %3061 = vmatprep.subr.mxu0 0.0
    %3062 = vmatpush1.msra.mxu0 %v3053
    %3063 = vmatprep.subr.mxu0 0.0
    %3064 = vmatpush1.msra.mxu0 %v3054
    %3065 = vmatprep.subr.mxu0 0.0
    %3066 = vmatpush1.msra.mxu0 0.0
    %3067 = vmatprep.subr.mxu0 0.0
    %3068 = vmatpush1.msra.mxu0 0.0
    %3069 = vmatprep.subr.mxu0 0.0
    %3070 = vmatpush1.msra.mxu0 0.0
    %3071 = vmatprep.subr.mxu0 0.0
    %3072 = vmatpush1.msra.mxu0 0.0
    %3073 = vmatprep.subr.mxu0 0.0
    %3074 = vmatpush1.msra.mxu0 0.0
    %3075 = vmatprep.subr.mxu0 0.0
    %3076 = vmatpush1.msra.mxu0 0.0
    %3077 = vmatprep.subr.mxu0 0.0
    %3078 = vmatpush1.msra.mxu0 0.0
    %3079 = vmatprep.subr.mxu0 0.0
    %3080 = vmatpush1.msra.mxu0 0.0
    %3081 = vmatprep.subr.mxu0 0.0
    %3082 = vmatpush1.msra.mxu0 0.0
    %3083 = vmatprep.subr.mxu0 0.0
    %3084 = vmatpush1.msra.mxu0 0.0
    %3085 = vmatprep.subr.mxu0 0.0
    %3086 = vmatpush1.msra.mxu0 0.0
    %3087 = vmatprep.subr.mxu0 0.0
    %3088 = vmatpush1.msra.mxu0 0.0
    %3089 = vmatprep.subr.mxu0 0.0
    %3090 = vmatpush1.msra.mxu0 0.0
    %3091 = vmatprep.subr.mxu0 0.0
    %3092 = vmatpush1.msra.mxu0 0.0
    %3093 = vmatprep.subr.mxu0 0.0
    %3094 = vmatpush1.msra.mxu0 0.0
    %3095 = vmatprep.subr.mxu0 0.0
    %3096 = vmatpush1.msra.mxu0 0.0
    %3097 = vmatprep.subr.mxu0 0.0
    %3098 = vmatpush1.msra.mxu0 0.0
    %3099 = vmatprep.subr.mxu0 0.0
    %3100 = vmatpush1.msra.mxu0 0.0
    %3101 = vmatprep.subr.mxu0 0.0
    %3102 = vmatpush1.msra.mxu0 0.0
    %3103 = vmatprep.subr.mxu0 0.0
    %3104 = vmatpush1.msra.mxu0 0.0
    %3105 = vmatprep.subr.mxu0 0.0
    %3106 = vmatpush1.msra.mxu0 0.0
    %3107 = vmatprep.subr.mxu0 0.0
    %3108 = vmatpush1.msra.mxu0 0.0
    %3109 = vmatprep.subr.mxu0 0.0
    %3110 = vmatpush1.msra.mxu0 0.0
    %3111 = vmatprep.subr.mxu0 0.0
    %3112 = vmatpush1.msra.mxu0 0.0
    %3113 = vmatprep.subr.mxu0 0.0
    %3114 = vmatpush1.msra.mxu0 0.0
    %3115 = vmatprep.subr.mxu0 0.0
    %3116 = vmatpush1.msra.mxu0 0.0
    %3117 = vmatprep.subr.mxu0 0.0
    %3118 = vmatpush1.msra.mxu0 0.0
    %3119 = vmatprep.subr.mxu0 0.0
    %3120 = vmatpush1.msra.mxu0 0.0
    %3121 = vmatprep.subr.mxu0 0.0
    %3122 = vmatpush1.msra.mxu0 0.0
    %3123 = vmatprep.subr.mxu0 0.0
    %3124 = vmatpush1.msra.mxu0 0.0
    %3125 = vmatprep.mubr.f32.mxu0 0.0
    %3126 = vmatmul.mubr.f32.gmra.mrb[0].mxu0 %v3056
    %v3127 = vpop.f32.mrb[0].mxu0
    %v3128 = vadd.f32 0.0, %v3127
    %v3129 = vpop.f32.mrb[0].mxu0
    %3130 = vmatprep.mubr.f32.mxu0 0.0
    %3131 = vmatmul.mubr.f32.gmra.mrb[0].mxu0 %v3059
    %v3132 = vpop.f32.mrb[0].mxu0
    %v3133 = vadd.f32 0.0, %v3132
    %v3134 = vpop.f32.mrb[0].mxu0
    %3135 = vdwg.mxu0
    %v3137 = vsel %vm1607, %v2950, 0
    %v3140 = vsel %vm1607, %v2951, 0
    %3142 = vmatprep.subr.mxu0 0.0
    %3143 = vmatpush1.msra.mxu0 %v3049
    %3144 = vmatprep.subr.mxu0 0.0
    %3145 = vmatpush1.msra.mxu0 %v3050
    %3146 = vmatprep.subr.mxu0 0.0
    %3147 = vmatpush1.msra.mxu0 %v3051
    %3148 = vmatprep.subr.mxu0 0.0
    %3149 = vmatpush1.msra.mxu0 %v3052
    %3150 = vmatprep.subr.mxu0 0.0
    %3151 = vmatpush1.msra.mxu0 0.0
    %3152 = vmatprep.subr.mxu0 0.0
    %3153 = vmatpush1.msra.mxu0 0.0
    %3154 = vmatprep.subr.mxu0 0.0
    %3155 = vmatpush1.msra.mxu0 0.0
    %3156 = vmatprep.subr.mxu0 0.0
    %3157 = vmatpush1.msra.mxu0 0.0
    %3158 = vmatprep.subr.mxu0 0.0
    %3159 = vmatpush1.msra.mxu0 0.0
    %3160 = vmatprep.subr.mxu0 0.0
    %3161 = vmatpush1.msra.mxu0 0.0
    %3162 = vmatprep.subr.mxu0 0.0
    %3163 = vmatpush1.msra.mxu0 0.0
    %3164 = vmatprep.subr.mxu0 0.0
    %3165 = vmatpush1.msra.mxu0 0.0
    %3166 = vmatprep.subr.mxu0 0.0
    %3167 = vmatpush1.msra.mxu0 0.0
    %3168 = vmatprep.subr.mxu0 0.0
    %3169 = vmatpush1.msra.mxu0 0.0
    %3170 = vmatprep.subr.mxu0 0.0
    %3171 = vmatpush1.msra.mxu0 0.0
    %3172 = vmatprep.subr.mxu0 0.0
    %3173 = vmatpush1.msra.mxu0 0.0
    %3174 = vmatprep.subr.mxu0 0.0
    %3175 = vmatpush1.msra.mxu0 0.0
    %3176 = vmatprep.subr.mxu0 0.0
    %3177 = vmatpush1.msra.mxu0 0.0
    %3178 = vmatprep.subr.mxu0 0.0
    %3179 = vmatpush1.msra.mxu0 0.0
    %3180 = vmatprep.subr.mxu0 0.0
    %3181 = vmatpush1.msra.mxu0 0.0
    %3182 = vmatprep.subr.mxu0 0.0
    %3183 = vmatpush1.msra.mxu0 0.0
    %3184 = vmatprep.subr.mxu0 0.0
    %3185 = vmatpush1.msra.mxu0 0.0
    %3186 = vmatprep.subr.mxu0 0.0
    %3187 = vmatpush1.msra.mxu0 0.0
    %3188 = vmatprep.subr.mxu0 0.0
    %3189 = vmatpush1.msra.mxu0 0.0
    %3190 = vmatprep.subr.mxu0 0.0
    %3191 = vmatpush1.msra.mxu0 0.0
    %3192 = vmatprep.subr.mxu0 0.0
    %3193 = vmatpush1.msra.mxu0 0.0
    %3194 = vmatprep.subr.mxu0 0.0
    %3195 = vmatpush1.msra.mxu0 0.0
    %3196 = vmatprep.subr.mxu0 0.0
    %3197 = vmatpush1.msra.mxu0 0.0
    %3198 = vmatprep.subr.mxu0 0.0
    %3199 = vmatpush1.msra.mxu0 0.0
    %3200 = vmatprep.subr.mxu0 0.0
    %3201 = vmatpush1.msra.mxu0 0.0
    %3202 = vmatprep.subr.mxu0 0.0
    %3203 = vmatpush1.msra.mxu0 0.0
    %3204 = vmatprep.subr.mxu0 0.0
    %3205 = vmatpush1.msra.mxu0 0.0
    %3206 = vmatprep.mubr.f32.mxu0 0.0
    %3207 = vmatmul.mubr.f32.gmra.mrb[0].mxu0 %v3137
    %v3208 = vpop.f32.mrb[0].mxu0
    %v3209 = vadd.f32 %v3128, %v3208
    %v3210 = vpop.f32.mrb[0].mxu0
    %3211 = vmatprep.mubr.f32.mxu0 0.0
    %3212 = vmatmul.mubr.f32.gmra.mrb[0].mxu0 %v3140
    %v3213 = vpop.f32.mrb[0].mxu0
    %v3214 = vadd.f32 %v3133, %v3213
    %v3215 = vpop.f32.mrb[0].mxu0
    %3216 = vdwg.mxu0
    %v3217 = vld [vmem:[%s15] sm:$0x1]
    %v3219 = vlaneseq
    %v3220 = vshrl.u32 %v3219, 7
    %v3221 = vsub.s32 0, %v3220
    %v3222 = vrot.slane %v3217, %v3221
    %v3224 = vadd.f32 %v3209, %v3222
    %v3225 = vadd.f32 %v3214, %v3222
    %v3226 = vmax.f32 %v3224, 0.0
    %v3227 = vmax.f32 %v3225, 0.0
    %v3228 = vld [vmem:[%s16] sm:$0xff]
    %v3229 = vld [vmem:[%s16 + $0x8] sm:$0xff]
    %v3230 = vld [vmem:[%s16 + $0x10] sm:$0xff]
    %v3231 = vld [vmem:[%s16 + $0x18] sm:$0xff]
    %v3232 = vld [vmem:[#allocation2] sm:$0x1]
    %v3234 = vlaneseq
    %v3235 = vshrl.u32 %v3234, 7
    %v3236 = vsub.s32 0, %v3235
    %v3237 = vrot.slane %v3232, %v3236
    %v3240 = vsel %vm1607, %v3226, 0
    %v3243 = vsel %vm1607, %v3227, 0
    %3245 = vmatprep.subr.mxu0 0.0
    %3246 = vmatpush1.msra.mxu0 %v3228
    %3247 = vmatprep.subr.mxu0 0.0
    %3248 = vmatpush1.msra.mxu0 %v3229
    %3249 = vmatprep.subr.mxu0 0.0
    %3250 = vmatpush1.msra.mxu0 %v3230
    %3251 = vmatprep.subr.mxu0 0.0
    %3252 = vmatpush1.msra.mxu0 %v3231
    %3253 = vmatprep.subr.mxu0 0.0
    %3254 = vmatpush1.msra.mxu0 0.0
    %3255 = vmatprep.subr.mxu0 0.0
    %3256 = vmatpush1.msra.mxu0 0.0
    %3257 = vmatprep.subr.mxu0 0.0
    %3258 = vmatpush1.msra.mxu0 0.0
    %3259 = vmatprep.subr.mxu0 0.0
    %3260 = vmatpush1.msra.mxu0 0.0
    %3261 = vmatprep.subr.mxu0 0.0
    %3262 = vmatpush1.msra.mxu0 0.0
    %3263 = vmatprep.subr.mxu0 0.0
    %3264 = vmatpush1.msra.mxu0 0.0
    %3265 = vmatprep.subr.mxu0 0.0
    %3266 = vmatpush1.msra.mxu0 0.0
    %3267 = vmatprep.subr.mxu0 0.0
    %3268 = vmatpush1.msra.mxu0 0.0
    %3269 = vmatprep.subr.mxu0 0.0
    %3270 = vmatpush1.msra.mxu0 0.0
    %3271 = vmatprep.subr.mxu0 0.0
    %3272 = vmatpush1.msra.mxu0 0.0
    %3273 = vmatprep.subr.mxu0 0.0
    %3274 = vmatpush1.msra.mxu0 0.0
    %3275 = vmatprep.subr.mxu0 0.0
    %3276 = vmatpush1.msra.mxu0 0.0
    %3277 = vmatprep.subr.mxu0 0.0
    %3278 = vmatpush1.msra.mxu0 0.0
    %3279 = vmatprep.subr.mxu0 0.0
    %3280 = vmatpush1.msra.mxu0 0.0
    %3281 = vmatprep.subr.mxu0 0.0
    %3282 = vmatpush1.msra.mxu0 0.0
    %3283 = vmatprep.subr.mxu0 0.0
    %3284 = vmatpush1.msra.mxu0 0.0
    %3285 = vmatprep.subr.mxu0 0.0
    %3286 = vmatpush1.msra.mxu0 0.0
    %3287 = vmatprep.subr.mxu0 0.0
    %3288 = vmatpush1.msra.mxu0 0.0
    %3289 = vmatprep.subr.mxu0 0.0
    %3290 = vmatpush1.msra.mxu0 0.0
    %3291 = vmatprep.subr.mxu0 0.0
    %3292 = vmatpush1.msra.mxu0 0.0
    %3293 = vmatprep.subr.mxu0 0.0
    %3294 = vmatpush1.msra.mxu0 0.0
    %3295 = vmatprep.subr.mxu0 0.0
    %3296 = vmatpush1.msra.mxu0 0.0
    %3297 = vmatprep.subr.mxu0 0.0
    %3298 = vmatpush1.msra.mxu0 0.0
    %3299 = vmatprep.subr.mxu0 0.0
    %3300 = vmatpush1.msra.mxu0 0.0
    %3301 = vmatprep.subr.mxu0 0.0
    %3302 = vmatpush1.msra.mxu0 0.0
    %3303 = vmatprep.subr.mxu0 0.0
    %3304 = vmatpush1.msra.mxu0 0.0
    %3305 = vmatprep.subr.mxu0 0.0
    %3306 = vmatpush1.msra.mxu0 0.0
    %3307 = vmatprep.subr.mxu0 0.0
    %3308 = vmatpush1.msra.mxu0 0.0
    %3309 = vmatprep.mubr.f32.mxu0 0.0
    %3310 = vmatmul.mubr.f32.gmra.mrb[0].mxu0 %v3240
    %v3311 = vpop.f32.mrb[0].mxu0
    %v3312 = vadd.f32 %v3237, %v3311
    %v3313 = vpop.f32.mrb[0].mxu0
    %3314 = vmatprep.mubr.f32.mxu0 0.0
    %3315 = vmatmul.mubr.f32.gmra.mrb[0].mxu0 %v3243
    %v3316 = vpop.f32.mrb[0].mxu0
    %v3317 = vadd.f32 %v3237, %v3316
    %v3318 = vpop.f32.mrb[0].mxu0
    %3319 = vdwg.mxu0
    %v3320 = vld [vmem:[%s2] sm:$0xff]
    %v3321 = vld [vmem:[%s2 + $0x8] sm:$0x3f]
    %vm3322 = vcmp.ge.f32.partialorder %v3320, 0.0
    %vm3323 = vcmp.ge.f32.partialorder %v3321, 0.0
    %v3324 = vsel %vm3322, 1, 0
    %v3325 = vsel %vm3323, 1, 0
    %v3326 = vcvt.s32.f32 %v3324
    %v3327 = vcvt.s32.f32 %v3325
    %v3328 = vmax.f32 %v3312, 0.0
    %v3329 = vmax.f32 %v3317, 0.0
    %v3330 = vmul.f32 %v3312, %v3320
    %v3331 = vmul.f32 %v3317, %v3321
    %v3332 = vsub.f32 %v3328, %v3330
    %v3333 = vsub.f32 %v3329, %v3331
    %v3334 = vand.u32 2147483647, %v3312
    %v3335 = vand.u32 2147483647, %v3317
    %v3336 = vsub.f32 0.0, %v3334
    %v3337 = vsub.f32 0.0, %v3335
    %v3338 = vmul.f32 %v3336, 1.442695
    %v3339 = vpow.pop %v3338
    %v3340 = vmul.f32 %v3337, 1.442695
    %v3341 = vpow.pop %v3340
    %v3342 = vadd.f32 %v3339, 1.0
    %v3343 = vadd.f32 %v3341, 1.0
    %v3344 = vlog2.pop %v3342
    %v3345 = vmul.f32 %v3344, 0.6931472
    %v3346 = vlog2.pop %v3343
    %v3347 = vmul.f32 %v3346, 0.6931472
    %v3348 = vadd.f32 %v3332, %v3345
    %v3349 = vadd.f32 %v3333, %v3347
    %v3350 = vmul.f32 %v3326, %v3348
    %v3351 = vmul.f32 %v3327, %v3349
    %vm3352 = vcmask 7168
    %v3353 = vsel %vm3352, %v3350, 0.0
    %vm3354 = vcmask 5120
    %v3355 = vsel %vm3354, %v3351, 0.0
    %v3356 = vadd.f32 %v3353, %v3355
    %3357 = vadd.xlane.f32.xlu0 %v3356
    %v3358 = vpop.xlane.xlu0 %3357
    %v3359 = vrot.slane %v3358, 4
    %v3360 = vadd.f32 %v3358, %v3359
    %v3361 = vrot.slane %v3360, 2
    %v3362 = vadd.f32 %v3360, %v3361
    %v3363 = vrot.slane %v3362, 1
    %v3364 = vadd.f32 %v3362, %v3363
    %s3365 = vtos %v3364
    %v3366 = vstv %s3365
    %v3367 = vsel %vm3352, %v3326, 0.0
    %v3368 = vsel %vm3354, %v3327, 0.0
    %v3369 = vadd.f32 %v3367, %v3368
    %3370 = vadd.xlane.f32.xlu0 %v3369
    %v3371 = vpop.xlane.xlu0 %3370
    %v3372 = vrot.slane %v3371, 4
    %v3373 = vadd.f32 %v3371, %v3372
    %v3374 = vrot.slane %v3373, 2
    %v3375 = vadd.f32 %v3373, %v3374
    %v3376 = vrot.slane %v3375, 1
    %v3377 = vadd.f32 %v3375, %v3376
    %s3378 = vtos %v3377
    %v3379 = vstv %s3378
    %v3380 = vrcp.pop %v3379
    %v3381 = vmul.f32 %v3366, %v3380
    %vm3382 = vcmask 0
    %3383 = vst.msk [vmem:[#allocation3] sm:$0x1] %vm3382, %v3381
    %v3384 = vxor.u32 %v3312, 2147483648
    %v3385 = vxor.u32 %v3317, 2147483648
    %v3386 = vmul.f32 %v3384, 1.442695
    %v3387 = vpow.pop %v3386
    %v3388 = vmul.f32 %v3385, 1.442695
    %v3389 = vpow.pop %v3388
    %v3390 = vadd.f32 %v3387, 1.0
    %v3391 = vadd.f32 %v3389, 1.0
    %v3392 = vrcp.pop %v3390
    %v3393 = vmul.f32 1.0, %v3392
    %v3394 = vrcp.pop %v3391
    %v3395 = vmul.f32 1.0, %v3394
    %3396 = vst.msk [vmem:[%s19] sm:$0xff] %vm3352, %v3393
    %3397 = vst.msk [vmem:[%s19 + $0x8] sm:$0x3f] %vm3354, %v3395
    // Predicated region
    $region74: #{model_forward.1} parent=1 // pred_check
      _
    $region75: #{model_forward.1} parent=1 // pred_check_branch
      %3399 = sbr.rel (0) target = $region77
    $region76: #{model_forward.1} parent=1 // pred_region
      %s3401 = ssub.s32 16, 16
      %3402 = vsyncadd [#allocation4], %s3401
      %s3404 = sshll.u32 [#allocation3], 4
      %s3405 = int_to_ptr.vmem [resolvable:$true] %s3404
      %3407 = dma.vmem_to_hbm [thread:$0]  %s3405, 16, %s18, [#allocation4]
    $region77: #{model_forward.1} parent=1 // pred_fallthru
      _
    // Predicated region
    $region78: #{model_forward.1} parent=1 // pred_check
      _
    $region79: #{model_forward.1} parent=1 // pred_check_branch
      %3409 = sbr.rel (0) target = $region81
    $region80: #{model_forward.1} parent=1 // pred_region
      _
    $region81: #{model_forward.1} parent=1 // pred_fallthru
      _
    // Predicated region
    $region82: #{model_forward.1} parent=1 // pred_check
      _
    $region83: #{model_forward.1} parent=1 // pred_check_branch
      %3411 = sbr.rel (0) target = $region85
    $region84: #{model_forward.1} parent=1 // pred_region
      %3412 = dma.done [#allocation4], 16
    $region85: #{model_forward.1} parent=1 // pred_fallthru
      _
    // Predicated region
    $region86: #{model_forward.1} parent=1 // pred_check
      _
    $region87: #{model_forward.1} parent=1 // pred_check_branch
      %3414 = sbr.rel (0) target = $region89
    $region88: #{model_forward.1} parent=1 // pred_region
      _
    $region89: #{model_forward.1} parent=1 // pred_fallthru
      _
    %3415 = vsyncpa [#allocation4], 1

</llo_original>
